<compile_context>
chip_gen: v7x
topology: tpu7x:2x2x1
jax: 0.10.0
libtpu: 0.0.40
codegen_flags: <defaults>
</compile_context>

<pallas_src>
import numpy as np
import jax
import jax.numpy as jnp
from jax.experimental import pallas as pl
from jax.experimental.pallas import tpu as pltpu

# ------------------------- model config (small) -------------------------
B = 2          # batch
T = 8          # sequence length
D = 32         # hidden units
H = 4          # attention heads
DK = D // H    # head dim
LN_EPS = 1e-5
NEG = -1e9
# MXU / rel-tensor storage dtype (accumulation stays float32).
OPERAND_DTYPE = jnp.bfloat16


# ------------------------------- kernel ---------------------------------
def _tisas_block_kernel(
    x_ref, am_ref, pk_ref, pv_ref, rk_ref, rv_ref,
    wqkv_ref, bqkv_ref,
    ln1_g_ref, ln1_b_ref, ln2_g_ref, ln2_b_ref,
    w1_ref, b1_ref, w2_ref, b2_ref,
    out_ref,
):
    f32 = jnp.float32
    x = x_ref[...]                         # (B, T, D) f32
    xf = x.reshape(B * T, D)               # flatten batch for LN / matmuls

    def layer_norm(v, g_ref, b_ref):
        mu = jnp.mean(v, axis=-1, keepdims=True)
        var = jnp.mean((v - mu) ** 2, axis=-1, keepdims=True)
        return (v - mu) * jax.lax.rsqrt(var + LN_EPS) * g_ref[...] + b_ref[...]

    def split_heads(t):                    # (B*T, D) -> (B*H, T, DK)
        t = t.reshape(B, T, D)
        parts = [t[:, :, h * DK:(h + 1) * DK] for h in range(H)]   # H x (B,T,DK)
        return jnp.stack(parts, axis=1).reshape(B * H, T, DK)

    def merge_heads(o):                    # (B*H, T, DK) -> (B, T, D)
        o = o.reshape(B, H, T, DK)
        return jnp.concatenate([o[:, h] for h in range(H)], axis=-1)

    # ---- sublayer 1: multi-headed TiSAS attention (pre-LN, residual) ----
    h1 = layer_norm(xf, ln1_g_ref, ln1_b_ref)                     # (B*T, D)
    # fused QKV projection: single (B*T, D) @ (D, 3D) MXU matmul, f32 accumulate
    qkv = jnp.dot(h1.astype(wqkv_ref.dtype), wqkv_ref[...],
                  preferred_element_type=f32) + bqkv_ref[...]      # (B*T, 3D)

    scale = 1.0 / (DK ** 0.5)
    q = qkv[:, :D] * scale                                         # fold scale into q
    k = qkv[:, D:2 * D] + pk_ref[...].reshape(B * T, D)            # fold pos_k into k
    v = qkv[:, 2 * D:] + pv_ref[...].reshape(B * T, D)             # fold pos_v into v

    q_h = split_heads(q)                                           # (B*H, T, DK) f32
    k_h = split_heads(k).astype(OPERAND_DTYPE)
    v_h = split_heads(v).astype(OPERAND_DTYPE)

    # content scores: heads folded into the single batch dim of a batched matmul
    s = jnp.einsum('bqd,bkd->bqk', q_h.astype(OPERAND_DTYPE), k_h,
                   preferred_element_type=f32)                     # (B*H, T, T)

    # relative-position key term: r_k laid out (B*H, Tq, DK, Tk) -> multiply is
    # lane-parallel over keys, reduction over DK is a cheap sublane reduce.
    s = s + jnp.sum(q_h[:, :, :, None] * rk_ref[...], axis=2)      # (B*H, T, T)

    # additive mask (0 / -1e9), broadcast over heads
    am = am_ref[...]                                               # (B, T, T)
    s = s + jnp.broadcast_to(am[:, None], (B, H, T, T)).reshape(B * H, T, T)

    # numerically-stable softmax; reciprocal runs on the EUP slot
    s = s - jnp.max(s, axis=-1, keepdims=True)
    p = jnp.exp(s)
    p = p * pl.reciprocal(jnp.sum(p, axis=-1, keepdims=True), approx=True)

    # content output + relative-position value term (lane-parallel multiply,
    # reduce over the lane/key axis).
    o = jnp.einsum('bqk,bkd->bqd', p.astype(OPERAND_DTYPE), v_h,
                   preferred_element_type=f32)                     # (B*H, T, DK)
    o = o + jnp.sum(p[:, :, None, :] * rv_ref[...], axis=-1)

    x1 = xf + merge_heads(o).reshape(B * T, D)                     # residual 1

    # ---- sublayer 2: position-wise feed-forward (pre-LN, residual) ----
    h2 = layer_norm(x1, ln2_g_ref, ln2_b_ref)
    ff = jnp.dot(h2.astype(w1_ref.dtype), w1_ref[...],
                 preferred_element_type=f32) + b1_ref[...]
    ff = jnp.maximum(ff, 0.0)                                      # ReLU
    ff = jnp.dot(ff.astype(w2_ref.dtype), w2_ref[...],
                 preferred_element_type=f32) + b2_ref[...]

    out_ref[...] = (x1 + ff).reshape(B, T, D).astype(out_ref.dtype)


# ------------------------------- wrapper ---------------------------------
@jax.jit
def tisas_transformer_block(x, mask, pos_k, pos_v, r_k, r_v, params):
    (wq, bq, wk, bk, wv, bv, ln1_g, ln1_b, ln2_g, ln2_b, w1, b1, w2, b2) = params

    # Layout / dtype prep done ONCE outside the kernel (fused by XLA):
    #  * fused QKV weight (D, 3D) in bf16
    #  * additive mask (B, T, T)
    #  * pos_k/pos_v stay (B, T, D): lane axis = D (lane-dense)
    #  * r_k/r_v -> (B*H, Tq, DK, Tk) in bf16: lane axis = Tk (lane-dense)
    wqkv = jnp.concatenate([wq, wk, wv], axis=1).astype(OPERAND_DTYPE)   # (D, 3D)
    bqkv = jnp.concatenate([bq, bk, bv], axis=1).astype(jnp.float32)     # (1, 3D)
    add_mask = jnp.where(mask[:, 0] == 0, NEG, 0.0).astype(jnp.float32)  # (B, T, T)

    def rel_lane_dense(r):   # (B, Tq, Tk, D) -> (B*H, Tq, DK, Tk)
        r = r.reshape(B, T, T, H, DK).transpose(0, 3, 1, 4, 2)
        return r.reshape(B * H, T, DK, T).astype(OPERAND_DTYPE)

    args = (x, add_mask, pos_k, pos_v, rel_lane_dense(r_k), rel_lane_dense(r_v),
            wqkv, bqkv, ln1_g, ln1_b, ln2_g, ln2_b,
            w1.astype(OPERAND_DTYPE), b1, w2.astype(OPERAND_DTYPE), b2)

    # advisory cost estimate for the XLA scheduler
    flops = (2 * B * T * D * 3 * D            # fused QKV projection
             + 4 * 2 * B * H * T * T * DK     # qk, q.r_k, pv, p.r_v
             + 2 * 2 * B * T * D * D)         # FFN
    bytes_accessed = int(sum(int(np.prod(a.shape)) * a.dtype.itemsize for a in args)
                         + B * T * D * 4)
    cost = pl.CostEstimate(flops=int(flops), transcendentals=B * H * T * T,
                           bytes_accessed=bytes_accessed)

    def full_spec(a):
        nd = a.ndim
        return pl.BlockSpec(a.shape, lambda i, nd=nd: (0,) * nd)

    return pl.pallas_call(
        _tisas_block_kernel,
        out_shape=jax.ShapeDtypeStruct((B, T, D), x.dtype),
        grid=(1,),                                    # single invocation: whole batch
        in_specs=[full_spec(a) for a in args],
        out_specs=pl.BlockSpec((B, T, D), lambda i: (0, 0, 0)),
        compiler_params=pltpu.CompilerParams(
            dimension_semantics=("arbitrary",)),
        cost_estimate=cost,
    )(*args)


# --------------------------- pure-JAX reference ---------------------------
def reference_block(x, mask, pos_k, pos_v, r_k, r_v, params):
    (wq, bq, wk, bk, wv, bv, ln1_g, ln1_b, ln2_g, ln2_b, w1, b1, w2, b2) = params

    def ln(v, g, b):
        mu = v.mean(-1, keepdims=True)
        var = ((v - mu) ** 2).mean(-1, keepdims=True)
        return (v - mu) / jnp.sqrt(var + LN_EPS) * g + b

    def split_heads(v):  # (B,T,D) -> (B,H,T,DK)
        return v.reshape(B, T, H, DK).transpose(0, 2, 1, 3)

    h1 = ln(x, ln1_g, ln1_b)
    q, k, v = (h1 @ wq + bq, h1 @ wk + bk, h1 @ wv + bv)
    q, k, v = split_heads(q), split_heads(k), split_heads(v)
    pk, pv = split_heads(pos_k), split_heads(pos_v)
    rk = r_k.reshape(B, T, T, H, DK).transpose(0, 3, 1, 2, 4)
    rv = r_v.reshape(B, T, T, H, DK).transpose(0, 3, 1, 2, 4)

    scores = jnp.einsum('bnid,bnjd->bnij', q, k)
    scores += jnp.einsum('bnid,bnjd->bnij', q, pk)
    scores += jnp.einsum('bnid,bnijd->bnij', q, rk)
    scores *= 1.0 / (DK ** 0.5)
    scores = jnp.where(mask == 0, NEG, scores)
    p = jax.nn.softmax(scores, axis=-1)
    out = jnp.einsum('bnij,bnjd->bnid', p, v)
    out += jnp.einsum('bnij,bnjd->bnid', p, pv)
    out += jnp.einsum('bnij,bnijd->bnid', p, rv)
    attn = out.transpose(0, 2, 1, 3).reshape(B, T, D)
    x = x + attn

    h2 = ln(x, ln2_g, ln2_b)
    ff = jnp.maximum(h2 @ w1 + b1, 0.0) @ w2 + b2
    return x + ff


# --------------------------------- main -----------------------------------
if __name__ == "__main__":
    key = jax.random.PRNGKey(0)
    ks = jax.random.split(key, 20)

    x = jax.random.normal(ks[0], (B, T, D), jnp.float32)
    pos_k = jax.random.normal(ks[1], (B, T, D), jnp.float32) * 0.1
    pos_v = jax.random.normal(ks[2], (B, T, D), jnp.float32) * 0.1
    r_k = jax.random.normal(ks[3], (B, T, T, D), jnp.float32) * 0.1
    r_v = jax.random.normal(ks[4], (B, T, T, D), jnp.float32) * 0.1
    # causal / padding-style mask (B, 1, T, T), 1 = keep, 0 = masked
    mask = jnp.tril(jnp.ones((T, T), jnp.float32))[None, None].repeat(B, axis=0)

    s = 0.05  # deterministic small-scale param init
    # q/k/v projection weights stored pre-transposed: y = x @ W + b
    wq = jax.random.normal(ks[5], (D, D), jnp.float32) * s
    bq = jax.random.normal(ks[6], (1, D), jnp.float32) * s
    wk = jax.random.normal(ks[7], (D, D), jnp.float32) * s
    bk = jax.random.normal(ks[8], (1, D), jnp.float32) * s
    wv = jax.random.normal(ks[9], (D, D), jnp.float32) * s
    bv = jax.random.normal(ks[10], (1, D), jnp.float32) * s
    ln1_g = jnp.ones((1, D), jnp.float32)
    ln1_b = jnp.zeros((1, D), jnp.float32)
    ln2_g = jnp.ones((1, D), jnp.float32)
    ln2_b = jnp.zeros((1, D), jnp.float32)
    w1 = jax.random.normal(ks[11], (D, D), jnp.float32) * s   # d_ff == hidden
    b1 = jax.random.normal(ks[12], (1, D), jnp.float32) * s
    w2 = jax.random.normal(ks[13], (D, D), jnp.float32) * s
    b2 = jax.random.normal(ks[14], (1, D), jnp.float32) * s

    params = (wq, bq, wk, bk, wv, bv, ln1_g, ln1_b, ln2_g, ln2_b, w1, b1, w2, b2)

    out = tisas_transformer_block(x, mask, pos_k, pos_v, r_k, r_v, params)
    out = jax.block_until_ready(out)

    ref = reference_block(x, mask, pos_k, pos_v, r_k, r_v, params)
    # bf16 matmul operands / rel tensors (f32 accumulation) -> loosened tolerance.
    tol = 2e-2 if OPERAND_DTYPE == jnp.bfloat16 else 1e-4
    np.testing.assert_allclose(np.asarray(out), np.asarray(ref), rtol=tol, atol=tol)

    print("KERNEL_OK")
</pallas_src>

<mosaic_0001>
module attributes {stable_mosaic.version = 11 : i64} {
  func.func @_tisas_block_kernel(%arg0: i32, %arg1: memref<2x8x32xf32, #tpu.memory_space<vmem>>, %arg2: memref<2x8x8xf32, #tpu.memory_space<vmem>>, %arg3: memref<2x8x32xf32, #tpu.memory_space<vmem>>, %arg4: memref<2x8x32xf32, #tpu.memory_space<vmem>>, %arg5: memref<8x8x8x8xbf16, #tpu.memory_space<vmem>>, %arg6: memref<8x8x8x8xbf16, #tpu.memory_space<vmem>>, %arg7: memref<32x96xbf16, #tpu.memory_space<vmem>>, %arg8: memref<1x96xf32, #tpu.memory_space<vmem>>, %arg9: memref<1x32xf32, #tpu.memory_space<vmem>>, %arg10: memref<1x32xf32, #tpu.memory_space<vmem>>, %arg11: memref<1x32xf32, #tpu.memory_space<vmem>>, %arg12: memref<1x32xf32, #tpu.memory_space<vmem>>, %arg13: memref<32x32xbf16, #tpu.memory_space<vmem>>, %arg14: memref<1x32xf32, #tpu.memory_space<vmem>>, %arg15: memref<32x32xbf16, #tpu.memory_space<vmem>>, %arg16: memref<1x32xf32, #tpu.memory_space<vmem>>, %arg17: memref<2x8x32xf32, #tpu.memory_space<vmem>>) attributes {dimension_semantics = [#tpu.dimension_semantics<arbitrary>], iteration_bounds = array<i64: 1>, scalar_prefetch = 0 : i64, scratch_operands = 0 : i64, tpu.core_type = #tpu.core_type<tc>, window_params = [{pipeline_mode = #tpu.pipeline_mode<synchronous>, transform_indices = @transform_0, window_bounds = array<i64: 2, 8, 32>}, {pipeline_mode = #tpu.pipeline_mode<synchronous>, transform_indices = @transform_1, window_bounds = array<i64: 2, 8, 8>}, {pipeline_mode = #tpu.pipeline_mode<synchronous>, transform_indices = @transform_2, window_bounds = array<i64: 2, 8, 32>}, {pipeline_mode = #tpu.pipeline_mode<synchronous>, transform_indices = @transform_3, window_bounds = array<i64: 2, 8, 32>}, {pipeline_mode = #tpu.pipeline_mode<synchronous>, transform_indices = @transform_4, window_bounds = array<i64: 8, 8, 8, 8>}, {pipeline_mode = #tpu.pipeline_mode<synchronous>, transform_indices = @transform_5, window_bounds = array<i64: 8, 8, 8, 8>}, {pipeline_mode = #tpu.pipeline_mode<synchronous>, transform_indices = @transform_6, window_bounds = array<i64: 32, 96>}, {pipeline_mode = #tpu.pipeline_mode<synchronous>, transform_indices = @transform_7, window_bounds = array<i64: 1, 96>}, {pipeline_mode = #tpu.pipeline_mode<synchronous>, transform_indices = @transform_8, window_bounds = array<i64: 1, 32>}, {pipeline_mode = #tpu.pipeline_mode<synchronous>, transform_indices = @transform_9, window_bounds = array<i64: 1, 32>}, {pipeline_mode = #tpu.pipeline_mode<synchronous>, transform_indices = @transform_10, window_bounds = array<i64: 1, 32>}, {pipeline_mode = #tpu.pipeline_mode<synchronous>, transform_indices = @transform_11, window_bounds = array<i64: 1, 32>}, {pipeline_mode = #tpu.pipeline_mode<synchronous>, transform_indices = @transform_12, window_bounds = array<i64: 32, 32>}, {pipeline_mode = #tpu.pipeline_mode<synchronous>, transform_indices = @transform_13, window_bounds = array<i64: 1, 32>}, {pipeline_mode = #tpu.pipeline_mode<synchronous>, transform_indices = @transform_14, window_bounds = array<i64: 32, 32>}, {pipeline_mode = #tpu.pipeline_mode<synchronous>, transform_indices = @transform_15, window_bounds = array<i64: 1, 32>}, {pipeline_mode = #tpu.pipeline_mode<synchronous>, transform_indices = @transform_16, window_bounds = array<i64: 2, 8, 32>}]} {
    %c0 = arith.constant 0 : index
    %c0_0 = arith.constant 0 : index
    %c0_1 = arith.constant 0 : index
    %0 = vector.load %arg1[%c0, %c0_0, %c0_1] : memref<2x8x32xf32, #tpu.memory_space<vmem>>, vector<2x8x32xf32>
    %1 = vector.shape_cast %0 : vector<2x8x32xf32> to vector<16x32xf32>
    %cst = arith.constant dense<0.000000e+00> : vector<16xf32>
    %2 = vector.multi_reduction <add>, %1, %cst [1] : vector<16x32xf32> to vector<16xf32>
    %3 = vector.shape_cast %2 : vector<16xf32> to vector<16x1xf32>
    %cst_2 = arith.constant 3.200000e+01 : f32
    %4 = vector.broadcast %cst_2 : f32 to vector<16x1xf32>
    %5 = arith.divf %3, %4 : vector<16x1xf32>
    %6 = vector.broadcast %5 : vector<16x1xf32> to vector<16x32xf32>
    %7 = arith.subf %1, %6 : vector<16x32xf32>
    %8 = arith.mulf %7, %7 : vector<16x32xf32>
    %cst_3 = arith.constant dense<0.000000e+00> : vector<16xf32>
    %9 = vector.multi_reduction <add>, %8, %cst_3 [1] : vector<16x32xf32> to vector<16xf32>
    %10 = vector.shape_cast %9 : vector<16xf32> to vector<16x1xf32>
    %cst_4 = arith.constant 3.200000e+01 : f32
    %11 = vector.broadcast %cst_4 : f32 to vector<16x1xf32>
    %12 = arith.divf %10, %11 : vector<16x1xf32>
    %13 = vector.broadcast %5 : vector<16x1xf32> to vector<16x32xf32>
    %14 = arith.subf %1, %13 : vector<16x32xf32>
    %cst_5 = arith.constant 9.99999974E-6 : f32
    %15 = vector.broadcast %cst_5 : f32 to vector<16x1xf32>
    %16 = arith.addf %12, %15 : vector<16x1xf32>
    %17 = math.rsqrt %16 : vector<16x1xf32>
    %18 = vector.broadcast %17 : vector<16x1xf32> to vector<16x32xf32>
    %19 = arith.mulf %14, %18 : vector<16x32xf32>
    %c0_6 = arith.constant 0 : index
    %c0_7 = arith.constant 0 : index
    %20 = vector.load %arg9[%c0_6, %c0_7] : memref<1x32xf32, #tpu.memory_space<vmem>>, vector<1x32xf32>
    %21 = vector.broadcast %20 : vector<1x32xf32> to vector<16x32xf32>
    %22 = arith.mulf %19, %21 : vector<16x32xf32>
    %c0_8 = arith.constant 0 : index
    %c0_9 = arith.constant 0 : index
    %23 = vector.load %arg10[%c0_8, %c0_9] : memref<1x32xf32, #tpu.memory_space<vmem>>, vector<1x32xf32>
    %24 = vector.broadcast %23 : vector<1x32xf32> to vector<16x32xf32>
    %25 = arith.addf %22, %24 : vector<16x32xf32>
    %26 = arith.truncf %25 : vector<16x32xf32> to vector<16x32xbf16>
    %c0_10 = arith.constant 0 : index
    %c0_11 = arith.constant 0 : index
    %27 = vector.load %arg7[%c0_10, %c0_11] : memref<32x96xbf16, #tpu.memory_space<vmem>>, vector<32x96xbf16>
    %cst_12 = arith.constant dense<0.000000e+00> : vector<16x96xf32>
    %28 = tpu.matmul %26, %27, %cst_12 {dimension_numbers = #tpu.dot_dimension_numbers<[1], [0], [0], [1], [0, 0, 1, 1], [], []>} : vector<16x32xbf16>, vector<32x96xbf16>, vector<16x96xf32> -> vector<16x96xf32>
    %c0_13 = arith.constant 0 : index
    %c0_14 = arith.constant 0 : index
    %29 = vector.load %arg8[%c0_13, %c0_14] : memref<1x96xf32, #tpu.memory_space<vmem>>, vector<1x96xf32>
    %30 = vector.broadcast %29 : vector<1x96xf32> to vector<16x96xf32>
    %31 = arith.addf %28, %30 : vector<16x96xf32>
    %32 = vector.extract_strided_slice %31 {offsets = [0, 0], sizes = [16, 32], strides = [1, 1]} : vector<16x96xf32> to vector<16x32xf32>
    %cst_15 = arith.constant 0.353553385 : f32
    %33 = vector.broadcast %cst_15 : f32 to vector<16x32xf32>
    %34 = arith.mulf %32, %33 : vector<16x32xf32>
    %35 = vector.extract_strided_slice %31 {offsets = [0, 32], sizes = [16, 32], strides = [1, 1]} : vector<16x96xf32> to vector<16x32xf32>
    %c0_16 = arith.constant 0 : index
    %c0_17 = arith.constant 0 : index
    %c0_18 = arith.constant 0 : index
    %36 = vector.load %arg3[%c0_16, %c0_17, %c0_18] : memref<2x8x32xf32, #tpu.memory_space<vmem>>, vector<2x8x32xf32>
    %37 = vector.shape_cast %36 : vector<2x8x32xf32> to vector<16x32xf32>
    %38 = arith.addf %35, %37 : vector<16x32xf32>
    %39 = vector.extract_strided_slice %31 {offsets = [0, 64], sizes = [16, 32], strides = [1, 1]} : vector<16x96xf32> to vector<16x32xf32>
    %c0_19 = arith.constant 0 : index
    %c0_20 = arith.constant 0 : index
    %c0_21 = arith.constant 0 : index
    %40 = vector.load %arg4[%c0_19, %c0_20, %c0_21] : memref<2x8x32xf32, #tpu.memory_space<vmem>>, vector<2x8x32xf32>
    %41 = vector.shape_cast %40 : vector<2x8x32xf32> to vector<16x32xf32>
    %42 = arith.addf %39, %41 : vector<16x32xf32>
    %43 = vector.shape_cast %34 : vector<16x32xf32> to vector<2x8x32xf32>
    %44 = vector.extract_strided_slice %43 {offsets = [0, 0, 0], sizes = [2, 8, 8], strides = [1, 1, 1]} : vector<2x8x32xf32> to vector<2x8x8xf32>
    %45 = vector.extract_strided_slice %43 {offsets = [0, 0, 8], sizes = [2, 8, 8], strides = [1, 1, 1]} : vector<2x8x32xf32> to vector<2x8x8xf32>
    %46 = vector.extract_strided_slice %43 {offsets = [0, 0, 16], sizes = [2, 8, 8], strides = [1, 1, 1]} : vector<2x8x32xf32> to vector<2x8x8xf32>
    %47 = vector.extract_strided_slice %43 {offsets = [0, 0, 24], sizes = [2, 8, 8], strides = [1, 1, 1]} : vector<2x8x32xf32> to vector<2x8x8xf32>
    %48 = vector.shape_cast %44 : vector<2x8x8xf32> to vector<2x1x8x8xf32>
    %49 = vector.shape_cast %45 : vector<2x8x8xf32> to vector<2x1x8x8xf32>
    %50 = vector.shape_cast %46 : vector<2x8x8xf32> to vector<2x1x8x8xf32>
    %51 = vector.shape_cast %47 : vector<2x8x8xf32> to vector<2x1x8x8xf32>
    %52 = tpu.concatenate %48, %49, %50, %51 in 1 : vector<2x1x8x8xf32>, vector<2x1x8x8xf32>, vector<2x1x8x8xf32>, vector<2x1x8x8xf32> -> vector<2x4x8x8xf32>
    %53 = vector.shape_cast %52 : vector<2x4x8x8xf32> to vector<8x8x8xf32>
    %54 = vector.shape_cast %38 : vector<16x32xf32> to vector<2x8x32xf32>
    %55 = vector.extract_strided_slice %54 {offsets = [0, 0, 0], sizes = [2, 8, 8], strides = [1, 1, 1]} : vector<2x8x32xf32> to vector<2x8x8xf32>
    %56 = vector.extract_strided_slice %54 {offsets = [0, 0, 8], sizes = [2, 8, 8], strides = [1, 1, 1]} : vector<2x8x32xf32> to vector<2x8x8xf32>
    %57 = vector.extract_strided_slice %54 {offsets = [0, 0, 16], sizes = [2, 8, 8], strides = [1, 1, 1]} : vector<2x8x32xf32> to vector<2x8x8xf32>
    %58 = vector.extract_strided_slice %54 {offsets = [0, 0, 24], sizes = [2, 8, 8], strides = [1, 1, 1]} : vector<2x8x32xf32> to vector<2x8x8xf32>
    %59 = vector.shape_cast %55 : vector<2x8x8xf32> to vector<2x1x8x8xf32>
    %60 = vector.shape_cast %56 : vector<2x8x8xf32> to vector<2x1x8x8xf32>
    %61 = vector.shape_cast %57 : vector<2x8x8xf32> to vector<2x1x8x8xf32>
    %62 = vector.shape_cast %58 : vector<2x8x8xf32> to vector<2x1x8x8xf32>
    %63 = tpu.concatenate %59, %60, %61, %62 in 1 : vector<2x1x8x8xf32>, vector<2x1x8x8xf32>, vector<2x1x8x8xf32>, vector<2x1x8x8xf32> -> vector<2x4x8x8xf32>
    %64 = vector.shape_cast %63 : vector<2x4x8x8xf32> to vector<8x8x8xf32>
    %65 = arith.truncf %64 : vector<8x8x8xf32> to vector<8x8x8xbf16>
    %66 = vector.shape_cast %42 : vector<16x32xf32> to vector<2x8x32xf32>
    %67 = vector.extract_strided_slice %66 {offsets = [0, 0, 0], sizes = [2, 8, 8], strides = [1, 1, 1]} : vector<2x8x32xf32> to vector<2x8x8xf32>
    %68 = vector.extract_strided_slice %66 {offsets = [0, 0, 8], sizes = [2, 8, 8], strides = [1, 1, 1]} : vector<2x8x32xf32> to vector<2x8x8xf32>
    %69 = vector.extract_strided_slice %66 {offsets = [0, 0, 16], sizes = [2, 8, 8], strides = [1, 1, 1]} : vector<2x8x32xf32> to vector<2x8x8xf32>
    %70 = vector.extract_strided_slice %66 {offsets = [0, 0, 24], sizes = [2, 8, 8], strides = [1, 1, 1]} : vector<2x8x32xf32> to vector<2x8x8xf32>
    %71 = vector.shape_cast %67 : vector<2x8x8xf32> to vector<2x1x8x8xf32>
    %72 = vector.shape_cast %68 : vector<2x8x8xf32> to vector<2x1x8x8xf32>
    %73 = vector.shape_cast %69 : vector<2x8x8xf32> to vector<2x1x8x8xf32>
    %74 = vector.shape_cast %70 : vector<2x8x8xf32> to vector<2x1x8x8xf32>
    %75 = tpu.concatenate %71, %72, %73, %74 in 1 : vector<2x1x8x8xf32>, vector<2x1x8x8xf32>, vector<2x1x8x8xf32>, vector<2x1x8x8xf32> -> vector<2x4x8x8xf32>
    %76 = vector.shape_cast %75 : vector<2x4x8x8xf32> to vector<8x8x8xf32>
    %77 = arith.truncf %76 : vector<8x8x8xf32> to vector<8x8x8xbf16>
    %78 = arith.truncf %53 : vector<8x8x8xf32> to vector<8x8x8xbf16>
    "tpu.trace_start"() <{level = 10 : i32, message = "bqd,bkd->bqk"}> : () -> ()
    %cst_22 = arith.constant dense<0.000000e+00> : vector<8x8x8xf32>
    %79 = tpu.matmul %78, %65, %cst_22 {dimension_numbers = #tpu.dot_dimension_numbers<[2], [2], [1], [1], [0, 0, 0, 1, 1, 1], [0], [0]>} : vector<8x8x8xbf16>, vector<8x8x8xbf16>, vector<8x8x8xf32> -> vector<8x8x8xf32>
    "tpu.trace_stop"() : () -> ()
    %80 = vector.shape_cast %53 : vector<8x8x8xf32> to vector<8x8x8x1xf32>
    %c0_23 = arith.constant 0 : index
    %c0_24 = arith.constant 0 : index
    %c0_25 = arith.constant 0 : index
    %c0_26 = arith.constant 0 : index
    %81 = vector.load %arg5[%c0_23, %c0_24, %c0_25, %c0_26] : memref<8x8x8x8xbf16, #tpu.memory_space<vmem>>, vector<8x8x8x8xbf16>
    %82 = arith.extf %81 : vector<8x8x8x8xbf16> to vector<8x8x8x8xf32>
    %83 = vector.broadcast %80 : vector<8x8x8x1xf32> to vector<8x8x8x8xf32>
    %84 = arith.mulf %83, %82 : vector<8x8x8x8xf32>
    %cst_27 = arith.constant dense<0.000000e+00> : vector<8x8x8xf32>
    %85 = vector.multi_reduction <add>, %84, %cst_27 [2] : vector<8x8x8x8xf32> to vector<8x8x8xf32>
    %86 = arith.addf %79, %85 : vector<8x8x8xf32>
    %c0_28 = arith.constant 0 : index
    %c0_29 = arith.constant 0 : index
    %c0_30 = arith.constant 0 : index
    %87 = vector.load %arg2[%c0_28, %c0_29, %c0_30] : memref<2x8x8xf32, #tpu.memory_space<vmem>>, vector<2x8x8xf32>
    %88 = vector.shape_cast %87 : vector<2x8x8xf32> to vector<2x1x8x8xf32>
    %89 = vector.shape_cast %88 : vector<2x1x8x8xf32> to vector<2x1x8x8xf32>
    %90 = vector.broadcast %89 : vector<2x1x8x8xf32> to vector<2x4x8x8xf32>
    %91 = vector.shape_cast %90 : vector<2x4x8x8xf32> to vector<8x8x8xf32>
    %92 = arith.addf %86, %91 : vector<8x8x8xf32>
    %cst_31 = arith.constant dense<0xFF800000> : vector<8x8xf32>
    %93 = vector.multi_reduction <maximumf>, %92, %cst_31 [2] : vector<8x8x8xf32> to vector<8x8xf32>
    %94 = vector.shape_cast %93 : vector<8x8xf32> to vector<8x8x1xf32>
    %95 = vector.broadcast %94 : vector<8x8x1xf32> to vector<8x8x8xf32>
    %96 = arith.subf %92, %95 : vector<8x8x8xf32>
    %97 = math.exp %96 : vector<8x8x8xf32>
    %cst_32 = arith.constant dense<0.000000e+00> : vector<8x8xf32>
    %98 = vector.multi_reduction <add>, %97, %cst_32 [2] : vector<8x8x8xf32> to vector<8x8xf32>
    %99 = vector.shape_cast %98 : vector<8x8xf32> to vector<8x8x1xf32>
    %100 = tpu.reciprocal %99 {approx = true} : vector<8x8x1xf32> -> vector<8x8x1xf32>
    %101 = vector.broadcast %100 : vector<8x8x1xf32> to vector<8x8x8xf32>
    %102 = arith.mulf %97, %101 : vector<8x8x8xf32>
    %103 = arith.truncf %102 : vector<8x8x8xf32> to vector<8x8x8xbf16>
    "tpu.trace_start"() <{level = 10 : i32, message = "bqk,bkd->bqd"}> : () -> ()
    %cst_33 = arith.constant dense<0.000000e+00> : vector<8x8x8xf32>
    %104 = tpu.matmul %103, %77, %cst_33 {dimension_numbers = #tpu.dot_dimension_numbers<[2], [1], [1], [2], [0, 0, 0, 1, 1, 2], [0], [0]>} : vector<8x8x8xbf16>, vector<8x8x8xbf16>, vector<8x8x8xf32> -> vector<8x8x8xf32>
    "tpu.trace_stop"() : () -> ()
    %105 = vector.shape_cast %102 : vector<8x8x8xf32> to vector<8x8x1x8xf32>
    %c0_34 = arith.constant 0 : index
    %c0_35 = arith.constant 0 : index
    %c0_36 = arith.constant 0 : index
    %c0_37 = arith.constant 0 : index
    %106 = vector.load %arg6[%c0_34, %c0_35, %c0_36, %c0_37] : memref<8x8x8x8xbf16, #tpu.memory_space<vmem>>, vector<8x8x8x8xbf16>
    %107 = arith.extf %106 : vector<8x8x8x8xbf16> to vector<8x8x8x8xf32>
    %108 = vector.broadcast %105 : vector<8x8x1x8xf32> to vector<8x8x8x8xf32>
    %109 = arith.mulf %108, %107 : vector<8x8x8x8xf32>
    %cst_38 = arith.constant dense<0.000000e+00> : vector<8x8x8xf32>
    %110 = vector.multi_reduction <add>, %109, %cst_38 [3] : vector<8x8x8x8xf32> to vector<8x8x8xf32>
    %111 = arith.addf %104, %110 : vector<8x8x8xf32>
    %112 = vector.shape_cast %111 : vector<8x8x8xf32> to vector<2x4x8x8xf32>
    %113 = vector.extract_strided_slice %112 {offsets = [0, 0, 0, 0], sizes = [2, 1, 8, 8], strides = [1, 1, 1, 1]} : vector<2x4x8x8xf32> to vector<2x1x8x8xf32>
    %114 = vector.shape_cast %113 : vector<2x1x8x8xf32> to vector<2x8x8xf32>
    %115 = vector.extract_strided_slice %112 {offsets = [0, 1, 0, 0], sizes = [2, 1, 8, 8], strides = [1, 1, 1, 1]} : vector<2x4x8x8xf32> to vector<2x1x8x8xf32>
    %116 = vector.shape_cast %115 : vector<2x1x8x8xf32> to vector<2x8x8xf32>
    %117 = vector.extract_strided_slice %112 {offsets = [0, 2, 0, 0], sizes = [2, 1, 8, 8], strides = [1, 1, 1, 1]} : vector<2x4x8x8xf32> to vector<2x1x8x8xf32>
    %118 = vector.shape_cast %117 : vector<2x1x8x8xf32> to vector<2x8x8xf32>
    %119 = vector.extract_strided_slice %112 {offsets = [0, 3, 0, 0], sizes = [2, 1, 8, 8], strides = [1, 1, 1, 1]} : vector<2x4x8x8xf32> to vector<2x1x8x8xf32>
    %120 = vector.shape_cast %119 : vector<2x1x8x8xf32> to vector<2x8x8xf32>
    %121 = tpu.concatenate %114, %116, %118, %120 in 2 : vector<2x8x8xf32>, vector<2x8x8xf32>, vector<2x8x8xf32>, vector<2x8x8xf32> -> vector<2x8x32xf32>
    %122 = vector.shape_cast %121 : vector<2x8x32xf32> to vector<16x32xf32>
    %123 = arith.addf %1, %122 : vector<16x32xf32>
    %cst_39 = arith.constant dense<0.000000e+00> : vector<16xf32>
    %124 = vector.multi_reduction <add>, %123, %cst_39 [1] : vector<16x32xf32> to vector<16xf32>
    %125 = vector.shape_cast %124 : vector<16xf32> to vector<16x1xf32>
    %cst_40 = arith.constant 3.200000e+01 : f32
    %126 = vector.broadcast %cst_40 : f32 to vector<16x1xf32>
    %127 = arith.divf %125, %126 : vector<16x1xf32>
    %128 = vector.broadcast %127 : vector<16x1xf32> to vector<16x32xf32>
    %129 = arith.subf %123, %128 : vector<16x32xf32>
    %130 = arith.mulf %129, %129 : vector<16x32xf32>
    %cst_41 = arith.constant dense<0.000000e+00> : vector<16xf32>
    %131 = vector.multi_reduction <add>, %130, %cst_41 [1] : vector<16x32xf32> to vector<16xf32>
    %132 = vector.shape_cast %131 : vector<16xf32> to vector<16x1xf32>
    %cst_42 = arith.constant 3.200000e+01 : f32
    %133 = vector.broadcast %cst_42 : f32 to vector<16x1xf32>
    %134 = arith.divf %132, %133 : vector<16x1xf32>
    %135 = vector.broadcast %127 : vector<16x1xf32> to vector<16x32xf32>
    %136 = arith.subf %123, %135 : vector<16x32xf32>
    %cst_43 = arith.constant 9.99999974E-6 : f32
    %137 = vector.broadcast %cst_43 : f32 to vector<16x1xf32>
    %138 = arith.addf %134, %137 : vector<16x1xf32>
    %139 = math.rsqrt %138 : vector<16x1xf32>
    %140 = vector.broadcast %139 : vector<16x1xf32> to vector<16x32xf32>
    %141 = arith.mulf %136, %140 : vector<16x32xf32>
    %c0_44 = arith.constant 0 : index
    %c0_45 = arith.constant 0 : index
    %142 = vector.load %arg11[%c0_44, %c0_45] : memref<1x32xf32, #tpu.memory_space<vmem>>, vector<1x32xf32>
    %143 = vector.broadcast %142 : vector<1x32xf32> to vector<16x32xf32>
    %144 = arith.mulf %141, %143 : vector<16x32xf32>
    %c0_46 = arith.constant 0 : index
    %c0_47 = arith.constant 0 : index
    %145 = vector.load %arg12[%c0_46, %c0_47] : memref<1x32xf32, #tpu.memory_space<vmem>>, vector<1x32xf32>
    %146 = vector.broadcast %145 : vector<1x32xf32> to vector<16x32xf32>
    %147 = arith.addf %144, %146 : vector<16x32xf32>
    %148 = arith.truncf %147 : vector<16x32xf32> to vector<16x32xbf16>
    %c0_48 = arith.constant 0 : index
    %c0_49 = arith.constant 0 : index
    %149 = vector.load %arg13[%c0_48, %c0_49] : memref<32x32xbf16, #tpu.memory_space<vmem>>, vector<32x32xbf16>
    %cst_50 = arith.constant dense<0.000000e+00> : vector<16x32xf32>
    %150 = tpu.matmul %148, %149, %cst_50 {dimension_numbers = #tpu.dot_dimension_numbers<[1], [0], [0], [1], [0, 0, 1, 1], [], []>} : vector<16x32xbf16>, vector<32x32xbf16>, vector<16x32xf32> -> vector<16x32xf32>
    %c0_51 = arith.constant 0 : index
    %c0_52 = arith.constant 0 : index
    %151 = vector.load %arg14[%c0_51, %c0_52] : memref<1x32xf32, #tpu.memory_space<vmem>>, vector<1x32xf32>
    %152 = vector.broadcast %151 : vector<1x32xf32> to vector<16x32xf32>
    %153 = arith.addf %150, %152 : vector<16x32xf32>
    %cst_53 = arith.constant 0.000000e+00 : f32
    %154 = vector.broadcast %cst_53 : f32 to vector<16x32xf32>
    %155 = arith.maximumf %153, %154 : vector<16x32xf32>
    %156 = arith.truncf %155 : vector<16x32xf32> to vector<16x32xbf16>
    %c0_54 = arith.constant 0 : index
    %c0_55 = arith.constant 0 : index
    %157 = vector.load %arg15[%c0_54, %c0_55] : memref<32x32xbf16, #tpu.memory_space<vmem>>, vector<32x32xbf16>
    %cst_56 = arith.constant dense<0.000000e+00> : vector<16x32xf32>
    %158 = tpu.matmul %156, %157, %cst_56 {dimension_numbers = #tpu.dot_dimension_numbers<[1], [0], [0], [1], [0, 0, 1, 1], [], []>} : vector<16x32xbf16>, vector<32x32xbf16>, vector<16x32xf32> -> vector<16x32xf32>
    %c0_57 = arith.constant 0 : index
    %c0_58 = arith.constant 0 : index
    %159 = vector.load %arg16[%c0_57, %c0_58] : memref<1x32xf32, #tpu.memory_space<vmem>>, vector<1x32xf32>
    %160 = vector.broadcast %159 : vector<1x32xf32> to vector<16x32xf32>
    %161 = arith.addf %158, %160 : vector<16x32xf32>
    %162 = arith.addf %123, %161 : vector<16x32xf32>
    %163 = vector.shape_cast %162 : vector<16x32xf32> to vector<2x8x32xf32>
    %c0_59 = arith.constant 0 : index
    %c0_60 = arith.constant 0 : index
    %c0_61 = arith.constant 0 : index
    %164 = vector.load %arg17[%c0_59, %c0_60, %c0_61] : memref<2x8x32xf32, #tpu.memory_space<vmem>>, vector<2x8x32xf32>
    tpu.vector_store %arg17[%c0_59, %c0_60, %c0_61], %163 {strides = array<i32>} : memref<2x8x32xf32, #tpu.memory_space<vmem>>, vector<2x8x32xf32>,
    return
  }
  func.func @transform_0(%arg0: i32) -> (i32, i32, i32) {
    %c0_i32 = arith.constant 0 : i32
    %c0_i32_0 = arith.constant 0 : i32
    %c0_i32_1 = arith.constant 0 : i32
    %c0_i32_2 = arith.constant 0 : i32
    return %c0_i32, %c0_i32_0, %c0_i32_1 : i32, i32, i32
  }
  func.func @transform_1(%arg0: i32) -> (i32, i32, i32) {
    %c0_i32 = arith.constant 0 : i32
    %c0_i32_0 = arith.constant 0 : i32
    %c0_i32_1 = arith.constant 0 : i32
    %c0_i32_2 = arith.constant 0 : i32
    return %c0_i32, %c0_i32_0, %c0_i32_1 : i32, i32, i32
  }
  func.func @transform_2(%arg0: i32) -> (i32, i32, i32) {
    %c0_i32 = arith.constant 0 : i32
    %c0_i32_0 = arith.constant 0 : i32
    %c0_i32_1 = arith.constant 0 : i32
    %c0_i32_2 = arith.constant 0 : i32
    return %c0_i32, %c0_i32_0, %c0_i32_1 : i32, i32, i32
  }
  func.func @transform_3(%arg0: i32) -> (i32, i32, i32) {
    %c0_i32 = arith.constant 0 : i32
    %c0_i32_0 = arith.constant 0 : i32
    %c0_i32_1 = arith.constant 0 : i32
    %c0_i32_2 = arith.constant 0 : i32
    return %c0_i32, %c0_i32_0, %c0_i32_1 : i32, i32, i32
  }
  func.func @transform_4(%arg0: i32) -> (i32, i32, i32, i32) {
    %c0_i32 = arith.constant 0 : i32
    %c0_i32_0 = arith.constant 0 : i32
    %c0_i32_1 = arith.constant 0 : i32
    %c0_i32_2 = arith.constant 0 : i32
    %c0_i32_3 = arith.constant 0 : i32
    return %c0_i32, %c0_i32_0, %c0_i32_1, %c0_i32_2 : i32, i32, i32, i32
  }
  func.func @transform_5(%arg0: i32) -> (i32, i32, i32, i32) {
    %c0_i32 = arith.constant 0 : i32
    %c0_i32_0 = arith.constant 0 : i32
    %c0_i32_1 = arith.constant 0 : i32
    %c0_i32_2 = arith.constant 0 : i32
    %c0_i32_3 = arith.constant 0 : i32
    return %c0_i32, %c0_i32_0, %c0_i32_1, %c0_i32_2 : i32, i32, i32, i32
  }
  func.func @transform_6(%arg0: i32) -> (i32, i32) {
    %c0_i32 = arith.constant 0 : i32
    %c0_i32_0 = arith.constant 0 : i32
    %c0_i32_1 = arith.constant 0 : i32
    return %c0_i32, %c0_i32_0 : i32, i32
  }
  func.func @transform_7(%arg0: i32) -> (i32, i32) {
    %c0_i32 = arith.constant 0 : i32
    %c0_i32_0 = arith.constant 0 : i32
    %c0_i32_1 = arith.constant 0 : i32
    return %c0_i32, %c0_i32_0 : i32, i32
  }
  func.func @transform_8(%arg0: i32) -> (i32, i32) {
    %c0_i32 = arith.constant 0 : i32
    %c0_i32_0 = arith.constant 0 : i32
    %c0_i32_1 = arith.constant 0 : i32
    return %c0_i32, %c0_i32_0 : i32, i32
  }
  func.func @transform_9(%arg0: i32) -> (i32, i32) {
    %c0_i32 = arith.constant 0 : i32
    %c0_i32_0 = arith.constant 0 : i32
    %c0_i32_1 = arith.constant 0 : i32
    return %c0_i32, %c0_i32_0 : i32, i32
  }
  func.func @transform_10(%arg0: i32) -> (i32, i32) {
    %c0_i32 = arith.constant 0 : i32
    %c0_i32_0 = arith.constant 0 : i32
    %c0_i32_1 = arith.constant 0 : i32
    return %c0_i32, %c0_i32_0 : i32, i32
  }
  func.func @transform_11(%arg0: i32) -> (i32, i32) {
    %c0_i32 = arith.constant 0 : i32
    %c0_i32_0 = arith.constant 0 : i32
    %c0_i32_1 = arith.constant 0 : i32
    return %c0_i32, %c0_i32_0 : i32, i32
  }
  func.func @transform_12(%arg0: i32) -> (i32, i32) {
    %c0_i32 = arith.constant 0 : i32
    %c0_i32_0 = arith.constant 0 : i32
    %c0_i32_1 = arith.constant 0 : i32
    return %c0_i32, %c0_i32_0 : i32, i32
  }
  func.func @transform_13(%arg0: i32) -> (i32, i32) {
    %c0_i32 = arith.constant 0 : i32
    %c0_i32_0 = arith.constant 0 : i32
    %c0_i32_1 = arith.constant 0 : i32
    return %c0_i32, %c0_i32_0 : i32, i32
  }
  func.func @transform_14(%arg0: i32) -> (i32, i32) {
    %c0_i32 = arith.constant 0 : i32
    %c0_i32_0 = arith.constant 0 : i32
    %c0_i32_1 = arith.constant 0 : i32
    return %c0_i32, %c0_i32_0 : i32, i32
  }
  func.func @transform_15(%arg0: i32) -> (i32, i32) {
    %c0_i32 = arith.constant 0 : i32
    %c0_i32_0 = arith.constant 0 : i32
    %c0_i32_1 = arith.constant 0 : i32
    return %c0_i32, %c0_i32_0 : i32, i32
  }
  func.func @transform_16(%arg0: i32) -> (i32, i32, i32) {
    %c0_i32 = arith.constant 0 : i32
    %c0_i32_0 = arith.constant 0 : i32
    %c0_i32_1 = arith.constant 0 : i32
    %c0_i32_2 = arith.constant 0 : i32
    return %c0_i32, %c0_i32_0, %c0_i32_1 : i32, i32, i32
  }
}

</mosaic_0001>

<llo_original>
// kernel: tisas_transformer_block.1
$region0: #{tisas_transformer_block.1}
  #allocation0 [shape = 'u32[]', space=smem, size = 0x4, offset = 0x4, fixed_abs, tag = 'smem constant byte address 0x4 - core index']
  #allocation1 [shape = 'u32[144,128]{1,0:T(1,128)}', space=vmem, size = 0x12000, scoped, tag = 'internal scratch']
  %s0 = inlined_call_operand.vmem [shape: f32[2,8,32], index: 0, kind: input, shape index: {}]
  %s1 = inlined_call_operand.vmem [shape: f32[2,8,8], index: 1, kind: input, shape index: {}]
  %s2 = inlined_call_operand.vmem [shape: f32[2,8,32], index: 2, kind: input, shape index: {}]
  %s3 = inlined_call_operand.vmem [shape: f32[2,8,32], index: 3, kind: input, shape index: {}]
  %s4 = inlined_call_operand.vmem [shape: bf16[8,8,8,8], index: 4, kind: input, shape index: {}]
  %s5 = inlined_call_operand.vmem [shape: bf16[8,8,8,8], index: 5, kind: input, shape index: {}]
  %s6 = inlined_call_operand.vmem [shape: bf16[32,96], index: 6, kind: input, shape index: {}]
  %s7 = inlined_call_operand.vmem [shape: f32[1,96], index: 7, kind: input, shape index: {}]
  %s8 = inlined_call_operand.vmem [shape: f32[1,32], index: 8, kind: input, shape index: {}]
  %s9 = inlined_call_operand.vmem [shape: f32[1,32], index: 9, kind: input, shape index: {}]
  %s10 = inlined_call_operand.vmem [shape: f32[1,32], index: 10, kind: input, shape index: {}]
  %s11 = inlined_call_operand.vmem [shape: f32[1,32], index: 11, kind: input, shape index: {}]
  %s12 = inlined_call_operand.vmem [shape: bf16[32,32], index: 12, kind: input, shape index: {}]
  %s13 = inlined_call_operand.vmem [shape: f32[1,32], index: 13, kind: input, shape index: {}]
  %s14 = inlined_call_operand.vmem [shape: bf16[32,32], index: 14, kind: input, shape index: {}]
  %s15 = inlined_call_operand.vmem [shape: f32[1,32], index: 15, kind: input, shape index: {}]
  %s16 = inlined_call_operand.hbm [shape: f32[2,8,32], index: 16, kind: output, shape index: {}]
  %s17 = sld [smem:[#allocation0]]
  $region74: #{tisas_transformer_block.1} parent=0
    _
  %s19 = ssub.s32 1, %s17
  %s20 = scalar_select 0, %s19, %s17
  $region1: #{tisas_transformer_block.1} parent=0
    #allocation2 [shape = 'u8[8192]{0}', space=vmem, size = 0x2000, scoped, tag = 'output window, operand 0, single buffered']
    #allocation3 [shape = 's32[1]{0}', space=sflag, size = 0x4, scoped, tag = 'scoped memory for tisas_transformer_block.1']
    %21 = vsyncpa [#allocation3], 0
    // Predicated region
    $region2: #{tisas_transformer_block.1} parent=1 // pred_check
      _
    $region3: #{tisas_transformer_block.1} parent=1 // pred_check_branch
      %23 = sbr.rel (0) target = $region5
    $region4: #{tisas_transformer_block.1} parent=1 // pred_region
      _
    $region5: #{tisas_transformer_block.1} parent=1 // pred_fallthru
      _
    // Predicated region
    $region6: #{tisas_transformer_block.1} parent=1 // pred_check
      _
    $region7: #{tisas_transformer_block.1} parent=1 // pred_check_branch
      %25 = sbr.rel (0) target = $region9
    $region8: #{tisas_transformer_block.1} parent=1 // pred_region
      _
    $region9: #{tisas_transformer_block.1} parent=1 // pred_fallthru
      _
    // Predicated region
    $region10: #{tisas_transformer_block.1} parent=1 // pred_check
      _
    $region11: #{tisas_transformer_block.1} parent=1 // pred_check_branch
      %27 = sbr.rel (0) target = $region13
    $region12: #{tisas_transformer_block.1} parent=1 // pred_region
      _
    $region13: #{tisas_transformer_block.1} parent=1 // pred_fallthru
      _
    // Predicated region
    $region14: #{tisas_transformer_block.1} parent=1 // pred_check
      _
    $region15: #{tisas_transformer_block.1} parent=1 // pred_check_branch
      %29 = sbr.rel (0) target = $region17
    $region16: #{tisas_transformer_block.1} parent=1 // pred_region
      _
    $region17: #{tisas_transformer_block.1} parent=1 // pred_fallthru
      _
    // Predicated region
    $region18: #{tisas_transformer_block.1} parent=1 // pred_check
      _
    $region19: #{tisas_transformer_block.1} parent=1 // pred_check_branch
      %31 = sbr.rel (0) target = $region21
    $region20: #{tisas_transformer_block.1} parent=1 // pred_region
      _
    $region21: #{tisas_transformer_block.1} parent=1 // pred_fallthru
      _
    // Predicated region
    $region22: #{tisas_transformer_block.1} parent=1 // pred_check
      _
    $region23: #{tisas_transformer_block.1} parent=1 // pred_check_branch
      %33 = sbr.rel (0) target = $region25
    $region24: #{tisas_transformer_block.1} parent=1 // pred_region
      _
    $region25: #{tisas_transformer_block.1} parent=1 // pred_fallthru
      _
    // Predicated region
    $region26: #{tisas_transformer_block.1} parent=1 // pred_check
      _
    $region27: #{tisas_transformer_block.1} parent=1 // pred_check_branch
      %35 = sbr.rel (0) target = $region29
    $region28: #{tisas_transformer_block.1} parent=1 // pred_region
      _
    $region29: #{tisas_transformer_block.1} parent=1 // pred_fallthru
      _
    // Predicated region
    $region30: #{tisas_transformer_block.1} parent=1 // pred_check
      _
    $region31: #{tisas_transformer_block.1} parent=1 // pred_check_branch
      %37 = sbr.rel (0) target = $region33
    $region32: #{tisas_transformer_block.1} parent=1 // pred_region
      _
    $region33: #{tisas_transformer_block.1} parent=1 // pred_fallthru
      _
    // Predicated region
    $region34: #{tisas_transformer_block.1} parent=1 // pred_check
      _
    $region35: #{tisas_transformer_block.1} parent=1 // pred_check_branch
      %39 = sbr.rel (0) target = $region37
    $region36: #{tisas_transformer_block.1} parent=1 // pred_region
      _
    $region37: #{tisas_transformer_block.1} parent=1 // pred_fallthru
      _
    // Predicated region
    $region38: #{tisas_transformer_block.1} parent=1 // pred_check
      _
    $region39: #{tisas_transformer_block.1} parent=1 // pred_check_branch
      %41 = sbr.rel (0) target = $region41
    $region40: #{tisas_transformer_block.1} parent=1 // pred_region
      _
    $region41: #{tisas_transformer_block.1} parent=1 // pred_fallthru
      _
    // Predicated region
    $region42: #{tisas_transformer_block.1} parent=1 // pred_check
      _
    $region43: #{tisas_transformer_block.1} parent=1 // pred_check_branch
      %43 = sbr.rel (0) target = $region45
    $region44: #{tisas_transformer_block.1} parent=1 // pred_region
      _
    $region45: #{tisas_transformer_block.1} parent=1 // pred_fallthru
      _
    // Predicated region
    $region46: #{tisas_transformer_block.1} parent=1 // pred_check
      _
    $region47: #{tisas_transformer_block.1} parent=1 // pred_check_branch
      %45 = sbr.rel (0) target = $region49
    $region48: #{tisas_transformer_block.1} parent=1 // pred_region
      _
    $region49: #{tisas_transformer_block.1} parent=1 // pred_fallthru
      _
    // Predicated region
    $region50: #{tisas_transformer_block.1} parent=1 // pred_check
      _
    $region51: #{tisas_transformer_block.1} parent=1 // pred_check_branch
      %47 = sbr.rel (0) target = $region53
    $region52: #{tisas_transformer_block.1} parent=1 // pred_region
      _
    $region53: #{tisas_transformer_block.1} parent=1 // pred_fallthru
      _
    // Predicated region
    $region54: #{tisas_transformer_block.1} parent=1 // pred_check
      _
    $region55: #{tisas_transformer_block.1} parent=1 // pred_check_branch
      %49 = sbr.rel (0) target = $region57
    $region56: #{tisas_transformer_block.1} parent=1 // pred_region
      _
    $region57: #{tisas_transformer_block.1} parent=1 // pred_fallthru
      _
    // Predicated region
    $region58: #{tisas_transformer_block.1} parent=1 // pred_check
      _
    $region59: #{tisas_transformer_block.1} parent=1 // pred_check_branch
      %51 = sbr.rel (0) target = $region61
    $region60: #{tisas_transformer_block.1} parent=1 // pred_region
      _
    $region61: #{tisas_transformer_block.1} parent=1 // pred_fallthru
      _
    // Predicated region
    $region62: #{tisas_transformer_block.1} parent=1 // pred_check
      _
    $region63: #{tisas_transformer_block.1} parent=1 // pred_check_branch
      %53 = sbr.rel (0) target = $region65
    $region64: #{tisas_transformer_block.1} parent=1 // pred_region
      _
    $region65: #{tisas_transformer_block.1} parent=1 // pred_fallthru
      _
    %v55 = vld [vmem:[%s0] sm:$0xff]
    %v56 = vld [vmem:[%s0 + $0x8] sm:$0xff]
    %vm57 = vcmask 261120
    %v58 = vsel %vm57, %v55, 0.0
    %59 = vadd.xlane.f32.xlu0 %v58
    %v60 = vpop.xlane.xlu0 %59
    %v61 = vsel %vm57, %v56, 0.0
    %62 = vadd.xlane.f32.xlu0 %v61
    %v63 = vpop.xlane.xlu0 %62
    %v64 = vrcp.pop 32.0
    %v65 = vmul.f32 %v60, %v64
    %v66 = vmul.f32 %v63, %v64
    %v67 = vsub.f32 %v55, %v65
    %v68 = vsub.f32 %v56, %v66
    %v69 = vmul.f32 %v67, %v67
    %v70 = vmul.f32 %v68, %v68
    %v71 = vsel %vm57, %v69, 0.0
    %72 = vadd.xlane.f32.xlu0 %v71
    %v73 = vpop.xlane.xlu0 %72
    %v74 = vsel %vm57, %v70, 0.0
    %75 = vadd.xlane.f32.xlu0 %v74
    %v76 = vpop.xlane.xlu0 %75
    %v77 = vmul.f32 %v73, %v64
    %v78 = vmul.f32 %v76, %v64
    %v79 = vadd.f32 %v77, 1e-05
    %v80 = vadd.f32 %v78, 1e-05
    %v81 = vrsqrt.pop %v79
    %v82 = vrsqrt.pop %v80
    %v83 = vmul.f32 %v67, %v81
    %v84 = vmul.f32 %v68, %v82
    %v85 = vld [vmem:[%s8] sm:$0x1]
    %v87 = vlaneseq
    %v88 = vshrl.u32 %v87, 7
    %v89 = vsub.s32 0, %v88
    %v90 = vrot.slane %v85, %v89
    %v92 = vmul.f32 %v83, %v90
    %v93 = vmul.f32 %v84, %v90
    %v94 = vld [vmem:[%s9] sm:$0x1]
    %v96 = vlaneseq
    %v97 = vshrl.u32 %v96, 7
    %v98 = vsub.s32 0, %v97
    %v99 = vrot.slane %v94, %v98
    %v101 = vadd.f32 %v92, %v99
    %v102 = vadd.f32 %v93, %v99
    %v103 = vpack.c.bf16 %v102, %v101
    %v104 = vld [vmem:[%s6] sm:$0xf]
    %v105 = vld [vmem:[%s6 + $0x4] sm:$0xf]
    %v106 = vld [vmem:[%s6 + $0x8] sm:$0xf]
    %v107 = vld [vmem:[%s6 + $0xc] sm:$0xf]
    %v108 = vld [vmem:[%s7] sm:$0x1]
    %v110 = vlaneseq
    %v111 = vshrl.u32 %v110, 7
    %v112 = vsub.s32 0, %v111
    %v113 = vrot.slane %v108, %v112
    %v119 = vunpack.c.l.b16 %v104
    %v120 = vunpack.c.l.b16 %v105
    %v121 = vunpack.c.l.b16 %v106
    %v122 = vunpack.c.l.b16 %v107
    %v123 = vpack.c.b16 %v120, %v119
    %v124 = vpack.c.b16 %v122, %v121
    %v128 = vsel %vm57, %v103, 0
    %130 = vmatprep.subr.bf16.mxu0 0
    %131 = vmatpush1.bf16.msra.mxu0 %v123
    %132 = vmatprep.subr.bf16.mxu0 0
    %133 = vmatpush1.bf16.msra.mxu0 %v124
    %134 = vmatprep.subr.bf16.mxu0 0
    %135 = vmatpush1.bf16.msra.mxu0 0
    %136 = vmatprep.subr.bf16.mxu0 0
    %137 = vmatpush1.bf16.msra.mxu0 0
    %138 = vmatprep.subr.bf16.mxu0 0
    %139 = vmatpush1.bf16.msra.mxu0 0
    %140 = vmatprep.subr.bf16.mxu0 0
    %141 = vmatpush1.bf16.msra.mxu0 0
    %142 = vmatprep.subr.bf16.mxu0 0
    %143 = vmatpush1.bf16.msra.mxu0 0
    %144 = vmatprep.subr.bf16.mxu0 0
    %145 = vmatpush1.bf16.msra.mxu0 0
    %146 = vmatprep.subr.bf16.mxu0 0
    %147 = vmatpush1.bf16.msra.mxu0 0
    %148 = vmatprep.subr.bf16.mxu0 0
    %149 = vmatpush1.bf16.msra.mxu0 0
    %150 = vmatprep.subr.bf16.mxu0 0
    %151 = vmatpush1.bf16.msra.mxu0 0
    %152 = vmatprep.subr.bf16.mxu0 0
    %153 = vmatpush1.bf16.msra.mxu0 0
    %154 = vmatprep.subr.bf16.mxu0 0
    %155 = vmatpush1.bf16.msra.mxu0 0
    %156 = vmatprep.subr.bf16.mxu0 0
    %157 = vmatpush1.bf16.msra.mxu0 0
    %158 = vmatprep.subr.bf16.mxu0 0
    %159 = vmatpush1.bf16.msra.mxu0 0
    %160 = vmatprep.subr.bf16.mxu0 0
    %161 = vmatpush1.bf16.msra.mxu0 0
    %162 = vmatprep.mubr.bf16.mxu0 0
    %163 = vmatmul.mubr.bf16.gmra.mrb[0].mxu0 %v128
    %v164 = vpop.f32.mrb[0].mxu0
    %v165 = vadd.f32 %v113, %v164
    %v166 = vpop.f32.mrb[0].mxu0
    %v167 = vpop.f32.mrb[0].mxu0
    %v168 = vadd.f32 %v113, %v167
    %v169 = vpop.f32.mrb[0].mxu0
    %170 = vdwg.mxu0
    %v171 = vmul.f32 %v165, 0.35355338
    %v172 = vmul.f32 %v168, 0.35355338
    %v173 = vld [vmem:[%s2] sm:$0xff]
    %v174 = vld [vmem:[%s2 + $0x8] sm:$0xff]
    %177 = vrot.lane.b32.xlu0 %v173, 32
    %v178 = vpop.permute.xlu0 %177
    %179 = vrot.lane.b32.xlu0 %v174, 32
    %v180 = vpop.permute.xlu0 %179
    %v183 = vadd.f32 %v165, %v178
    %v184 = vadd.f32 %v168, %v180
    %v185 = vld [vmem:[%s3] sm:$0xff]
    %v186 = vld [vmem:[%s3 + $0x8] sm:$0xff]
    %189 = vrot.lane.b32.xlu0 %v185, 64
    %v190 = vpop.permute.xlu0 %189
    %191 = vrot.lane.b32.xlu0 %v186, 64
    %v192 = vpop.permute.xlu0 %191
    %v195 = vadd.f32 %v165, %v190
    %v196 = vadd.f32 %v168, %v192
    %199 = vrot.lane.b32.xlu0 %v171, 120
    %v200 = vpop.permute.xlu0 %199
    %201 = vrot.lane.b32.xlu0 %v172, 120
    %v202 = vpop.permute.xlu0 %201
    %205 = vrot.lane.b32.xlu0 %v171, 112
    %v206 = vpop.permute.xlu0 %205
    %207 = vrot.lane.b32.xlu0 %v172, 112
    %v208 = vpop.permute.xlu0 %207
    %211 = vrot.lane.b32.xlu0 %v171, 104
    %v212 = vpop.permute.xlu0 %211
    %213 = vrot.lane.b32.xlu0 %v172, 104
    %v214 = vpop.permute.xlu0 %213
    %219 = vrot.lane.b32.xlu0 %v183, 120
    %v220 = vpop.permute.xlu0 %219
    %221 = vrot.lane.b32.xlu0 %v184, 120
    %v222 = vpop.permute.xlu0 %221
    %225 = vrot.lane.b32.xlu0 %v183, 112
    %v226 = vpop.permute.xlu0 %225
    %227 = vrot.lane.b32.xlu0 %v184, 112
    %v228 = vpop.permute.xlu0 %227
    %231 = vrot.lane.b32.xlu0 %v183, 104
    %v232 = vpop.permute.xlu0 %231
    %233 = vrot.lane.b32.xlu0 %v184, 104
    %v234 = vpop.permute.xlu0 %233
    %v237 = vpack.c.bf16 %v183, %v183
    %v238 = vpack.c.bf16 %v220, %v220
    %v239 = vpack.c.bf16 %v226, %v226
    %v240 = vpack.c.bf16 %v232, %v232
    %v241 = vpack.c.bf16 %v184, %v184
    %v242 = vpack.c.bf16 %v222, %v222
    %v243 = vpack.c.bf16 %v228, %v228
    %v244 = vpack.c.bf16 %v234, %v234
    %247 = vrot.lane.b32.xlu0 %v195, 120
    %v248 = vpop.permute.xlu0 %247
    %249 = vrot.lane.b32.xlu0 %v196, 120
    %v250 = vpop.permute.xlu0 %249
    %253 = vrot.lane.b32.xlu0 %v195, 112
    %v254 = vpop.permute.xlu0 %253
    %255 = vrot.lane.b32.xlu0 %v196, 112
    %v256 = vpop.permute.xlu0 %255
    %259 = vrot.lane.b32.xlu0 %v195, 104
    %v260 = vpop.permute.xlu0 %259
    %261 = vrot.lane.b32.xlu0 %v196, 104
    %v262 = vpop.permute.xlu0 %261
    %v265 = vpack.c.bf16 %v195, %v195
    %v266 = vpack.c.bf16 %v248, %v248
    %v267 = vpack.c.bf16 %v254, %v254
    %v268 = vpack.c.bf16 %v260, %v260
    %v269 = vpack.c.bf16 %v196, %v196
    %v270 = vpack.c.bf16 %v250, %v250
    %v271 = vpack.c.bf16 %v256, %v256
    %v272 = vpack.c.bf16 %v262, %v262
    %v273 = vpack.c.bf16 %v171, %v171
    %v274 = vpack.c.bf16 %v200, %v200
    %v275 = vpack.c.bf16 %v206, %v206
    %v276 = vpack.c.bf16 %v212, %v212
    %v277 = vpack.c.bf16 %v172, %v172
    %v278 = vpack.c.bf16 %v202, %v202
    %v279 = vpack.c.bf16 %v208, %v208
    %v280 = vpack.c.bf16 %v214, %v214
    %v281 = vlaneseq
    %v282 = vshrl.u32 %v281, 7
    %v283 = vsub.s32 0, %v282
    %v284 = vrot.slane %v171, %v283
    %286 = vbcast.lane.b32.xlu0 %v284, 256
    %v287 = vpop.permute.xlu0 %286
    %v288 = vlaneseq
    %v289 = vshrl.u32 %v288, 7
    %v290 = vsub.s32 1, %v289
    %v291 = vrot.slane %v171, %v290
    %293 = vbcast.lane.b32.xlu0 %v291, 256
    %v294 = vpop.permute.xlu0 %293
    %v295 = vlaneseq
    %v296 = vshrl.u32 %v295, 7
    %v297 = vsub.s32 2, %v296
    %v298 = vrot.slane %v171, %v297
    %300 = vbcast.lane.b32.xlu0 %v298, 256
    %v301 = vpop.permute.xlu0 %300
    %v302 = vlaneseq
    %v303 = vshrl.u32 %v302, 7
    %v304 = vsub.s32 3, %v303
    %v305 = vrot.slane %v171, %v304
    %307 = vbcast.lane.b32.xlu0 %v305, 256
    %v308 = vpop.permute.xlu0 %307
    %v309 = vlaneseq
    %v310 = vshrl.u32 %v309, 7
    %v311 = vsub.s32 4, %v310
    %v312 = vrot.slane %v171, %v311
    %314 = vbcast.lane.b32.xlu0 %v312, 256
    %v315 = vpop.permute.xlu0 %314
    %v316 = vlaneseq
    %v317 = vshrl.u32 %v316, 7
    %v318 = vsub.s32 5, %v317
    %v319 = vrot.slane %v171, %v318
    %321 = vbcast.lane.b32.xlu0 %v319, 256
    %v322 = vpop.permute.xlu0 %321
    %v323 = vlaneseq
    %v324 = vshrl.u32 %v323, 7
    %v325 = vsub.s32 6, %v324
    %v326 = vrot.slane %v171, %v325
    %328 = vbcast.lane.b32.xlu0 %v326, 256
    %v329 = vpop.permute.xlu0 %328
    %v330 = vlaneseq
    %v331 = vshrl.u32 %v330, 7
    %v332 = vsub.s32 7, %v331
    %v333 = vrot.slane %v171, %v332
    %335 = vbcast.lane.b32.xlu0 %v333, 256
    %v336 = vpop.permute.xlu0 %335
    %v337 = vlaneseq
    %v338 = vshrl.u32 %v337, 7
    %v339 = vsub.s32 0, %v338
    %v340 = vrot.slane %v200, %v339
    %342 = vbcast.lane.b32.xlu0 %v340, 256
    %v343 = vpop.permute.xlu0 %342
    %v344 = vlaneseq
    %v345 = vshrl.u32 %v344, 7
    %v346 = vsub.s32 1, %v345
    %v347 = vrot.slane %v200, %v346
    %349 = vbcast.lane.b32.xlu0 %v347, 256
    %v350 = vpop.permute.xlu0 %349
    %v351 = vlaneseq
    %v352 = vshrl.u32 %v351, 7
    %v353 = vsub.s32 2, %v352
    %v354 = vrot.slane %v200, %v353
    %356 = vbcast.lane.b32.xlu0 %v354, 256
    %v357 = vpop.permute.xlu0 %356
    %v358 = vlaneseq
    %v359 = vshrl.u32 %v358, 7
    %v360 = vsub.s32 3, %v359
    %v361 = vrot.slane %v200, %v360
    %363 = vbcast.lane.b32.xlu0 %v361, 256
    %v364 = vpop.permute.xlu0 %363
    %v365 = vlaneseq
    %v366 = vshrl.u32 %v365, 7
    %v367 = vsub.s32 4, %v366
    %v368 = vrot.slane %v200, %v367
    %370 = vbcast.lane.b32.xlu0 %v368, 256
    %v371 = vpop.permute.xlu0 %370
    %v372 = vlaneseq
    %v373 = vshrl.u32 %v372, 7
    %v374 = vsub.s32 5, %v373
    %v375 = vrot.slane %v200, %v374
    %377 = vbcast.lane.b32.xlu0 %v375, 256
    %v378 = vpop.permute.xlu0 %377
    %v379 = vlaneseq
    %v380 = vshrl.u32 %v379, 7
    %v381 = vsub.s32 6, %v380
    %v382 = vrot.slane %v200, %v381
    %384 = vbcast.lane.b32.xlu0 %v382, 256
    %v385 = vpop.permute.xlu0 %384
    %v386 = vlaneseq
    %v387 = vshrl.u32 %v386, 7
    %v388 = vsub.s32 7, %v387
    %v389 = vrot.slane %v200, %v388
    %391 = vbcast.lane.b32.xlu0 %v389, 256
    %v392 = vpop.permute.xlu0 %391
    %v393 = vlaneseq
    %v394 = vshrl.u32 %v393, 7
    %v395 = vsub.s32 0, %v394
    %v396 = vrot.slane %v206, %v395
    %398 = vbcast.lane.b32.xlu0 %v396, 256
    %v399 = vpop.permute.xlu0 %398
    %v400 = vlaneseq
    %v401 = vshrl.u32 %v400, 7
    %v402 = vsub.s32 1, %v401
    %v403 = vrot.slane %v206, %v402
    %405 = vbcast.lane.b32.xlu0 %v403, 256
    %v406 = vpop.permute.xlu0 %405
    %v407 = vlaneseq
    %v408 = vshrl.u32 %v407, 7
    %v409 = vsub.s32 2, %v408
    %v410 = vrot.slane %v206, %v409
    %412 = vbcast.lane.b32.xlu0 %v410, 256
    %v413 = vpop.permute.xlu0 %412
    %v414 = vlaneseq
    %v415 = vshrl.u32 %v414, 7
    %v416 = vsub.s32 3, %v415
    %v417 = vrot.slane %v206, %v416
    %419 = vbcast.lane.b32.xlu0 %v417, 256
    %v420 = vpop.permute.xlu0 %419
    %v421 = vlaneseq
    %v422 = vshrl.u32 %v421, 7
    %v423 = vsub.s32 4, %v422
    %v424 = vrot.slane %v206, %v423
    %426 = vbcast.lane.b32.xlu0 %v424, 256
    %v427 = vpop.permute.xlu0 %426
    %v428 = vlaneseq
    %v429 = vshrl.u32 %v428, 7
    %v430 = vsub.s32 5, %v429
    %v431 = vrot.slane %v206, %v430
    %433 = vbcast.lane.b32.xlu0 %v431, 256
    %v434 = vpop.permute.xlu0 %433
    %v435 = vlaneseq
    %v436 = vshrl.u32 %v435, 7
    %v437 = vsub.s32 6, %v436
    %v438 = vrot.slane %v206, %v437
    %440 = vbcast.lane.b32.xlu0 %v438, 256
    %v441 = vpop.permute.xlu0 %440
    %v442 = vlaneseq
    %v443 = vshrl.u32 %v442, 7
    %v444 = vsub.s32 7, %v443
    %v445 = vrot.slane %v206, %v444
    %447 = vbcast.lane.b32.xlu0 %v445, 256
    %v448 = vpop.permute.xlu0 %447
    %v449 = vlaneseq
    %v450 = vshrl.u32 %v449, 7
    %v451 = vsub.s32 0, %v450
    %v452 = vrot.slane %v212, %v451
    %454 = vbcast.lane.b32.xlu0 %v452, 256
    %v455 = vpop.permute.xlu0 %454
    %v456 = vlaneseq
    %v457 = vshrl.u32 %v456, 7
    %v458 = vsub.s32 1, %v457
    %v459 = vrot.slane %v212, %v458
    %461 = vbcast.lane.b32.xlu0 %v459, 256
    %v462 = vpop.permute.xlu0 %461
    %v463 = vlaneseq
    %v464 = vshrl.u32 %v463, 7
    %v465 = vsub.s32 2, %v464
    %v466 = vrot.slane %v212, %v465
    %468 = vbcast.lane.b32.xlu0 %v466, 256
    %v469 = vpop.permute.xlu0 %468
    %v470 = vlaneseq
    %v471 = vshrl.u32 %v470, 7
    %v472 = vsub.s32 3, %v471
    %v473 = vrot.slane %v212, %v472
    %475 = vbcast.lane.b32.xlu0 %v473, 256
    %v476 = vpop.permute.xlu0 %475
    %v477 = vlaneseq
    %v478 = vshrl.u32 %v477, 7
    %v479 = vsub.s32 4, %v478
    %v480 = vrot.slane %v212, %v479
    %482 = vbcast.lane.b32.xlu0 %v480, 256
    %v483 = vpop.permute.xlu0 %482
    %v484 = vlaneseq
    %v485 = vshrl.u32 %v484, 7
    %v486 = vsub.s32 5, %v485
    %v487 = vrot.slane %v212, %v486
    %489 = vbcast.lane.b32.xlu0 %v487, 256
    %v490 = vpop.permute.xlu0 %489
    %v491 = vlaneseq
    %v492 = vshrl.u32 %v491, 7
    %v493 = vsub.s32 6, %v492
    %v494 = vrot.slane %v212, %v493
    %496 = vbcast.lane.b32.xlu0 %v494, 256
    %v497 = vpop.permute.xlu0 %496
    %v498 = vlaneseq
    %v499 = vshrl.u32 %v498, 7
    %v500 = vsub.s32 7, %v499
    %v501 = vrot.slane %v212, %v500
    %503 = vbcast.lane.b32.xlu0 %v501, 256
    %v504 = vpop.permute.xlu0 %503
    %v505 = vlaneseq
    %v506 = vshrl.u32 %v505, 7
    %v507 = vsub.s32 0, %v506
    %v508 = vrot.slane %v172, %v507
    %510 = vbcast.lane.b32.xlu0 %v508, 256
    %v511 = vpop.permute.xlu0 %510
    %v512 = vlaneseq
    %v513 = vshrl.u32 %v512, 7
    %v514 = vsub.s32 1, %v513
    %v515 = vrot.slane %v172, %v514
    %517 = vbcast.lane.b32.xlu0 %v515, 256
    %v518 = vpop.permute.xlu0 %517
    %v519 = vlaneseq
    %v520 = vshrl.u32 %v519, 7
    %v521 = vsub.s32 2, %v520
    %v522 = vrot.slane %v172, %v521
    %524 = vbcast.lane.b32.xlu0 %v522, 256
    %v525 = vpop.permute.xlu0 %524
    %v526 = vlaneseq
    %v527 = vshrl.u32 %v526, 7
    %v528 = vsub.s32 3, %v527
    %v529 = vrot.slane %v172, %v528
    %531 = vbcast.lane.b32.xlu0 %v529, 256
    %v532 = vpop.permute.xlu0 %531
    %v533 = vlaneseq
    %v534 = vshrl.u32 %v533, 7
    %v535 = vsub.s32 4, %v534
    %v536 = vrot.slane %v172, %v535
    %538 = vbcast.lane.b32.xlu0 %v536, 256
    %v539 = vpop.permute.xlu0 %538
    %v540 = vlaneseq
    %v541 = vshrl.u32 %v540, 7
    %v542 = vsub.s32 5, %v541
    %v543 = vrot.slane %v172, %v542
    %545 = vbcast.lane.b32.xlu0 %v543, 256
    %v546 = vpop.permute.xlu0 %545
    %v547 = vlaneseq
    %v548 = vshrl.u32 %v547, 7
    %v549 = vsub.s32 6, %v548
    %v550 = vrot.slane %v172, %v549
    %552 = vbcast.lane.b32.xlu0 %v550, 256
    %v553 = vpop.permute.xlu0 %552
    %v554 = vlaneseq
    %v555 = vshrl.u32 %v554, 7
    %v556 = vsub.s32 7, %v555
    %v557 = vrot.slane %v172, %v556
    %559 = vbcast.lane.b32.xlu0 %v557, 256
    %v560 = vpop.permute.xlu0 %559
    %v561 = vlaneseq
    %v562 = vshrl.u32 %v561, 7
    %v563 = vsub.s32 0, %v562
    %v564 = vrot.slane %v202, %v563
    %566 = vbcast.lane.b32.xlu0 %v564, 256
    %v567 = vpop.permute.xlu0 %566
    %v568 = vlaneseq
    %v569 = vshrl.u32 %v568, 7
    %v570 = vsub.s32 1, %v569
    %v571 = vrot.slane %v202, %v570
    %573 = vbcast.lane.b32.xlu0 %v571, 256
    %v574 = vpop.permute.xlu0 %573
    %v575 = vlaneseq
    %v576 = vshrl.u32 %v575, 7
    %v577 = vsub.s32 2, %v576
    %v578 = vrot.slane %v202, %v577
    %580 = vbcast.lane.b32.xlu0 %v578, 256
    %v581 = vpop.permute.xlu0 %580
    %v582 = vlaneseq
    %v583 = vshrl.u32 %v582, 7
    %v584 = vsub.s32 3, %v583
    %v585 = vrot.slane %v202, %v584
    %587 = vbcast.lane.b32.xlu0 %v585, 256
    %v588 = vpop.permute.xlu0 %587
    %v589 = vlaneseq
    %v590 = vshrl.u32 %v589, 7
    %v591 = vsub.s32 4, %v590
    %v592 = vrot.slane %v202, %v591
    %594 = vbcast.lane.b32.xlu0 %v592, 256
    %v595 = vpop.permute.xlu0 %594
    %v596 = vlaneseq
    %v597 = vshrl.u32 %v596, 7
    %v598 = vsub.s32 5, %v597
    %v599 = vrot.slane %v202, %v598
    %601 = vbcast.lane.b32.xlu0 %v599, 256
    %v602 = vpop.permute.xlu0 %601
    %v603 = vlaneseq
    %v604 = vshrl.u32 %v603, 7
    %v605 = vsub.s32 6, %v604
    %v606 = vrot.slane %v202, %v605
    %608 = vbcast.lane.b32.xlu0 %v606, 256
    %v609 = vpop.permute.xlu0 %608
    %v610 = vlaneseq
    %v611 = vshrl.u32 %v610, 7
    %v612 = vsub.s32 7, %v611
    %v613 = vrot.slane %v202, %v612
    %615 = vbcast.lane.b32.xlu0 %v613, 256
    %v616 = vpop.permute.xlu0 %615
    %v617 = vlaneseq
    %v618 = vshrl.u32 %v617, 7
    %v619 = vsub.s32 0, %v618
    %v620 = vrot.slane %v208, %v619
    %622 = vbcast.lane.b32.xlu0 %v620, 256
    %v623 = vpop.permute.xlu0 %622
    %v624 = vlaneseq
    %v625 = vshrl.u32 %v624, 7
    %v626 = vsub.s32 1, %v625
    %v627 = vrot.slane %v208, %v626
    %629 = vbcast.lane.b32.xlu0 %v627, 256
    %v630 = vpop.permute.xlu0 %629
    %v631 = vlaneseq
    %v632 = vshrl.u32 %v631, 7
    %v633 = vsub.s32 2, %v632
    %v634 = vrot.slane %v208, %v633
    %636 = vbcast.lane.b32.xlu0 %v634, 256
    %v637 = vpop.permute.xlu0 %636
    %v638 = vlaneseq
    %v639 = vshrl.u32 %v638, 7
    %v640 = vsub.s32 3, %v639
    %v641 = vrot.slane %v208, %v640
    %643 = vbcast.lane.b32.xlu0 %v641, 256
    %v644 = vpop.permute.xlu0 %643
    %v645 = vlaneseq
    %v646 = vshrl.u32 %v645, 7
    %v647 = vsub.s32 4, %v646
    %v648 = vrot.slane %v208, %v647
    %650 = vbcast.lane.b32.xlu0 %v648, 256
    %v651 = vpop.permute.xlu0 %650
    %v652 = vlaneseq
    %v653 = vshrl.u32 %v652, 7
    %v654 = vsub.s32 5, %v653
    %v655 = vrot.slane %v208, %v654
    %657 = vbcast.lane.b32.xlu0 %v655, 256
    %v658 = vpop.permute.xlu0 %657
    %v659 = vlaneseq
    %v660 = vshrl.u32 %v659, 7
    %v661 = vsub.s32 6, %v660
    %v662 = vrot.slane %v208, %v661
    %664 = vbcast.lane.b32.xlu0 %v662, 256
    %v665 = vpop.permute.xlu0 %664
    %v666 = vlaneseq
    %v667 = vshrl.u32 %v666, 7
    %v668 = vsub.s32 7, %v667
    %v669 = vrot.slane %v208, %v668
    %671 = vbcast.lane.b32.xlu0 %v669, 256
    %v672 = vpop.permute.xlu0 %671
    %v673 = vlaneseq
    %v674 = vshrl.u32 %v673, 7
    %v675 = vsub.s32 0, %v674
    %v676 = vrot.slane %v214, %v675
    %678 = vbcast.lane.b32.xlu0 %v676, 256
    %v679 = vpop.permute.xlu0 %678
    %v680 = vlaneseq
    %v681 = vshrl.u32 %v680, 7
    %v682 = vsub.s32 1, %v681
    %v683 = vrot.slane %v214, %v682
    %685 = vbcast.lane.b32.xlu0 %v683, 256
    %v686 = vpop.permute.xlu0 %685
    %v687 = vlaneseq
    %v688 = vshrl.u32 %v687, 7
    %v689 = vsub.s32 2, %v688
    %v690 = vrot.slane %v214, %v689
    %692 = vbcast.lane.b32.xlu0 %v690, 256
    %v693 = vpop.permute.xlu0 %692
    %v694 = vlaneseq
    %v695 = vshrl.u32 %v694, 7
    %v696 = vsub.s32 3, %v695
    %v697 = vrot.slane %v214, %v696
    %699 = vbcast.lane.b32.xlu0 %v697, 256
    %v700 = vpop.permute.xlu0 %699
    %v701 = vlaneseq
    %v702 = vshrl.u32 %v701, 7
    %v703 = vsub.s32 4, %v702
    %v704 = vrot.slane %v214, %v703
    %706 = vbcast.lane.b32.xlu0 %v704, 256
    %v707 = vpop.permute.xlu0 %706
    %v708 = vlaneseq
    %v709 = vshrl.u32 %v708, 7
    %v710 = vsub.s32 5, %v709
    %v711 = vrot.slane %v214, %v710
    %713 = vbcast.lane.b32.xlu0 %v711, 256
    %v714 = vpop.permute.xlu0 %713
    %v715 = vlaneseq
    %v716 = vshrl.u32 %v715, 7
    %v717 = vsub.s32 6, %v716
    %v718 = vrot.slane %v214, %v717
    %720 = vbcast.lane.b32.xlu0 %v718, 256
    %v721 = vpop.permute.xlu0 %720
    %v722 = vlaneseq
    %v723 = vshrl.u32 %v722, 7
    %v724 = vsub.s32 7, %v723
    %v725 = vrot.slane %v214, %v724
    %727 = vbcast.lane.b32.xlu0 %v725, 256
    %v728 = vpop.permute.xlu0 %727
    %v729 = vld [vmem:[%s4] sm:$0xf]
    %v730 = vld [vmem:[%s4 + $0x4] sm:$0xf]
    %v731 = vld [vmem:[%s4 + $0x8] sm:$0xf]
    %v732 = vld [vmem:[%s4 + $0xc] sm:$0xf]
    %v733 = vld [vmem:[%s4 + $0x10] sm:$0xf]
    %v734 = vld [vmem:[%s4 + $0x14] sm:$0xf]
    %v735 = vld [vmem:[%s4 + $0x18] sm:$0xf]
    %v736 = vld [vmem:[%s4 + $0x1c] sm:$0xf]
    %v737 = vld [vmem:[%s4 + $0x20] sm:$0xf]
    %v738 = vld [vmem:[%s4 + $0x24] sm:$0xf]
    %v739 = vld [vmem:[%s4 + $0x28] sm:$0xf]
    %v740 = vld [vmem:[%s4 + $0x2c] sm:$0xf]
    %v741 = vld [vmem:[%s4 + $0x30] sm:$0xf]
    %v742 = vld [vmem:[%s4 + $0x34] sm:$0xf]
    %v743 = vld [vmem:[%s4 + $0x38] sm:$0xf]
    %v744 = vld [vmem:[%s4 + $0x3c] sm:$0xf]
    %v745 = vld [vmem:[%s4 + $0x40] sm:$0xf]
    %v746 = vld [vmem:[%s4 + $0x44] sm:$0xf]
    %v747 = vld [vmem:[%s4 + $0x48] sm:$0xf]
    %v748 = vld [vmem:[%s4 + $0x4c] sm:$0xf]
    %v749 = vld [vmem:[%s4 + $0x50] sm:$0xf]
    %v750 = vld [vmem:[%s4 + $0x54] sm:$0xf]
    %v751 = vld [vmem:[%s4 + $0x58] sm:$0xf]
    %v752 = vld [vmem:[%s4 + $0x5c] sm:$0xf]
    %v753 = vld [vmem:[%s4 + $0x60] sm:$0xf]
    %v754 = vld [vmem:[%s4 + $0x64] sm:$0xf]
    %v755 = vld [vmem:[%s4 + $0x68] sm:$0xf]
    %v756 = vld [vmem:[%s4 + $0x6c] sm:$0xf]
    %v757 = vld [vmem:[%s4 + $0x70] sm:$0xf]
    %v758 = vld [vmem:[%s4 + $0x74] sm:$0xf]
    %v759 = vld [vmem:[%s4 + $0x78] sm:$0xf]
    %v760 = vld [vmem:[%s4 + $0x7c] sm:$0xf]
    %v761 = vld [vmem:[%s4 + $0x80] sm:$0xf]
    %v762 = vld [vmem:[%s4 + $0x84] sm:$0xf]
    %v763 = vld [vmem:[%s4 + $0x88] sm:$0xf]
    %v764 = vld [vmem:[%s4 + $0x8c] sm:$0xf]
    %v765 = vld [vmem:[%s4 + $0x90] sm:$0xf]
    %v766 = vld [vmem:[%s4 + $0x94] sm:$0xf]
    %v767 = vld [vmem:[%s4 + $0x98] sm:$0xf]
    %v768 = vld [vmem:[%s4 + $0x9c] sm:$0xf]
    %v769 = vld [vmem:[%s4 + $0xa0] sm:$0xf]
    %v770 = vld [vmem:[%s4 + $0xa4] sm:$0xf]
    %v771 = vld [vmem:[%s4 + $0xa8] sm:$0xf]
    %v772 = vld [vmem:[%s4 + $0xac] sm:$0xf]
    %v773 = vld [vmem:[%s4 + $0xb0] sm:$0xf]
    %v774 = vld [vmem:[%s4 + $0xb4] sm:$0xf]
    %v775 = vld [vmem:[%s4 + $0xb8] sm:$0xf]
    %v776 = vld [vmem:[%s4 + $0xbc] sm:$0xf]
    %v777 = vld [vmem:[%s4 + $0xc0] sm:$0xf]
    %v778 = vld [vmem:[%s4 + $0xc4] sm:$0xf]
    %v779 = vld [vmem:[%s4 + $0xc8] sm:$0xf]
    %v780 = vld [vmem:[%s4 + $0xcc] sm:$0xf]
    %v781 = vld [vmem:[%s4 + $0xd0] sm:$0xf]
    %v782 = vld [vmem:[%s4 + $0xd4] sm:$0xf]
    %v783 = vld [vmem:[%s4 + $0xd8] sm:$0xf]
    %v784 = vld [vmem:[%s4 + $0xdc] sm:$0xf]
    %v785 = vld [vmem:[%s4 + $0xe0] sm:$0xf]
    %v786 = vld [vmem:[%s4 + $0xe4] sm:$0xf]
    %v787 = vld [vmem:[%s4 + $0xe8] sm:$0xf]
    %v788 = vld [vmem:[%s4 + $0xec] sm:$0xf]
    %v789 = vld [vmem:[%s4 + $0xf0] sm:$0xf]
    %v790 = vld [vmem:[%s4 + $0xf4] sm:$0xf]
    %v791 = vld [vmem:[%s4 + $0xf8] sm:$0xf]
    %v792 = vld [vmem:[%s4 + $0xfc] sm:$0xf]
    %v793 = vunpack.c.l.bf16 %v729
    %v794 = vunpack.c.l.bf16 %v730
    %v795 = vunpack.c.l.bf16 %v731
    %v796 = vunpack.c.l.bf16 %v732
    %v797 = vunpack.c.l.bf16 %v733
    %v798 = vunpack.c.l.bf16 %v734
    %v799 = vunpack.c.l.bf16 %v735
    %v800 = vunpack.c.l.bf16 %v736
    %v801 = vunpack.c.l.bf16 %v737
    %v802 = vunpack.c.l.bf16 %v738
    %v803 = vunpack.c.l.bf16 %v739
    %v804 = vunpack.c.l.bf16 %v740
    %v805 = vunpack.c.l.bf16 %v741
    %v806 = vunpack.c.l.bf16 %v742
    %v807 = vunpack.c.l.bf16 %v743
    %v808 = vunpack.c.l.bf16 %v744
    %v809 = vunpack.c.l.bf16 %v745
    %v810 = vunpack.c.l.bf16 %v746
    %v811 = vunpack.c.l.bf16 %v747
    %v812 = vunpack.c.l.bf16 %v748
    %v813 = vunpack.c.l.bf16 %v749
    %v814 = vunpack.c.l.bf16 %v750
    %v815 = vunpack.c.l.bf16 %v751
    %v816 = vunpack.c.l.bf16 %v752
    %v817 = vunpack.c.l.bf16 %v753
    %v818 = vunpack.c.l.bf16 %v754
    %v819 = vunpack.c.l.bf16 %v755
    %v820 = vunpack.c.l.bf16 %v756
    %v821 = vunpack.c.l.bf16 %v757
    %v822 = vunpack.c.l.bf16 %v758
    %v823 = vunpack.c.l.bf16 %v759
    %v824 = vunpack.c.l.bf16 %v760
    %v825 = vunpack.c.l.bf16 %v761
    %v826 = vunpack.c.l.bf16 %v762
    %v827 = vunpack.c.l.bf16 %v763
    %v828 = vunpack.c.l.bf16 %v764
    %v829 = vunpack.c.l.bf16 %v765
    %v830 = vunpack.c.l.bf16 %v766
    %v831 = vunpack.c.l.bf16 %v767
    %v832 = vunpack.c.l.bf16 %v768
    %v833 = vunpack.c.l.bf16 %v769
    %v834 = vunpack.c.l.bf16 %v770
    %v835 = vunpack.c.l.bf16 %v771
    %v836 = vunpack.c.l.bf16 %v772
    %v837 = vunpack.c.l.bf16 %v773
    %v838 = vunpack.c.l.bf16 %v774
    %v839 = vunpack.c.l.bf16 %v775
    %v840 = vunpack.c.l.bf16 %v776
    %v841 = vunpack.c.l.bf16 %v777
    %v842 = vunpack.c.l.bf16 %v778
    %v843 = vunpack.c.l.bf16 %v779
    %v844 = vunpack.c.l.bf16 %v780
    %v845 = vunpack.c.l.bf16 %v781
    %v846 = vunpack.c.l.bf16 %v782
    %v847 = vunpack.c.l.bf16 %v783
    %v848 = vunpack.c.l.bf16 %v784
    %v849 = vunpack.c.l.bf16 %v785
    %v850 = vunpack.c.l.bf16 %v786
    %v851 = vunpack.c.l.bf16 %v787
    %v852 = vunpack.c.l.bf16 %v788
    %v853 = vunpack.c.l.bf16 %v789
    %v854 = vunpack.c.l.bf16 %v790
    %v855 = vunpack.c.l.bf16 %v791
    %v856 = vunpack.c.l.bf16 %v792
    %v857 = vmul.f32 %v287, %v793
    %v858 = vmul.f32 %v294, %v794
    %v859 = vmul.f32 %v301, %v795
    %v860 = vmul.f32 %v308, %v796
    %v861 = vmul.f32 %v315, %v797
    %v862 = vmul.f32 %v322, %v798
    %v863 = vmul.f32 %v329, %v799
    %v864 = vmul.f32 %v336, %v800
    %v865 = vmul.f32 %v343, %v801
    %v866 = vmul.f32 %v350, %v802
    %v867 = vmul.f32 %v357, %v803
    %v868 = vmul.f32 %v364, %v804
    %v869 = vmul.f32 %v371, %v805
    %v870 = vmul.f32 %v378, %v806
    %v871 = vmul.f32 %v385, %v807
    %v872 = vmul.f32 %v392, %v808
    %v873 = vmul.f32 %v399, %v809
    %v874 = vmul.f32 %v406, %v810
    %v875 = vmul.f32 %v413, %v811
    %v876 = vmul.f32 %v420, %v812
    %v877 = vmul.f32 %v427, %v813
    %v878 = vmul.f32 %v434, %v814
    %v879 = vmul.f32 %v441, %v815
    %v880 = vmul.f32 %v448, %v816
    %v881 = vmul.f32 %v455, %v817
    %v882 = vmul.f32 %v462, %v818
    %v883 = vmul.f32 %v469, %v819
    %v884 = vmul.f32 %v476, %v820
    %v885 = vmul.f32 %v483, %v821
    %v886 = vmul.f32 %v490, %v822
    %v887 = vmul.f32 %v497, %v823
    %v888 = vmul.f32 %v504, %v824
    %v889 = vmul.f32 %v511, %v825
    %v890 = vmul.f32 %v518, %v826
    %v891 = vmul.f32 %v525, %v827
    %v892 = vmul.f32 %v532, %v828
    %v893 = vmul.f32 %v539, %v829
    %v894 = vmul.f32 %v546, %v830
    %v895 = vmul.f32 %v553, %v831
    %v896 = vmul.f32 %v560, %v832
    %v897 = vmul.f32 %v567, %v833
    %v898 = vmul.f32 %v574, %v834
    %v899 = vmul.f32 %v581, %v835
    %v900 = vmul.f32 %v588, %v836
    %v901 = vmul.f32 %v595, %v837
    %v902 = vmul.f32 %v602, %v838
    %v903 = vmul.f32 %v609, %v839
    %v904 = vmul.f32 %v616, %v840
    %v905 = vmul.f32 %v623, %v841
    %v906 = vmul.f32 %v630, %v842
    %v907 = vmul.f32 %v637, %v843
    %v908 = vmul.f32 %v644, %v844
    %v909 = vmul.f32 %v651, %v845
    %v910 = vmul.f32 %v658, %v846
    %v911 = vmul.f32 %v665, %v847
    %v912 = vmul.f32 %v672, %v848
    %v913 = vmul.f32 %v679, %v849
    %v914 = vmul.f32 %v686, %v850
    %v915 = vmul.f32 %v693, %v851
    %v916 = vmul.f32 %v700, %v852
    %v917 = vmul.f32 %v707, %v853
    %v918 = vmul.f32 %v714, %v854
    %v919 = vmul.f32 %v721, %v855
    %v920 = vmul.f32 %v728, %v856
    %vm921 = vcmask 64512
    %v922 = vsel %vm921, %v857, 0.0
    %v923 = vrot.slane %v922, 4
    %v924 = vadd.f32 %v922, %v923
    %v925 = vrot.slane %v924, 2
    %v926 = vadd.f32 %v924, %v925
    %v927 = vrot.slane %v926, 1
    %v928 = vadd.f32 %v926, %v927
    %v929 = vsel %vm921, %v858, 0.0
    %v930 = vrot.slane %v929, 4
    %v931 = vadd.f32 %v929, %v930
    %v932 = vrot.slane %v931, 2
    %v933 = vadd.f32 %v931, %v932
    %v934 = vrot.slane %v933, 1
    %v935 = vadd.f32 %v933, %v934
    %v936 = vsel %vm921, %v859, 0.0
    %v937 = vrot.slane %v936, 4
    %v938 = vadd.f32 %v936, %v937
    %v939 = vrot.slane %v938, 2
    %v940 = vadd.f32 %v938, %v939
    %v941 = vrot.slane %v940, 1
    %v942 = vadd.f32 %v940, %v941
    %v943 = vsel %vm921, %v860, 0.0
    %v944 = vrot.slane %v943, 4
    %v945 = vadd.f32 %v943, %v944
    %v946 = vrot.slane %v945, 2
    %v947 = vadd.f32 %v945, %v946
    %v948 = vrot.slane %v947, 1
    %v949 = vadd.f32 %v947, %v948
    %v950 = vsel %vm921, %v861, 0.0
    %v951 = vrot.slane %v950, 4
    %v952 = vadd.f32 %v950, %v951
    %v953 = vrot.slane %v952, 2
    %v954 = vadd.f32 %v952, %v953
    %v955 = vrot.slane %v954, 1
    %v956 = vadd.f32 %v954, %v955
    %v957 = vsel %vm921, %v862, 0.0
    %v958 = vrot.slane %v957, 4
    %v959 = vadd.f32 %v957, %v958
    %v960 = vrot.slane %v959, 2
    %v961 = vadd.f32 %v959, %v960
    %v962 = vrot.slane %v961, 1
    %v963 = vadd.f32 %v961, %v962
    %v964 = vsel %vm921, %v863, 0.0
    %v965 = vrot.slane %v964, 4
    %v966 = vadd.f32 %v964, %v965
    %v967 = vrot.slane %v966, 2
    %v968 = vadd.f32 %v966, %v967
    %v969 = vrot.slane %v968, 1
    %v970 = vadd.f32 %v968, %v969
    %v971 = vsel %vm921, %v864, 0.0
    %v972 = vrot.slane %v971, 4
    %v973 = vadd.f32 %v971, %v972
    %v974 = vrot.slane %v973, 2
    %v975 = vadd.f32 %v973, %v974
    %v976 = vrot.slane %v975, 1
    %v977 = vadd.f32 %v975, %v976
    %v978 = vsel %vm921, %v865, 0.0
    %v979 = vrot.slane %v978, 4
    %v980 = vadd.f32 %v978, %v979
    %v981 = vrot.slane %v980, 2
    %v982 = vadd.f32 %v980, %v981
    %v983 = vrot.slane %v982, 1
    %v984 = vadd.f32 %v982, %v983
    %v985 = vsel %vm921, %v866, 0.0
    %v986 = vrot.slane %v985, 4
    %v987 = vadd.f32 %v985, %v986
    %v988 = vrot.slane %v987, 2
    %v989 = vadd.f32 %v987, %v988
    %v990 = vrot.slane %v989, 1
    %v991 = vadd.f32 %v989, %v990
    %v992 = vsel %vm921, %v867, 0.0
    %v993 = vrot.slane %v992, 4
    %v994 = vadd.f32 %v992, %v993
    %v995 = vrot.slane %v994, 2
    %v996 = vadd.f32 %v994, %v995
    %v997 = vrot.slane %v996, 1
    %v998 = vadd.f32 %v996, %v997
    %v999 = vsel %vm921, %v868, 0.0
    %v1000 = vrot.slane %v999, 4
    %v1001 = vadd.f32 %v999, %v1000
    %v1002 = vrot.slane %v1001, 2
    %v1003 = vadd.f32 %v1001, %v1002
    %v1004 = vrot.slane %v1003, 1
    %v1005 = vadd.f32 %v1003, %v1004
    %v1006 = vsel %vm921, %v869, 0.0
    %v1007 = vrot.slane %v1006, 4
    %v1008 = vadd.f32 %v1006, %v1007
    %v1009 = vrot.slane %v1008, 2
    %v1010 = vadd.f32 %v1008, %v1009
    %v1011 = vrot.slane %v1010, 1
    %v1012 = vadd.f32 %v1010, %v1011
    %v1013 = vsel %vm921, %v870, 0.0
    %v1014 = vrot.slane %v1013, 4
    %v1015 = vadd.f32 %v1013, %v1014
    %v1016 = vrot.slane %v1015, 2
    %v1017 = vadd.f32 %v1015, %v1016
    %v1018 = vrot.slane %v1017, 1
    %v1019 = vadd.f32 %v1017, %v1018
    %v1020 = vsel %vm921, %v871, 0.0
    %v1021 = vrot.slane %v1020, 4
    %v1022 = vadd.f32 %v1020, %v1021
    %v1023 = vrot.slane %v1022, 2
    %v1024 = vadd.f32 %v1022, %v1023
    %v1025 = vrot.slane %v1024, 1
    %v1026 = vadd.f32 %v1024, %v1025
    %v1027 = vsel %vm921, %v872, 0.0
    %v1028 = vrot.slane %v1027, 4
    %v1029 = vadd.f32 %v1027, %v1028
    %v1030 = vrot.slane %v1029, 2
    %v1031 = vadd.f32 %v1029, %v1030
    %v1032 = vrot.slane %v1031, 1
    %v1033 = vadd.f32 %v1031, %v1032
    %v1034 = vsel %vm921, %v873, 0.0
    %v1035 = vrot.slane %v1034, 4
    %v1036 = vadd.f32 %v1034, %v1035
    %v1037 = vrot.slane %v1036, 2
    %v1038 = vadd.f32 %v1036, %v1037
    %v1039 = vrot.slane %v1038, 1
    %v1040 = vadd.f32 %v1038, %v1039
    %v1041 = vsel %vm921, %v874, 0.0
    %v1042 = vrot.slane %v1041, 4
    %v1043 = vadd.f32 %v1041, %v1042
    %v1044 = vrot.slane %v1043, 2
    %v1045 = vadd.f32 %v1043, %v1044
    %v1046 = vrot.slane %v1045, 1
    %v1047 = vadd.f32 %v1045, %v1046
    %v1048 = vsel %vm921, %v875, 0.0
    %v1049 = vrot.slane %v1048, 4
    %v1050 = vadd.f32 %v1048, %v1049
    %v1051 = vrot.slane %v1050, 2
    %v1052 = vadd.f32 %v1050, %v1051
    %v1053 = vrot.slane %v1052, 1
    %v1054 = vadd.f32 %v1052, %v1053
    %v1055 = vsel %vm921, %v876, 0.0
    %v1056 = vrot.slane %v1055, 4
    %v1057 = vadd.f32 %v1055, %v1056
    %v1058 = vrot.slane %v1057, 2
    %v1059 = vadd.f32 %v1057, %v1058
    %v1060 = vrot.slane %v1059, 1
    %v1061 = vadd.f32 %v1059, %v1060
    %v1062 = vsel %vm921, %v877, 0.0
    %v1063 = vrot.slane %v1062, 4
    %v1064 = vadd.f32 %v1062, %v1063
    %v1065 = vrot.slane %v1064, 2
    %v1066 = vadd.f32 %v1064, %v1065
    %v1067 = vrot.slane %v1066, 1
    %v1068 = vadd.f32 %v1066, %v1067
    %v1069 = vsel %vm921, %v878, 0.0
    %v1070 = vrot.slane %v1069, 4
    %v1071 = vadd.f32 %v1069, %v1070
    %v1072 = vrot.slane %v1071, 2
    %v1073 = vadd.f32 %v1071, %v1072
    %v1074 = vrot.slane %v1073, 1
    %v1075 = vadd.f32 %v1073, %v1074
    %v1076 = vsel %vm921, %v879, 0.0
    %v1077 = vrot.slane %v1076, 4
    %v1078 = vadd.f32 %v1076, %v1077
    %v1079 = vrot.slane %v1078, 2
    %v1080 = vadd.f32 %v1078, %v1079
    %v1081 = vrot.slane %v1080, 1
    %v1082 = vadd.f32 %v1080, %v1081
    %v1083 = vsel %vm921, %v880, 0.0
    %v1084 = vrot.slane %v1083, 4
    %v1085 = vadd.f32 %v1083, %v1084
    %v1086 = vrot.slane %v1085, 2
    %v1087 = vadd.f32 %v1085, %v1086
    %v1088 = vrot.slane %v1087, 1
    %v1089 = vadd.f32 %v1087, %v1088
    %v1090 = vsel %vm921, %v881, 0.0
    %v1091 = vrot.slane %v1090, 4
    %v1092 = vadd.f32 %v1090, %v1091
    %v1093 = vrot.slane %v1092, 2
    %v1094 = vadd.f32 %v1092, %v1093
    %v1095 = vrot.slane %v1094, 1
    %v1096 = vadd.f32 %v1094, %v1095
    %v1097 = vsel %vm921, %v882, 0.0
    %v1098 = vrot.slane %v1097, 4
    %v1099 = vadd.f32 %v1097, %v1098
    %v1100 = vrot.slane %v1099, 2
    %v1101 = vadd.f32 %v1099, %v1100
    %v1102 = vrot.slane %v1101, 1
    %v1103 = vadd.f32 %v1101, %v1102
    %v1104 = vsel %vm921, %v883, 0.0
    %v1105 = vrot.slane %v1104, 4
    %v1106 = vadd.f32 %v1104, %v1105
    %v1107 = vrot.slane %v1106, 2
    %v1108 = vadd.f32 %v1106, %v1107
    %v1109 = vrot.slane %v1108, 1
    %v1110 = vadd.f32 %v1108, %v1109
    %v1111 = vsel %vm921, %v884, 0.0
    %v1112 = vrot.slane %v1111, 4
    %v1113 = vadd.f32 %v1111, %v1112
    %v1114 = vrot.slane %v1113, 2
    %v1115 = vadd.f32 %v1113, %v1114
    %v1116 = vrot.slane %v1115, 1
    %v1117 = vadd.f32 %v1115, %v1116
    %v1118 = vsel %vm921, %v885, 0.0
    %v1119 = vrot.slane %v1118, 4
    %v1120 = vadd.f32 %v1118, %v1119
    %v1121 = vrot.slane %v1120, 2
    %v1122 = vadd.f32 %v1120, %v1121
    %v1123 = vrot.slane %v1122, 1
    %v1124 = vadd.f32 %v1122, %v1123
    %v1125 = vsel %vm921, %v886, 0.0
    %v1126 = vrot.slane %v1125, 4
    %v1127 = vadd.f32 %v1125, %v1126
    %v1128 = vrot.slane %v1127, 2
    %v1129 = vadd.f32 %v1127, %v1128
    %v1130 = vrot.slane %v1129, 1
    %v1131 = vadd.f32 %v1129, %v1130
    %v1132 = vsel %vm921, %v887, 0.0
    %v1133 = vrot.slane %v1132, 4
    %v1134 = vadd.f32 %v1132, %v1133
    %v1135 = vrot.slane %v1134, 2
    %v1136 = vadd.f32 %v1134, %v1135
    %v1137 = vrot.slane %v1136, 1
    %v1138 = vadd.f32 %v1136, %v1137
    %v1139 = vsel %vm921, %v888, 0.0
    %v1140 = vrot.slane %v1139, 4
    %v1141 = vadd.f32 %v1139, %v1140
    %v1142 = vrot.slane %v1141, 2
    %v1143 = vadd.f32 %v1141, %v1142
    %v1144 = vrot.slane %v1143, 1
    %v1145 = vadd.f32 %v1143, %v1144
    %v1146 = vsel %vm921, %v889, 0.0
    %v1147 = vrot.slane %v1146, 4
    %v1148 = vadd.f32 %v1146, %v1147
    %v1149 = vrot.slane %v1148, 2
    %v1150 = vadd.f32 %v1148, %v1149
    %v1151 = vrot.slane %v1150, 1
    %v1152 = vadd.f32 %v1150, %v1151
    %v1153 = vsel %vm921, %v890, 0.0
    %v1154 = vrot.slane %v1153, 4
    %v1155 = vadd.f32 %v1153, %v1154
    %v1156 = vrot.slane %v1155, 2
    %v1157 = vadd.f32 %v1155, %v1156
    %v1158 = vrot.slane %v1157, 1
    %v1159 = vadd.f32 %v1157, %v1158
    %v1160 = vsel %vm921, %v891, 0.0
    %v1161 = vrot.slane %v1160, 4
    %v1162 = vadd.f32 %v1160, %v1161
    %v1163 = vrot.slane %v1162, 2
    %v1164 = vadd.f32 %v1162, %v1163
    %v1165 = vrot.slane %v1164, 1
    %v1166 = vadd.f32 %v1164, %v1165
    %v1167 = vsel %vm921, %v892, 0.0
    %v1168 = vrot.slane %v1167, 4
    %v1169 = vadd.f32 %v1167, %v1168
    %v1170 = vrot.slane %v1169, 2
    %v1171 = vadd.f32 %v1169, %v1170
    %v1172 = vrot.slane %v1171, 1
    %v1173 = vadd.f32 %v1171, %v1172
    %v1174 = vsel %vm921, %v893, 0.0
    %v1175 = vrot.slane %v1174, 4
    %v1176 = vadd.f32 %v1174, %v1175
    %v1177 = vrot.slane %v1176, 2
    %v1178 = vadd.f32 %v1176, %v1177
    %v1179 = vrot.slane %v1178, 1
    %v1180 = vadd.f32 %v1178, %v1179
    %v1181 = vsel %vm921, %v894, 0.0
    %v1182 = vrot.slane %v1181, 4
    %v1183 = vadd.f32 %v1181, %v1182
    %v1184 = vrot.slane %v1183, 2
    %v1185 = vadd.f32 %v1183, %v1184
    %v1186 = vrot.slane %v1185, 1
    %v1187 = vadd.f32 %v1185, %v1186
    %v1188 = vsel %vm921, %v895, 0.0
    %v1189 = vrot.slane %v1188, 4
    %v1190 = vadd.f32 %v1188, %v1189
    %v1191 = vrot.slane %v1190, 2
    %v1192 = vadd.f32 %v1190, %v1191
    %v1193 = vrot.slane %v1192, 1
    %v1194 = vadd.f32 %v1192, %v1193
    %v1195 = vsel %vm921, %v896, 0.0
    %v1196 = vrot.slane %v1195, 4
    %v1197 = vadd.f32 %v1195, %v1196
    %v1198 = vrot.slane %v1197, 2
    %v1199 = vadd.f32 %v1197, %v1198
    %v1200 = vrot.slane %v1199, 1
    %v1201 = vadd.f32 %v1199, %v1200
    %v1202 = vsel %vm921, %v897, 0.0
    %v1203 = vrot.slane %v1202, 4
    %v1204 = vadd.f32 %v1202, %v1203
    %v1205 = vrot.slane %v1204, 2
    %v1206 = vadd.f32 %v1204, %v1205
    %v1207 = vrot.slane %v1206, 1
    %v1208 = vadd.f32 %v1206, %v1207
    %v1209 = vsel %vm921, %v898, 0.0
    %v1210 = vrot.slane %v1209, 4
    %v1211 = vadd.f32 %v1209, %v1210
    %v1212 = vrot.slane %v1211, 2
    %v1213 = vadd.f32 %v1211, %v1212
    %v1214 = vrot.slane %v1213, 1
    %v1215 = vadd.f32 %v1213, %v1214
    %v1216 = vsel %vm921, %v899, 0.0
    %v1217 = vrot.slane %v1216, 4
    %v1218 = vadd.f32 %v1216, %v1217
    %v1219 = vrot.slane %v1218, 2
    %v1220 = vadd.f32 %v1218, %v1219
    %v1221 = vrot.slane %v1220, 1
    %v1222 = vadd.f32 %v1220, %v1221
    %v1223 = vsel %vm921, %v900, 0.0
    %v1224 = vrot.slane %v1223, 4
    %v1225 = vadd.f32 %v1223, %v1224
    %v1226 = vrot.slane %v1225, 2
    %v1227 = vadd.f32 %v1225, %v1226
    %v1228 = vrot.slane %v1227, 1
    %v1229 = vadd.f32 %v1227, %v1228
    %v1230 = vsel %vm921, %v901, 0.0
    %v1231 = vrot.slane %v1230, 4
    %v1232 = vadd.f32 %v1230, %v1231
    %v1233 = vrot.slane %v1232, 2
    %v1234 = vadd.f32 %v1232, %v1233
    %v1235 = vrot.slane %v1234, 1
    %v1236 = vadd.f32 %v1234, %v1235
    %v1237 = vsel %vm921, %v902, 0.0
    %v1238 = vrot.slane %v1237, 4
    %v1239 = vadd.f32 %v1237, %v1238
    %v1240 = vrot.slane %v1239, 2
    %v1241 = vadd.f32 %v1239, %v1240
    %v1242 = vrot.slane %v1241, 1
    %v1243 = vadd.f32 %v1241, %v1242
    %v1244 = vsel %vm921, %v903, 0.0
    %v1245 = vrot.slane %v1244, 4
    %v1246 = vadd.f32 %v1244, %v1245
    %v1247 = vrot.slane %v1246, 2
    %v1248 = vadd.f32 %v1246, %v1247
    %v1249 = vrot.slane %v1248, 1
    %v1250 = vadd.f32 %v1248, %v1249
    %v1251 = vsel %vm921, %v904, 0.0
    %v1252 = vrot.slane %v1251, 4
    %v1253 = vadd.f32 %v1251, %v1252
    %v1254 = vrot.slane %v1253, 2
    %v1255 = vadd.f32 %v1253, %v1254
    %v1256 = vrot.slane %v1255, 1
    %v1257 = vadd.f32 %v1255, %v1256
    %v1258 = vsel %vm921, %v905, 0.0
    %v1259 = vrot.slane %v1258, 4
    %v1260 = vadd.f32 %v1258, %v1259
    %v1261 = vrot.slane %v1260, 2
    %v1262 = vadd.f32 %v1260, %v1261
    %v1263 = vrot.slane %v1262, 1
    %v1264 = vadd.f32 %v1262, %v1263
    %v1265 = vsel %vm921, %v906, 0.0
    %v1266 = vrot.slane %v1265, 4
    %v1267 = vadd.f32 %v1265, %v1266
    %v1268 = vrot.slane %v1267, 2
    %v1269 = vadd.f32 %v1267, %v1268
    %v1270 = vrot.slane %v1269, 1
    %v1271 = vadd.f32 %v1269, %v1270
    %v1272 = vsel %vm921, %v907, 0.0
    %v1273 = vrot.slane %v1272, 4
    %v1274 = vadd.f32 %v1272, %v1273
    %v1275 = vrot.slane %v1274, 2
    %v1276 = vadd.f32 %v1274, %v1275
    %v1277 = vrot.slane %v1276, 1
    %v1278 = vadd.f32 %v1276, %v1277
    %v1279 = vsel %vm921, %v908, 0.0
    %v1280 = vrot.slane %v1279, 4
    %v1281 = vadd.f32 %v1279, %v1280
    %v1282 = vrot.slane %v1281, 2
    %v1283 = vadd.f32 %v1281, %v1282
    %v1284 = vrot.slane %v1283, 1
    %v1285 = vadd.f32 %v1283, %v1284
    %v1286 = vsel %vm921, %v909, 0.0
    %v1287 = vrot.slane %v1286, 4
    %v1288 = vadd.f32 %v1286, %v1287
    %v1289 = vrot.slane %v1288, 2
    %v1290 = vadd.f32 %v1288, %v1289
    %v1291 = vrot.slane %v1290, 1
    %v1292 = vadd.f32 %v1290, %v1291
    %v1293 = vsel %vm921, %v910, 0.0
    %v1294 = vrot.slane %v1293, 4
    %v1295 = vadd.f32 %v1293, %v1294
    %v1296 = vrot.slane %v1295, 2
    %v1297 = vadd.f32 %v1295, %v1296
    %v1298 = vrot.slane %v1297, 1
    %v1299 = vadd.f32 %v1297, %v1298
    %v1300 = vsel %vm921, %v911, 0.0
    %v1301 = vrot.slane %v1300, 4
    %v1302 = vadd.f32 %v1300, %v1301
    %v1303 = vrot.slane %v1302, 2
    %v1304 = vadd.f32 %v1302, %v1303
    %v1305 = vrot.slane %v1304, 1
    %v1306 = vadd.f32 %v1304, %v1305
    %v1307 = vsel %vm921, %v912, 0.0
    %v1308 = vrot.slane %v1307, 4
    %v1309 = vadd.f32 %v1307, %v1308
    %v1310 = vrot.slane %v1309, 2
    %v1311 = vadd.f32 %v1309, %v1310
    %v1312 = vrot.slane %v1311, 1
    %v1313 = vadd.f32 %v1311, %v1312
    %v1314 = vsel %vm921, %v913, 0.0
    %v1315 = vrot.slane %v1314, 4
    %v1316 = vadd.f32 %v1314, %v1315
    %v1317 = vrot.slane %v1316, 2
    %v1318 = vadd.f32 %v1316, %v1317
    %v1319 = vrot.slane %v1318, 1
    %v1320 = vadd.f32 %v1318, %v1319
    %v1321 = vsel %vm921, %v914, 0.0
    %v1322 = vrot.slane %v1321, 4
    %v1323 = vadd.f32 %v1321, %v1322
    %v1324 = vrot.slane %v1323, 2
    %v1325 = vadd.f32 %v1323, %v1324
    %v1326 = vrot.slane %v1325, 1
    %v1327 = vadd.f32 %v1325, %v1326
    %v1328 = vsel %vm921, %v915, 0.0
    %v1329 = vrot.slane %v1328, 4
    %v1330 = vadd.f32 %v1328, %v1329
    %v1331 = vrot.slane %v1330, 2
    %v1332 = vadd.f32 %v1330, %v1331
    %v1333 = vrot.slane %v1332, 1
    %v1334 = vadd.f32 %v1332, %v1333
    %v1335 = vsel %vm921, %v916, 0.0
    %v1336 = vrot.slane %v1335, 4
    %v1337 = vadd.f32 %v1335, %v1336
    %v1338 = vrot.slane %v1337, 2
    %v1339 = vadd.f32 %v1337, %v1338
    %v1340 = vrot.slane %v1339, 1
    %v1341 = vadd.f32 %v1339, %v1340
    %v1342 = vsel %vm921, %v917, 0.0
    %v1343 = vrot.slane %v1342, 4
    %v1344 = vadd.f32 %v1342, %v1343
    %v1345 = vrot.slane %v1344, 2
    %v1346 = vadd.f32 %v1344, %v1345
    %v1347 = vrot.slane %v1346, 1
    %v1348 = vadd.f32 %v1346, %v1347
    %v1349 = vsel %vm921, %v918, 0.0
    %v1350 = vrot.slane %v1349, 4
    %v1351 = vadd.f32 %v1349, %v1350
    %v1352 = vrot.slane %v1351, 2
    %v1353 = vadd.f32 %v1351, %v1352
    %v1354 = vrot.slane %v1353, 1
    %v1355 = vadd.f32 %v1353, %v1354
    %v1356 = vsel %vm921, %v919, 0.0
    %v1357 = vrot.slane %v1356, 4
    %v1358 = vadd.f32 %v1356, %v1357
    %v1359 = vrot.slane %v1358, 2
    %v1360 = vadd.f32 %v1358, %v1359
    %v1361 = vrot.slane %v1360, 1
    %v1362 = vadd.f32 %v1360, %v1361
    %v1363 = vsel %vm921, %v920, 0.0
    %v1364 = vrot.slane %v1363, 4
    %v1365 = vadd.f32 %v1363, %v1364
    %v1366 = vrot.slane %v1365, 2
    %v1367 = vadd.f32 %v1365, %v1366
    %v1368 = vrot.slane %v1367, 1
    %v1369 = vadd.f32 %v1367, %v1368
    %1371 = vrot.lane.b32.xlu0 %v237, 96
    %v1372 = vpop.permute.xlu0 %1371
    %vm1381 = vcmask 1041409
    %v1382 = vsel %vm1381, %v935, %v928
    %vm1383 = vcmask 1042434
    %v1384 = vsel %vm1383, %v942, %v1382
    %vm1385 = vcmask 1043459
    %v1386 = vsel %vm1385, %v949, %v1384
    %vm1387 = vcmask 1044484
    %v1388 = vsel %vm1387, %v956, %v1386
    %vm1389 = vcmask 1045509
    %v1390 = vsel %vm1389, %v963, %v1388
    %vm1391 = vcmask 1046534
    %v1392 = vsel %vm1391, %v970, %v1390
    %vm1393 = vcmask 1047559
    %v1394 = vsel %vm1393, %v977, %v1392
    %v1397 = vsel %vm921, %v273, 0
    %v1400 = vsel %vm921, %v1372, 0
    %1402 = vmatprep.subr.bf16.mxu0 0
    %1403 = vmatpush1.bf16.xpose.msra.mxu0 %v1400
    %1404 = vmatprep.subr.bf16.mxu0 0
    %1405 = vmatpush1.bf16.xpose.msra.mxu0 0
    %1406 = vmatprep.subr.bf16.mxu0 0
    %1407 = vmatpush1.bf16.xpose.msra.mxu0 0
    %1408 = vmatprep.subr.bf16.mxu0 0
    %1409 = vmatpush1.bf16.xpose.msra.mxu0 0
    %1410 = vmatprep.subr.bf16.mxu0 0
    %1411 = vmatpush1.bf16.xpose.msra.mxu0 0
    %1412 = vmatprep.subr.bf16.mxu0 0
    %1413 = vmatpush1.bf16.xpose.msra.mxu0 0
    %1414 = vmatprep.subr.bf16.mxu0 0
    %1415 = vmatpush1.bf16.xpose.msra.mxu0 0
    %1416 = vmatprep.subr.bf16.mxu0 0
    %1417 = vmatpush1.bf16.xpose.msra.mxu0 0
    %1418 = vmatprep.subr.bf16.mxu0 0
    %1419 = vmatpush1.bf16.xpose.msra.mxu0 0
    %1420 = vmatprep.subr.bf16.mxu0 0
    %1421 = vmatpush1.bf16.xpose.msra.mxu0 0
    %1422 = vmatprep.subr.bf16.mxu0 0
    %1423 = vmatpush1.bf16.xpose.msra.mxu0 0
    %1424 = vmatprep.subr.bf16.mxu0 0
    %1425 = vmatpush1.bf16.xpose.msra.mxu0 0
    %1426 = vmatprep.subr.bf16.mxu0 0
    %1427 = vmatpush1.bf16.xpose.msra.mxu0 0
    %1428 = vmatprep.subr.bf16.mxu0 0
    %1429 = vmatpush1.bf16.xpose.msra.mxu0 0
    %1430 = vmatprep.subr.bf16.mxu0 0
    %1431 = vmatpush1.bf16.xpose.msra.mxu0 0
    %1432 = vmatprep.subr.bf16.mxu0 0
    %1433 = vmatpush1.bf16.xpose.msra.mxu0 0
    %1434 = vmatprep.mubr.bf16.mxu0 0
    %1435 = vmatmul.mubr.bf16.gmra.mrb[0].mxu0 %v1397
    %v1436 = vpop.f32.mrb[0].mxu0
    %v1437 = vadd.f32 %v1394, %v1436
    %v1438 = vpop.f32.mrb[0].mxu0
    %v1439 = vpop.f32.mrb[0].mxu0
    %v1440 = vpop.f32.mrb[0].mxu0
    %1441 = vdwg.mxu0
    %1443 = vrot.lane.b32.xlu0 %v238, 96
    %v1444 = vpop.permute.xlu0 %1443
    %v1453 = vsel %vm1381, %v991, %v984
    %v1454 = vsel %vm1383, %v998, %v1453
    %v1455 = vsel %vm1385, %v1005, %v1454
    %v1456 = vsel %vm1387, %v1012, %v1455
    %v1457 = vsel %vm1389, %v1019, %v1456
    %v1458 = vsel %vm1391, %v1026, %v1457
    %v1459 = vsel %vm1393, %v1033, %v1458
    %v1462 = vsel %vm921, %v274, 0
    %v1465 = vsel %vm921, %v1444, 0
    %1467 = vmatprep.subr.bf16.mxu0 0
    %1468 = vmatpush1.bf16.xpose.msra.mxu0 %v1465
    %1469 = vmatprep.subr.bf16.mxu0 0
    %1470 = vmatpush1.bf16.xpose.msra.mxu0 0
    %1471 = vmatprep.subr.bf16.mxu0 0
    %1472 = vmatpush1.bf16.xpose.msra.mxu0 0
    %1473 = vmatprep.subr.bf16.mxu0 0
    %1474 = vmatpush1.bf16.xpose.msra.mxu0 0
    %1475 = vmatprep.subr.bf16.mxu0 0
    %1476 = vmatpush1.bf16.xpose.msra.mxu0 0
    %1477 = vmatprep.subr.bf16.mxu0 0
    %1478 = vmatpush1.bf16.xpose.msra.mxu0 0
    %1479 = vmatprep.subr.bf16.mxu0 0
    %1480 = vmatpush1.bf16.xpose.msra.mxu0 0
    %1481 = vmatprep.subr.bf16.mxu0 0
    %1482 = vmatpush1.bf16.xpose.msra.mxu0 0
    %1483 = vmatprep.subr.bf16.mxu0 0
    %1484 = vmatpush1.bf16.xpose.msra.mxu0 0
    %1485 = vmatprep.subr.bf16.mxu0 0
    %1486 = vmatpush1.bf16.xpose.msra.mxu0 0
    %1487 = vmatprep.subr.bf16.mxu0 0
    %1488 = vmatpush1.bf16.xpose.msra.mxu0 0
    %1489 = vmatprep.subr.bf16.mxu0 0
    %1490 = vmatpush1.bf16.xpose.msra.mxu0 0
    %1491 = vmatprep.subr.bf16.mxu0 0
    %1492 = vmatpush1.bf16.xpose.msra.mxu0 0
    %1493 = vmatprep.subr.bf16.mxu0 0
    %1494 = vmatpush1.bf16.xpose.msra.mxu0 0
    %1495 = vmatprep.subr.bf16.mxu0 0
    %1496 = vmatpush1.bf16.xpose.msra.mxu0 0
    %1497 = vmatprep.subr.bf16.mxu0 0
    %1498 = vmatpush1.bf16.xpose.msra.mxu0 0
    %1499 = vmatprep.mubr.bf16.mxu0 0
    %1500 = vmatmul.mubr.bf16.gmra.mrb[0].mxu0 %v1462
    %v1501 = vpop.f32.mrb[0].mxu0
    %v1502 = vadd.f32 %v1459, %v1501
    %v1503 = vpop.f32.mrb[0].mxu0
    %v1504 = vpop.f32.mrb[0].mxu0
    %v1505 = vpop.f32.mrb[0].mxu0
    %1506 = vdwg.mxu0
    %1508 = vrot.lane.b32.xlu0 %v239, 96
    %v1509 = vpop.permute.xlu0 %1508
    %v1518 = vsel %vm1381, %v1047, %v1040
    %v1519 = vsel %vm1383, %v1054, %v1518
    %v1520 = vsel %vm1385, %v1061, %v1519
    %v1521 = vsel %vm1387, %v1068, %v1520
    %v1522 = vsel %vm1389, %v1075, %v1521
    %v1523 = vsel %vm1391, %v1082, %v1522
    %v1524 = vsel %vm1393, %v1089, %v1523
    %v1527 = vsel %vm921, %v275, 0
    %v1530 = vsel %vm921, %v1509, 0
    %1532 = vmatprep.subr.bf16.mxu0 0
    %1533 = vmatpush1.bf16.xpose.msra.mxu0 %v1530
    %1534 = vmatprep.subr.bf16.mxu0 0
    %1535 = vmatpush1.bf16.xpose.msra.mxu0 0
    %1536 = vmatprep.subr.bf16.mxu0 0
    %1537 = vmatpush1.bf16.xpose.msra.mxu0 0
    %1538 = vmatprep.subr.bf16.mxu0 0
    %1539 = vmatpush1.bf16.xpose.msra.mxu0 0
    %1540 = vmatprep.subr.bf16.mxu0 0
    %1541 = vmatpush1.bf16.xpose.msra.mxu0 0
    %1542 = vmatprep.subr.bf16.mxu0 0
    %1543 = vmatpush1.bf16.xpose.msra.mxu0 0
    %1544 = vmatprep.subr.bf16.mxu0 0
    %1545 = vmatpush1.bf16.xpose.msra.mxu0 0
    %1546 = vmatprep.subr.bf16.mxu0 0
    %1547 = vmatpush1.bf16.xpose.msra.mxu0 0
    %1548 = vmatprep.subr.bf16.mxu0 0
    %1549 = vmatpush1.bf16.xpose.msra.mxu0 0
    %1550 = vmatprep.subr.bf16.mxu0 0
    %1551 = vmatpush1.bf16.xpose.msra.mxu0 0
    %1552 = vmatprep.subr.bf16.mxu0 0
    %1553 = vmatpush1.bf16.xpose.msra.mxu0 0
    %1554 = vmatprep.subr.bf16.mxu0 0
    %1555 = vmatpush1.bf16.xpose.msra.mxu0 0
    %1556 = vmatprep.subr.bf16.mxu0 0
    %1557 = vmatpush1.bf16.xpose.msra.mxu0 0
    %1558 = vmatprep.subr.bf16.mxu0 0
    %1559 = vmatpush1.bf16.xpose.msra.mxu0 0
    %1560 = vmatprep.subr.bf16.mxu0 0
    %1561 = vmatpush1.bf16.xpose.msra.mxu0 0
    %1562 = vmatprep.subr.bf16.mxu0 0
    %1563 = vmatpush1.bf16.xpose.msra.mxu0 0
    %1564 = vmatprep.mubr.bf16.mxu0 0
    %1565 = vmatmul.mubr.bf16.gmra.mrb[0].mxu0 %v1527
    %v1566 = vpop.f32.mrb[0].mxu0
    %v1567 = vadd.f32 %v1524, %v1566
    %v1568 = vpop.f32.mrb[0].mxu0
    %v1569 = vpop.f32.mrb[0].mxu0
    %v1570 = vpop.f32.mrb[0].mxu0
    %1571 = vdwg.mxu0
    %1573 = vrot.lane.b32.xlu0 %v240, 96
    %v1574 = vpop.permute.xlu0 %1573
    %v1583 = vsel %vm1381, %v1103, %v1096
    %v1584 = vsel %vm1383, %v1110, %v1583
    %v1585 = vsel %vm1385, %v1117, %v1584
    %v1586 = vsel %vm1387, %v1124, %v1585
    %v1587 = vsel %vm1389, %v1131, %v1586
    %v1588 = vsel %vm1391, %v1138, %v1587
    %v1589 = vsel %vm1393, %v1145, %v1588
    %v1592 = vsel %vm921, %v276, 0
    %v1595 = vsel %vm921, %v1574, 0
    %1597 = vmatprep.subr.bf16.mxu0 0
    %1598 = vmatpush1.bf16.xpose.msra.mxu0 %v1595
    %1599 = vmatprep.subr.bf16.mxu0 0
    %1600 = vmatpush1.bf16.xpose.msra.mxu0 0
    %1601 = vmatprep.subr.bf16.mxu0 0
    %1602 = vmatpush1.bf16.xpose.msra.mxu0 0
    %1603 = vmatprep.subr.bf16.mxu0 0
    %1604 = vmatpush1.bf16.xpose.msra.mxu0 0
    %1605 = vmatprep.subr.bf16.mxu0 0
    %1606 = vmatpush1.bf16.xpose.msra.mxu0 0
    %1607 = vmatprep.subr.bf16.mxu0 0
    %1608 = vmatpush1.bf16.xpose.msra.mxu0 0
    %1609 = vmatprep.subr.bf16.mxu0 0
    %1610 = vmatpush1.bf16.xpose.msra.mxu0 0
    %1611 = vmatprep.subr.bf16.mxu0 0
    %1612 = vmatpush1.bf16.xpose.msra.mxu0 0
    %1613 = vmatprep.subr.bf16.mxu0 0
    %1614 = vmatpush1.bf16.xpose.msra.mxu0 0
    %1615 = vmatprep.subr.bf16.mxu0 0
    %1616 = vmatpush1.bf16.xpose.msra.mxu0 0
    %1617 = vmatprep.subr.bf16.mxu0 0
    %1618 = vmatpush1.bf16.xpose.msra.mxu0 0
    %1619 = vmatprep.subr.bf16.mxu0 0
    %1620 = vmatpush1.bf16.xpose.msra.mxu0 0
    %1621 = vmatprep.subr.bf16.mxu0 0
    %1622 = vmatpush1.bf16.xpose.msra.mxu0 0
    %1623 = vmatprep.subr.bf16.mxu0 0
    %1624 = vmatpush1.bf16.xpose.msra.mxu0 0
    %1625 = vmatprep.subr.bf16.mxu0 0
    %1626 = vmatpush1.bf16.xpose.msra.mxu0 0
    %1627 = vmatprep.subr.bf16.mxu0 0
    %1628 = vmatpush1.bf16.xpose.msra.mxu0 0
    %1629 = vmatprep.mubr.bf16.mxu0 0
    %1630 = vmatmul.mubr.bf16.gmra.mrb[0].mxu0 %v1592
    %v1631 = vpop.f32.mrb[0].mxu0
    %v1632 = vadd.f32 %v1589, %v1631
    %v1633 = vpop.f32.mrb[0].mxu0
    %v1634 = vpop.f32.mrb[0].mxu0
    %v1635 = vpop.f32.mrb[0].mxu0
    %1636 = vdwg.mxu0
    %1638 = vrot.lane.b32.xlu0 %v241, 96
    %v1639 = vpop.permute.xlu0 %1638
    %v1648 = vsel %vm1381, %v1159, %v1152
    %v1649 = vsel %vm1383, %v1166, %v1648
    %v1650 = vsel %vm1385, %v1173, %v1649
    %v1651 = vsel %vm1387, %v1180, %v1650
    %v1652 = vsel %vm1389, %v1187, %v1651
    %v1653 = vsel %vm1391, %v1194, %v1652
    %v1654 = vsel %vm1393, %v1201, %v1653
    %v1657 = vsel %vm921, %v277, 0
    %v1660 = vsel %vm921, %v1639, 0
    %1662 = vmatprep.subr.bf16.mxu0 0
    %1663 = vmatpush1.bf16.xpose.msra.mxu0 %v1660
    %1664 = vmatprep.subr.bf16.mxu0 0
    %1665 = vmatpush1.bf16.xpose.msra.mxu0 0
    %1666 = vmatprep.subr.bf16.mxu0 0
    %1667 = vmatpush1.bf16.xpose.msra.mxu0 0
    %1668 = vmatprep.subr.bf16.mxu0 0
    %1669 = vmatpush1.bf16.xpose.msra.mxu0 0
    %1670 = vmatprep.subr.bf16.mxu0 0
    %1671 = vmatpush1.bf16.xpose.msra.mxu0 0
    %1672 = vmatprep.subr.bf16.mxu0 0
    %1673 = vmatpush1.bf16.xpose.msra.mxu0 0
    %1674 = vmatprep.subr.bf16.mxu0 0
    %1675 = vmatpush1.bf16.xpose.msra.mxu0 0
    %1676 = vmatprep.subr.bf16.mxu0 0
    %1677 = vmatpush1.bf16.xpose.msra.mxu0 0
    %1678 = vmatprep.subr.bf16.mxu0 0
    %1679 = vmatpush1.bf16.xpose.msra.mxu0 0
    %1680 = vmatprep.subr.bf16.mxu0 0
    %1681 = vmatpush1.bf16.xpose.msra.mxu0 0
    %1682 = vmatprep.subr.bf16.mxu0 0
    %1683 = vmatpush1.bf16.xpose.msra.mxu0 0
    %1684 = vmatprep.subr.bf16.mxu0 0
    %1685 = vmatpush1.bf16.xpose.msra.mxu0 0
    %1686 = vmatprep.subr.bf16.mxu0 0
    %1687 = vmatpush1.bf16.xpose.msra.mxu0 0
    %1688 = vmatprep.subr.bf16.mxu0 0
    %1689 = vmatpush1.bf16.xpose.msra.mxu0 0
    %1690 = vmatprep.subr.bf16.mxu0 0
    %1691 = vmatpush1.bf16.xpose.msra.mxu0 0
    %1692 = vmatprep.subr.bf16.mxu0 0
    %1693 = vmatpush1.bf16.xpose.msra.mxu0 0
    %1694 = vmatprep.mubr.bf16.mxu0 0
    %1695 = vmatmul.mubr.bf16.gmra.mrb[0].mxu0 %v1657
    %v1696 = vpop.f32.mrb[0].mxu0
    %v1697 = vadd.f32 %v1654, %v1696
    %v1698 = vpop.f32.mrb[0].mxu0
    %v1699 = vpop.f32.mrb[0].mxu0
    %v1700 = vpop.f32.mrb[0].mxu0
    %1701 = vdwg.mxu0
    %1703 = vrot.lane.b32.xlu0 %v242, 96
    %v1704 = vpop.permute.xlu0 %1703
    %v1713 = vsel %vm1381, %v1215, %v1208
    %v1714 = vsel %vm1383, %v1222, %v1713
    %v1715 = vsel %vm1385, %v1229, %v1714
    %v1716 = vsel %vm1387, %v1236, %v1715
    %v1717 = vsel %vm1389, %v1243, %v1716
    %v1718 = vsel %vm1391, %v1250, %v1717
    %v1719 = vsel %vm1393, %v1257, %v1718
    %v1722 = vsel %vm921, %v278, 0
    %v1725 = vsel %vm921, %v1704, 0
    %1727 = vmatprep.subr.bf16.mxu0 0
    %1728 = vmatpush1.bf16.xpose.msra.mxu0 %v1725
    %1729 = vmatprep.subr.bf16.mxu0 0
    %1730 = vmatpush1.bf16.xpose.msra.mxu0 0
    %1731 = vmatprep.subr.bf16.mxu0 0
    %1732 = vmatpush1.bf16.xpose.msra.mxu0 0
    %1733 = vmatprep.subr.bf16.mxu0 0
    %1734 = vmatpush1.bf16.xpose.msra.mxu0 0
    %1735 = vmatprep.subr.bf16.mxu0 0
    %1736 = vmatpush1.bf16.xpose.msra.mxu0 0
    %1737 = vmatprep.subr.bf16.mxu0 0
    %1738 = vmatpush1.bf16.xpose.msra.mxu0 0
    %1739 = vmatprep.subr.bf16.mxu0 0
    %1740 = vmatpush1.bf16.xpose.msra.mxu0 0
    %1741 = vmatprep.subr.bf16.mxu0 0
    %1742 = vmatpush1.bf16.xpose.msra.mxu0 0
    %1743 = vmatprep.subr.bf16.mxu0 0
    %1744 = vmatpush1.bf16.xpose.msra.mxu0 0
    %1745 = vmatprep.subr.bf16.mxu0 0
    %1746 = vmatpush1.bf16.xpose.msra.mxu0 0
    %1747 = vmatprep.subr.bf16.mxu0 0
    %1748 = vmatpush1.bf16.xpose.msra.mxu0 0
    %1749 = vmatprep.subr.bf16.mxu0 0
    %1750 = vmatpush1.bf16.xpose.msra.mxu0 0
    %1751 = vmatprep.subr.bf16.mxu0 0
    %1752 = vmatpush1.bf16.xpose.msra.mxu0 0
    %1753 = vmatprep.subr.bf16.mxu0 0
    %1754 = vmatpush1.bf16.xpose.msra.mxu0 0
    %1755 = vmatprep.subr.bf16.mxu0 0
    %1756 = vmatpush1.bf16.xpose.msra.mxu0 0
    %1757 = vmatprep.subr.bf16.mxu0 0
    %1758 = vmatpush1.bf16.xpose.msra.mxu0 0
    %1759 = vmatprep.mubr.bf16.mxu0 0
    %1760 = vmatmul.mubr.bf16.gmra.mrb[0].mxu0 %v1722
    %v1761 = vpop.f32.mrb[0].mxu0
    %v1762 = vadd.f32 %v1719, %v1761
    %v1763 = vpop.f32.mrb[0].mxu0
    %v1764 = vpop.f32.mrb[0].mxu0
    %v1765 = vpop.f32.mrb[0].mxu0
    %1766 = vdwg.mxu0
    %1768 = vrot.lane.b32.xlu0 %v243, 96
    %v1769 = vpop.permute.xlu0 %1768
    %v1778 = vsel %vm1381, %v1271, %v1264
    %v1779 = vsel %vm1383, %v1278, %v1778
    %v1780 = vsel %vm1385, %v1285, %v1779
    %v1781 = vsel %vm1387, %v1292, %v1780
    %v1782 = vsel %vm1389, %v1299, %v1781
    %v1783 = vsel %vm1391, %v1306, %v1782
    %v1784 = vsel %vm1393, %v1313, %v1783
    %v1787 = vsel %vm921, %v279, 0
    %v1790 = vsel %vm921, %v1769, 0
    %1792 = vmatprep.subr.bf16.mxu0 0
    %1793 = vmatpush1.bf16.xpose.msra.mxu0 %v1790
    %1794 = vmatprep.subr.bf16.mxu0 0
    %1795 = vmatpush1.bf16.xpose.msra.mxu0 0
    %1796 = vmatprep.subr.bf16.mxu0 0
    %1797 = vmatpush1.bf16.xpose.msra.mxu0 0
    %1798 = vmatprep.subr.bf16.mxu0 0
    %1799 = vmatpush1.bf16.xpose.msra.mxu0 0
    %1800 = vmatprep.subr.bf16.mxu0 0
    %1801 = vmatpush1.bf16.xpose.msra.mxu0 0
    %1802 = vmatprep.subr.bf16.mxu0 0
    %1803 = vmatpush1.bf16.xpose.msra.mxu0 0
    %1804 = vmatprep.subr.bf16.mxu0 0
    %1805 = vmatpush1.bf16.xpose.msra.mxu0 0
    %1806 = vmatprep.subr.bf16.mxu0 0
    %1807 = vmatpush1.bf16.xpose.msra.mxu0 0
    %1808 = vmatprep.subr.bf16.mxu0 0
    %1809 = vmatpush1.bf16.xpose.msra.mxu0 0
    %1810 = vmatprep.subr.bf16.mxu0 0
    %1811 = vmatpush1.bf16.xpose.msra.mxu0 0
    %1812 = vmatprep.subr.bf16.mxu0 0
    %1813 = vmatpush1.bf16.xpose.msra.mxu0 0
    %1814 = vmatprep.subr.bf16.mxu0 0
    %1815 = vmatpush1.bf16.xpose.msra.mxu0 0
    %1816 = vmatprep.subr.bf16.mxu0 0
    %1817 = vmatpush1.bf16.xpose.msra.mxu0 0
    %1818 = vmatprep.subr.bf16.mxu0 0
    %1819 = vmatpush1.bf16.xpose.msra.mxu0 0
    %1820 = vmatprep.subr.bf16.mxu0 0
    %1821 = vmatpush1.bf16.xpose.msra.mxu0 0
    %1822 = vmatprep.subr.bf16.mxu0 0
    %1823 = vmatpush1.bf16.xpose.msra.mxu0 0
    %1824 = vmatprep.mubr.bf16.mxu0 0
    %1825 = vmatmul.mubr.bf16.gmra.mrb[0].mxu0 %v1787
    %v1826 = vpop.f32.mrb[0].mxu0
    %v1827 = vadd.f32 %v1784, %v1826
    %v1828 = vpop.f32.mrb[0].mxu0
    %v1829 = vpop.f32.mrb[0].mxu0
    %v1830 = vpop.f32.mrb[0].mxu0
    %1831 = vdwg.mxu0
    %1833 = vrot.lane.b32.xlu0 %v244, 96
    %v1834 = vpop.permute.xlu0 %1833
    %v1843 = vsel %vm1381, %v1327, %v1320
    %v1844 = vsel %vm1383, %v1334, %v1843
    %v1845 = vsel %vm1385, %v1341, %v1844
    %v1846 = vsel %vm1387, %v1348, %v1845
    %v1847 = vsel %vm1389, %v1355, %v1846
    %v1848 = vsel %vm1391, %v1362, %v1847
    %v1849 = vsel %vm1393, %v1369, %v1848
    %v1852 = vsel %vm921, %v280, 0
    %v1855 = vsel %vm921, %v1834, 0
    %1857 = vmatprep.subr.bf16.mxu0 0
    %1858 = vmatpush1.bf16.xpose.msra.mxu0 %v1855
    %1859 = vmatprep.subr.bf16.mxu0 0
    %1860 = vmatpush1.bf16.xpose.msra.mxu0 0
    %1861 = vmatprep.subr.bf16.mxu0 0
    %1862 = vmatpush1.bf16.xpose.msra.mxu0 0
    %1863 = vmatprep.subr.bf16.mxu0 0
    %1864 = vmatpush1.bf16.xpose.msra.mxu0 0
    %1865 = vmatprep.subr.bf16.mxu0 0
    %1866 = vmatpush1.bf16.xpose.msra.mxu0 0
    %1867 = vmatprep.subr.bf16.mxu0 0
    %1868 = vmatpush1.bf16.xpose.msra.mxu0 0
    %1869 = vmatprep.subr.bf16.mxu0 0
    %1870 = vmatpush1.bf16.xpose.msra.mxu0 0
    %1871 = vmatprep.subr.bf16.mxu0 0
    %1872 = vmatpush1.bf16.xpose.msra.mxu0 0
    %1873 = vmatprep.subr.bf16.mxu0 0
    %1874 = vmatpush1.bf16.xpose.msra.mxu0 0
    %1875 = vmatprep.subr.bf16.mxu0 0
    %1876 = vmatpush1.bf16.xpose.msra.mxu0 0
    %1877 = vmatprep.subr.bf16.mxu0 0
    %1878 = vmatpush1.bf16.xpose.msra.mxu0 0
    %1879 = vmatprep.subr.bf16.mxu0 0
    %1880 = vmatpush1.bf16.xpose.msra.mxu0 0
    %1881 = vmatprep.subr.bf16.mxu0 0
    %1882 = vmatpush1.bf16.xpose.msra.mxu0 0
    %1883 = vmatprep.subr.bf16.mxu0 0
    %1884 = vmatpush1.bf16.xpose.msra.mxu0 0
    %1885 = vmatprep.subr.bf16.mxu0 0
    %1886 = vmatpush1.bf16.xpose.msra.mxu0 0
    %1887 = vmatprep.subr.bf16.mxu0 0
    %1888 = vmatpush1.bf16.xpose.msra.mxu0 0
    %1889 = vmatprep.mubr.bf16.mxu0 0
    %1890 = vmatmul.mubr.bf16.gmra.mrb[0].mxu0 %v1852
    %v1891 = vpop.f32.mrb[0].mxu0
    %v1892 = vadd.f32 %v1849, %v1891
    %v1893 = vpop.f32.mrb[0].mxu0
    %v1894 = vpop.f32.mrb[0].mxu0
    %v1895 = vpop.f32.mrb[0].mxu0
    %1896 = vdwg.mxu0
    %v1897 = vld [vmem:[%s1] sm:$0xff]
    %v1898 = vld [vmem:[%s1 + $0x8] sm:$0xff]
    %v1899 = vadd.f32 %v1437, %v1897
    %v1900 = vadd.f32 %v1502, %v1897
    %v1901 = vadd.f32 %v1567, %v1897
    %v1902 = vadd.f32 %v1632, %v1897
    %v1903 = vadd.f32 %v1697, %v1898
    %v1904 = vadd.f32 %v1762, %v1898
    %v1905 = vadd.f32 %v1827, %v1898
    %v1906 = vadd.f32 %v1892, %v1898
    %v1907 = vsel %vm921, %v1899, -inf
    %1908 = vmax.xlane.f32.xlu0 %v1907
    %v1909 = vpop.xlane.xlu0 %1908
    %v1910 = vsel %vm921, %v1900, -inf
    %1911 = vmax.xlane.f32.xlu0 %v1910
    %v1912 = vpop.xlane.xlu0 %1911
    %v1913 = vsel %vm921, %v1901, -inf
    %1914 = vmax.xlane.f32.xlu0 %v1913
    %v1915 = vpop.xlane.xlu0 %1914
    %v1916 = vsel %vm921, %v1902, -inf
    %1917 = vmax.xlane.f32.xlu0 %v1916
    %v1918 = vpop.xlane.xlu0 %1917
    %v1919 = vsel %vm921, %v1903, -inf
    %1920 = vmax.xlane.f32.xlu0 %v1919
    %v1921 = vpop.xlane.xlu0 %1920
    %v1922 = vsel %vm921, %v1904, -inf
    %1923 = vmax.xlane.f32.xlu0 %v1922
    %v1924 = vpop.xlane.xlu0 %1923
    %v1925 = vsel %vm921, %v1905, -inf
    %1926 = vmax.xlane.f32.xlu0 %v1925
    %v1927 = vpop.xlane.xlu0 %1926
    %v1928 = vsel %vm921, %v1906, -inf
    %1929 = vmax.xlane.f32.xlu0 %v1928
    %v1930 = vpop.xlane.xlu0 %1929
    %v1931 = vsub.f32 %v1899, %v1909
    %v1932 = vsub.f32 %v1900, %v1912
    %v1933 = vsub.f32 %v1901, %v1915
    %v1934 = vsub.f32 %v1902, %v1918
    %v1935 = vsub.f32 %v1903, %v1921
    %v1936 = vsub.f32 %v1904, %v1924
    %v1937 = vsub.f32 %v1905, %v1927
    %v1938 = vsub.f32 %v1906, %v1930
    %v1939 = vmul.f32 %v1931, 1.442695
    %v1940 = vpow.pop %v1939
    %v1941 = vmul.f32 %v1932, 1.442695
    %v1942 = vpow.pop %v1941
    %v1943 = vmul.f32 %v1933, 1.442695
    %v1944 = vpow.pop %v1943
    %v1945 = vmul.f32 %v1934, 1.442695
    %v1946 = vpow.pop %v1945
    %v1947 = vmul.f32 %v1935, 1.442695
    %v1948 = vpow.pop %v1947
    %v1949 = vmul.f32 %v1936, 1.442695
    %v1950 = vpow.pop %v1949
    %v1951 = vmul.f32 %v1937, 1.442695
    %v1952 = vpow.pop %v1951
    %v1953 = vmul.f32 %v1938, 1.442695
    %v1954 = vpow.pop %v1953
    %v1955 = vsel %vm921, %v1940, 0.0
    %1956 = vadd.xlane.f32.xlu0 %v1955
    %v1957 = vpop.xlane.xlu0 %1956
    %v1958 = vsel %vm921, %v1942, 0.0
    %1959 = vadd.xlane.f32.xlu0 %v1958
    %v1960 = vpop.xlane.xlu0 %1959
    %v1961 = vsel %vm921, %v1944, 0.0
    %1962 = vadd.xlane.f32.xlu0 %v1961
    %v1963 = vpop.xlane.xlu0 %1962
    %v1964 = vsel %vm921, %v1946, 0.0
    %1965 = vadd.xlane.f32.xlu0 %v1964
    %v1966 = vpop.xlane.xlu0 %1965
    %v1967 = vsel %vm921, %v1948, 0.0
    %1968 = vadd.xlane.f32.xlu0 %v1967
    %v1969 = vpop.xlane.xlu0 %1968
    %v1970 = vsel %vm921, %v1950, 0.0
    %1971 = vadd.xlane.f32.xlu0 %v1970
    %v1972 = vpop.xlane.xlu0 %1971
    %v1973 = vsel %vm921, %v1952, 0.0
    %1974 = vadd.xlane.f32.xlu0 %v1973
    %v1975 = vpop.xlane.xlu0 %1974
    %v1976 = vsel %vm921, %v1954, 0.0
    %1977 = vadd.xlane.f32.xlu0 %v1976
    %v1978 = vpop.xlane.xlu0 %1977
    %v1979 = vrcp.pop %v1957
    %v1980 = vrcp.pop %v1960
    %v1981 = vrcp.pop %v1963
    %v1982 = vrcp.pop %v1966
    %v1983 = vrcp.pop %v1969
    %v1984 = vrcp.pop %v1972
    %v1985 = vrcp.pop %v1975
    %v1986 = vrcp.pop %v1978
    %v1987 = vmul.f32 %v1940, %v1979
    %v1988 = vmul.f32 %v1942, %v1980
    %v1989 = vmul.f32 %v1944, %v1981
    %v1990 = vmul.f32 %v1946, %v1982
    %v1991 = vmul.f32 %v1948, %v1983
    %v1992 = vmul.f32 %v1950, %v1984
    %v1993 = vmul.f32 %v1952, %v1985
    %v1994 = vmul.f32 %v1954, %v1986
    %v1995 = vpack.c.bf16 %v1987, %v1987
    %v1996 = vpack.c.bf16 %v1988, %v1988
    %v1997 = vpack.c.bf16 %v1989, %v1989
    %v1998 = vpack.c.bf16 %v1990, %v1990
    %v1999 = vpack.c.bf16 %v1991, %v1991
    %v2000 = vpack.c.bf16 %v1992, %v1992
    %v2001 = vpack.c.bf16 %v1993, %v1993
    %v2002 = vpack.c.bf16 %v1994, %v1994
    %v2011 = vcombine.high %v1987, %v1987
    %v2013 = vunpack.c.l.s4 1966171168
    %v2014 = vunpack.c.0.s8 %v2013
    %v2015 = vlaneseq
    %v2016 = vshrl.u32 %v2015, 7
    %v2017 = vsub.s32 %v2014, %v2016
    %v2018 = vrot.slane %v1987, %v2017
    %v2020 = vunpack.c.l.s4 1966171168
    %v2021 = vunpack.c.0.s8 %v2020
    %v2022 = vlaneseq
    %v2023 = vshrl.u32 %v2022, 7
    %v2024 = vsub.s32 %v2021, %v2023
    %v2025 = vrot.slane %v2011, %v2024
    %v2026 = vcombine.high %v2018, %v2018
    %v2027 = vcombine.high %v2025, %v2025
    %v2029 = vunpack.c.l.s4 1966171168
    %v2030 = vunpack.c.0.s8 %v2029
    %v2031 = vlaneseq
    %v2032 = vshrl.u32 %v2031, 7
    %v2033 = vsub.s32 %v2030, %v2032
    %v2034 = vrot.slane %v2018, %v2033
    %v2036 = vunpack.c.l.s4 1966171168
    %v2037 = vunpack.c.0.s8 %v2036
    %v2038 = vlaneseq
    %v2039 = vshrl.u32 %v2038, 7
    %v2040 = vsub.s32 %v2037, %v2039
    %v2041 = vrot.slane %v2025, %v2040
    %v2043 = vunpack.c.l.s4 1966171168
    %v2044 = vunpack.c.0.s8 %v2043
    %v2045 = vlaneseq
    %v2046 = vshrl.u32 %v2045, 7
    %v2047 = vsub.s32 %v2044, %v2046
    %v2048 = vrot.slane %v2026, %v2047
    %v2050 = vunpack.c.l.s4 1966171168
    %v2051 = vunpack.c.0.s8 %v2050
    %v2052 = vlaneseq
    %v2053 = vshrl.u32 %v2052, 7
    %v2054 = vsub.s32 %v2051, %v2053
    %v2055 = vrot.slane %v2027, %v2054
    %v2056 = vcombine.high %v2034, %v2034
    %v2057 = vcombine.high %v2041, %v2041
    %v2058 = vcombine.high %v2048, %v2048
    %v2059 = vcombine.high %v2055, %v2055
    %v2060 = vcombine.high %v1988, %v1988
    %v2062 = vunpack.c.l.s4 1966171168
    %v2063 = vunpack.c.0.s8 %v2062
    %v2064 = vlaneseq
    %v2065 = vshrl.u32 %v2064, 7
    %v2066 = vsub.s32 %v2063, %v2065
    %v2067 = vrot.slane %v1988, %v2066
    %v2069 = vunpack.c.l.s4 1966171168
    %v2070 = vunpack.c.0.s8 %v2069
    %v2071 = vlaneseq
    %v2072 = vshrl.u32 %v2071, 7
    %v2073 = vsub.s32 %v2070, %v2072
    %v2074 = vrot.slane %v2060, %v2073
    %v2075 = vcombine.high %v2067, %v2067
    %v2076 = vcombine.high %v2074, %v2074
    %v2078 = vunpack.c.l.s4 1966171168
    %v2079 = vunpack.c.0.s8 %v2078
    %v2080 = vlaneseq
    %v2081 = vshrl.u32 %v2080, 7
    %v2082 = vsub.s32 %v2079, %v2081
    %v2083 = vrot.slane %v2067, %v2082
    %v2085 = vunpack.c.l.s4 1966171168
    %v2086 = vunpack.c.0.s8 %v2085
    %v2087 = vlaneseq
    %v2088 = vshrl.u32 %v2087, 7
    %v2089 = vsub.s32 %v2086, %v2088
    %v2090 = vrot.slane %v2074, %v2089
    %v2092 = vunpack.c.l.s4 1966171168
    %v2093 = vunpack.c.0.s8 %v2092
    %v2094 = vlaneseq
    %v2095 = vshrl.u32 %v2094, 7
    %v2096 = vsub.s32 %v2093, %v2095
    %v2097 = vrot.slane %v2075, %v2096
    %v2099 = vunpack.c.l.s4 1966171168
    %v2100 = vunpack.c.0.s8 %v2099
    %v2101 = vlaneseq
    %v2102 = vshrl.u32 %v2101, 7
    %v2103 = vsub.s32 %v2100, %v2102
    %v2104 = vrot.slane %v2076, %v2103
    %v2105 = vcombine.high %v2083, %v2083
    %v2106 = vcombine.high %v2090, %v2090
    %v2107 = vcombine.high %v2097, %v2097
    %v2108 = vcombine.high %v2104, %v2104
    %v2109 = vcombine.high %v1989, %v1989
    %v2111 = vunpack.c.l.s4 1966171168
    %v2112 = vunpack.c.0.s8 %v2111
    %v2113 = vlaneseq
    %v2114 = vshrl.u32 %v2113, 7
    %v2115 = vsub.s32 %v2112, %v2114
    %v2116 = vrot.slane %v1989, %v2115
    %v2118 = vunpack.c.l.s4 1966171168
    %v2119 = vunpack.c.0.s8 %v2118
    %v2120 = vlaneseq
    %v2121 = vshrl.u32 %v2120, 7
    %v2122 = vsub.s32 %v2119, %v2121
    %v2123 = vrot.slane %v2109, %v2122
    %v2124 = vcombine.high %v2116, %v2116
    %v2125 = vcombine.high %v2123, %v2123
    %v2127 = vunpack.c.l.s4 1966171168
    %v2128 = vunpack.c.0.s8 %v2127
    %v2129 = vlaneseq
    %v2130 = vshrl.u32 %v2129, 7
    %v2131 = vsub.s32 %v2128, %v2130
    %v2132 = vrot.slane %v2116, %v2131
    %v2134 = vunpack.c.l.s4 1966171168
    %v2135 = vunpack.c.0.s8 %v2134
    %v2136 = vlaneseq
    %v2137 = vshrl.u32 %v2136, 7
    %v2138 = vsub.s32 %v2135, %v2137
    %v2139 = vrot.slane %v2123, %v2138
    %v2141 = vunpack.c.l.s4 1966171168
    %v2142 = vunpack.c.0.s8 %v2141
    %v2143 = vlaneseq
    %v2144 = vshrl.u32 %v2143, 7
    %v2145 = vsub.s32 %v2142, %v2144
    %v2146 = vrot.slane %v2124, %v2145
    %v2148 = vunpack.c.l.s4 1966171168
    %v2149 = vunpack.c.0.s8 %v2148
    %v2150 = vlaneseq
    %v2151 = vshrl.u32 %v2150, 7
    %v2152 = vsub.s32 %v2149, %v2151
    %v2153 = vrot.slane %v2125, %v2152
    %v2154 = vcombine.high %v2132, %v2132
    %v2155 = vcombine.high %v2139, %v2139
    %v2156 = vcombine.high %v2146, %v2146
    %v2157 = vcombine.high %v2153, %v2153
    %v2158 = vcombine.high %v1990, %v1990
    %v2160 = vunpack.c.l.s4 1966171168
    %v2161 = vunpack.c.0.s8 %v2160
    %v2162 = vlaneseq
    %v2163 = vshrl.u32 %v2162, 7
    %v2164 = vsub.s32 %v2161, %v2163
    %v2165 = vrot.slane %v1990, %v2164
    %v2167 = vunpack.c.l.s4 1966171168
    %v2168 = vunpack.c.0.s8 %v2167
    %v2169 = vlaneseq
    %v2170 = vshrl.u32 %v2169, 7
    %v2171 = vsub.s32 %v2168, %v2170
    %v2172 = vrot.slane %v2158, %v2171
    %v2173 = vcombine.high %v2165, %v2165
    %v2174 = vcombine.high %v2172, %v2172
    %v2176 = vunpack.c.l.s4 1966171168
    %v2177 = vunpack.c.0.s8 %v2176
    %v2178 = vlaneseq
    %v2179 = vshrl.u32 %v2178, 7
    %v2180 = vsub.s32 %v2177, %v2179
    %v2181 = vrot.slane %v2165, %v2180
    %v2183 = vunpack.c.l.s4 1966171168
    %v2184 = vunpack.c.0.s8 %v2183
    %v2185 = vlaneseq
    %v2186 = vshrl.u32 %v2185, 7
    %v2187 = vsub.s32 %v2184, %v2186
    %v2188 = vrot.slane %v2172, %v2187
    %v2190 = vunpack.c.l.s4 1966171168
    %v2191 = vunpack.c.0.s8 %v2190
    %v2192 = vlaneseq
    %v2193 = vshrl.u32 %v2192, 7
    %v2194 = vsub.s32 %v2191, %v2193
    %v2195 = vrot.slane %v2173, %v2194
    %v2197 = vunpack.c.l.s4 1966171168
    %v2198 = vunpack.c.0.s8 %v2197
    %v2199 = vlaneseq
    %v2200 = vshrl.u32 %v2199, 7
    %v2201 = vsub.s32 %v2198, %v2200
    %v2202 = vrot.slane %v2174, %v2201
    %v2203 = vcombine.high %v2181, %v2181
    %v2204 = vcombine.high %v2188, %v2188
    %v2205 = vcombine.high %v2195, %v2195
    %v2206 = vcombine.high %v2202, %v2202
    %v2207 = vcombine.high %v1991, %v1991
    %v2209 = vunpack.c.l.s4 1966171168
    %v2210 = vunpack.c.0.s8 %v2209
    %v2211 = vlaneseq
    %v2212 = vshrl.u32 %v2211, 7
    %v2213 = vsub.s32 %v2210, %v2212
    %v2214 = vrot.slane %v1991, %v2213
    %v2216 = vunpack.c.l.s4 1966171168
    %v2217 = vunpack.c.0.s8 %v2216
    %v2218 = vlaneseq
    %v2219 = vshrl.u32 %v2218, 7
    %v2220 = vsub.s32 %v2217, %v2219
    %v2221 = vrot.slane %v2207, %v2220
    %v2222 = vcombine.high %v2214, %v2214
    %v2223 = vcombine.high %v2221, %v2221
    %v2225 = vunpack.c.l.s4 1966171168
    %v2226 = vunpack.c.0.s8 %v2225
    %v2227 = vlaneseq
    %v2228 = vshrl.u32 %v2227, 7
    %v2229 = vsub.s32 %v2226, %v2228
    %v2230 = vrot.slane %v2214, %v2229
    %v2232 = vunpack.c.l.s4 1966171168
    %v2233 = vunpack.c.0.s8 %v2232
    %v2234 = vlaneseq
    %v2235 = vshrl.u32 %v2234, 7
    %v2236 = vsub.s32 %v2233, %v2235
    %v2237 = vrot.slane %v2221, %v2236
    %v2239 = vunpack.c.l.s4 1966171168
    %v2240 = vunpack.c.0.s8 %v2239
    %v2241 = vlaneseq
    %v2242 = vshrl.u32 %v2241, 7
    %v2243 = vsub.s32 %v2240, %v2242
    %v2244 = vrot.slane %v2222, %v2243
    %v2246 = vunpack.c.l.s4 1966171168
    %v2247 = vunpack.c.0.s8 %v2246
    %v2248 = vlaneseq
    %v2249 = vshrl.u32 %v2248, 7
    %v2250 = vsub.s32 %v2247, %v2249
    %v2251 = vrot.slane %v2223, %v2250
    %v2252 = vcombine.high %v2230, %v2230
    %v2253 = vcombine.high %v2237, %v2237
    %v2254 = vcombine.high %v2244, %v2244
    %v2255 = vcombine.high %v2251, %v2251
    %v2256 = vcombine.high %v1992, %v1992
    %v2258 = vunpack.c.l.s4 1966171168
    %v2259 = vunpack.c.0.s8 %v2258
    %v2260 = vlaneseq
    %v2261 = vshrl.u32 %v2260, 7
    %v2262 = vsub.s32 %v2259, %v2261
    %v2263 = vrot.slane %v1992, %v2262
    %v2265 = vunpack.c.l.s4 1966171168
    %v2266 = vunpack.c.0.s8 %v2265
    %v2267 = vlaneseq
    %v2268 = vshrl.u32 %v2267, 7
    %v2269 = vsub.s32 %v2266, %v2268
    %v2270 = vrot.slane %v2256, %v2269
    %v2271 = vcombine.high %v2263, %v2263
    %v2272 = vcombine.high %v2270, %v2270
    %v2274 = vunpack.c.l.s4 1966171168
    %v2275 = vunpack.c.0.s8 %v2274
    %v2276 = vlaneseq
    %v2277 = vshrl.u32 %v2276, 7
    %v2278 = vsub.s32 %v2275, %v2277
    %v2279 = vrot.slane %v2263, %v2278
    %v2281 = vunpack.c.l.s4 1966171168
    %v2282 = vunpack.c.0.s8 %v2281
    %v2283 = vlaneseq
    %v2284 = vshrl.u32 %v2283, 7
    %v2285 = vsub.s32 %v2282, %v2284
    %v2286 = vrot.slane %v2270, %v2285
    %v2288 = vunpack.c.l.s4 1966171168
    %v2289 = vunpack.c.0.s8 %v2288
    %v2290 = vlaneseq
    %v2291 = vshrl.u32 %v2290, 7
    %v2292 = vsub.s32 %v2289, %v2291
    %v2293 = vrot.slane %v2271, %v2292
    %v2295 = vunpack.c.l.s4 1966171168
    %v2296 = vunpack.c.0.s8 %v2295
    %v2297 = vlaneseq
    %v2298 = vshrl.u32 %v2297, 7
    %v2299 = vsub.s32 %v2296, %v2298
    %v2300 = vrot.slane %v2272, %v2299
    %v2301 = vcombine.high %v2279, %v2279
    %v2302 = vcombine.high %v2286, %v2286
    %v2303 = vcombine.high %v2293, %v2293
    %v2304 = vcombine.high %v2300, %v2300
    %v2305 = vcombine.high %v1993, %v1993
    %v2307 = vunpack.c.l.s4 1966171168
    %v2308 = vunpack.c.0.s8 %v2307
    %v2309 = vlaneseq
    %v2310 = vshrl.u32 %v2309, 7
    %v2311 = vsub.s32 %v2308, %v2310
    %v2312 = vrot.slane %v1993, %v2311
    %v2314 = vunpack.c.l.s4 1966171168
    %v2315 = vunpack.c.0.s8 %v2314
    %v2316 = vlaneseq
    %v2317 = vshrl.u32 %v2316, 7
    %v2318 = vsub.s32 %v2315, %v2317
    %v2319 = vrot.slane %v2305, %v2318
    %v2320 = vcombine.high %v2312, %v2312
    %v2321 = vcombine.high %v2319, %v2319
    %v2323 = vunpack.c.l.s4 1966171168
    %v2324 = vunpack.c.0.s8 %v2323
    %v2325 = vlaneseq
    %v2326 = vshrl.u32 %v2325, 7
    %v2327 = vsub.s32 %v2324, %v2326
    %v2328 = vrot.slane %v2312, %v2327
    %v2330 = vunpack.c.l.s4 1966171168
    %v2331 = vunpack.c.0.s8 %v2330
    %v2332 = vlaneseq
    %v2333 = vshrl.u32 %v2332, 7
    %v2334 = vsub.s32 %v2331, %v2333
    %v2335 = vrot.slane %v2319, %v2334
    %v2337 = vunpack.c.l.s4 1966171168
    %v2338 = vunpack.c.0.s8 %v2337
    %v2339 = vlaneseq
    %v2340 = vshrl.u32 %v2339, 7
    %v2341 = vsub.s32 %v2338, %v2340
    %v2342 = vrot.slane %v2320, %v2341
    %v2344 = vunpack.c.l.s4 1966171168
    %v2345 = vunpack.c.0.s8 %v2344
    %v2346 = vlaneseq
    %v2347 = vshrl.u32 %v2346, 7
    %v2348 = vsub.s32 %v2345, %v2347
    %v2349 = vrot.slane %v2321, %v2348
    %v2350 = vcombine.high %v2328, %v2328
    %v2351 = vcombine.high %v2335, %v2335
    %v2352 = vcombine.high %v2342, %v2342
    %v2353 = vcombine.high %v2349, %v2349
    %v2354 = vcombine.high %v1994, %v1994
    %v2356 = vunpack.c.l.s4 1966171168
    %v2357 = vunpack.c.0.s8 %v2356
    %v2358 = vlaneseq
    %v2359 = vshrl.u32 %v2358, 7
    %v2360 = vsub.s32 %v2357, %v2359
    %v2361 = vrot.slane %v1994, %v2360
    %v2363 = vunpack.c.l.s4 1966171168
    %v2364 = vunpack.c.0.s8 %v2363
    %v2365 = vlaneseq
    %v2366 = vshrl.u32 %v2365, 7
    %v2367 = vsub.s32 %v2364, %v2366
    %v2368 = vrot.slane %v2354, %v2367
    %v2369 = vcombine.high %v2361, %v2361
    %v2370 = vcombine.high %v2368, %v2368
    %v2372 = vunpack.c.l.s4 1966171168
    %v2373 = vunpack.c.0.s8 %v2372
    %v2374 = vlaneseq
    %v2375 = vshrl.u32 %v2374, 7
    %v2376 = vsub.s32 %v2373, %v2375
    %v2377 = vrot.slane %v2361, %v2376
    %v2379 = vunpack.c.l.s4 1966171168
    %v2380 = vunpack.c.0.s8 %v2379
    %v2381 = vlaneseq
    %v2382 = vshrl.u32 %v2381, 7
    %v2383 = vsub.s32 %v2380, %v2382
    %v2384 = vrot.slane %v2368, %v2383
    %v2386 = vunpack.c.l.s4 1966171168
    %v2387 = vunpack.c.0.s8 %v2386
    %v2388 = vlaneseq
    %v2389 = vshrl.u32 %v2388, 7
    %v2390 = vsub.s32 %v2387, %v2389
    %v2391 = vrot.slane %v2369, %v2390
    %v2393 = vunpack.c.l.s4 1966171168
    %v2394 = vunpack.c.0.s8 %v2393
    %v2395 = vlaneseq
    %v2396 = vshrl.u32 %v2395, 7
    %v2397 = vsub.s32 %v2394, %v2396
    %v2398 = vrot.slane %v2370, %v2397
    %v2399 = vcombine.high %v2377, %v2377
    %v2400 = vcombine.high %v2384, %v2384
    %v2401 = vcombine.high %v2391, %v2391
    %v2402 = vcombine.high %v2398, %v2398
    %v2403 = vld [vmem:[%s5] sm:$0xf]
    %v2404 = vld [vmem:[%s5 + $0x4] sm:$0xf]
    %v2405 = vld [vmem:[%s5 + $0x8] sm:$0xf]
    %v2406 = vld [vmem:[%s5 + $0xc] sm:$0xf]
    %v2407 = vld [vmem:[%s5 + $0x10] sm:$0xf]
    %v2408 = vld [vmem:[%s5 + $0x14] sm:$0xf]
    %v2409 = vld [vmem:[%s5 + $0x18] sm:$0xf]
    %v2410 = vld [vmem:[%s5 + $0x1c] sm:$0xf]
    %v2411 = vld [vmem:[%s5 + $0x20] sm:$0xf]
    %v2412 = vld [vmem:[%s5 + $0x24] sm:$0xf]
    %v2413 = vld [vmem:[%s5 + $0x28] sm:$0xf]
    %v2414 = vld [vmem:[%s5 + $0x2c] sm:$0xf]
    %v2415 = vld [vmem:[%s5 + $0x30] sm:$0xf]
    %v2416 = vld [vmem:[%s5 + $0x34] sm:$0xf]
    %v2417 = vld [vmem:[%s5 + $0x38] sm:$0xf]
    %v2418 = vld [vmem:[%s5 + $0x3c] sm:$0xf]
    %v2419 = vld [vmem:[%s5 + $0x40] sm:$0xf]
    %v2420 = vld [vmem:[%s5 + $0x44] sm:$0xf]
    %v2421 = vld [vmem:[%s5 + $0x48] sm:$0xf]
    %v2422 = vld [vmem:[%s5 + $0x4c] sm:$0xf]
    %v2423 = vld [vmem:[%s5 + $0x50] sm:$0xf]
    %v2424 = vld [vmem:[%s5 + $0x54] sm:$0xf]
    %v2425 = vld [vmem:[%s5 + $0x58] sm:$0xf]
    %v2426 = vld [vmem:[%s5 + $0x5c] sm:$0xf]
    %v2427 = vld [vmem:[%s5 + $0x60] sm:$0xf]
    %v2428 = vld [vmem:[%s5 + $0x64] sm:$0xf]
    %v2429 = vld [vmem:[%s5 + $0x68] sm:$0xf]
    %v2430 = vld [vmem:[%s5 + $0x6c] sm:$0xf]
    %v2431 = vld [vmem:[%s5 + $0x70] sm:$0xf]
    %v2432 = vld [vmem:[%s5 + $0x74] sm:$0xf]
    %v2433 = vld [vmem:[%s5 + $0x78] sm:$0xf]
    %v2434 = vld [vmem:[%s5 + $0x7c] sm:$0xf]
    %v2435 = vld [vmem:[%s5 + $0x80] sm:$0xf]
    %v2436 = vld [vmem:[%s5 + $0x84] sm:$0xf]
    %v2437 = vld [vmem:[%s5 + $0x88] sm:$0xf]
    %v2438 = vld [vmem:[%s5 + $0x8c] sm:$0xf]
    %v2439 = vld [vmem:[%s5 + $0x90] sm:$0xf]
    %v2440 = vld [vmem:[%s5 + $0x94] sm:$0xf]
    %v2441 = vld [vmem:[%s5 + $0x98] sm:$0xf]
    %v2442 = vld [vmem:[%s5 + $0x9c] sm:$0xf]
    %v2443 = vld [vmem:[%s5 + $0xa0] sm:$0xf]
    %v2444 = vld [vmem:[%s5 + $0xa4] sm:$0xf]
    %v2445 = vld [vmem:[%s5 + $0xa8] sm:$0xf]
    %v2446 = vld [vmem:[%s5 + $0xac] sm:$0xf]
    %v2447 = vld [vmem:[%s5 + $0xb0] sm:$0xf]
    %v2448 = vld [vmem:[%s5 + $0xb4] sm:$0xf]
    %v2449 = vld [vmem:[%s5 + $0xb8] sm:$0xf]
    %v2450 = vld [vmem:[%s5 + $0xbc] sm:$0xf]
    %v2451 = vld [vmem:[%s5 + $0xc0] sm:$0xf]
    %v2452 = vld [vmem:[%s5 + $0xc4] sm:$0xf]
    %v2453 = vld [vmem:[%s5 + $0xc8] sm:$0xf]
    %v2454 = vld [vmem:[%s5 + $0xcc] sm:$0xf]
    %v2455 = vld [vmem:[%s5 + $0xd0] sm:$0xf]
    %v2456 = vld [vmem:[%s5 + $0xd4] sm:$0xf]
    %v2457 = vld [vmem:[%s5 + $0xd8] sm:$0xf]
    %v2458 = vld [vmem:[%s5 + $0xdc] sm:$0xf]
    %v2459 = vld [vmem:[%s5 + $0xe0] sm:$0xf]
    %v2460 = vld [vmem:[%s5 + $0xe4] sm:$0xf]
    %v2461 = vld [vmem:[%s5 + $0xe8] sm:$0xf]
    %v2462 = vld [vmem:[%s5 + $0xec] sm:$0xf]
    %v2463 = vld [vmem:[%s5 + $0xf0] sm:$0xf]
    %v2464 = vld [vmem:[%s5 + $0xf4] sm:$0xf]
    %v2465 = vld [vmem:[%s5 + $0xf8] sm:$0xf]
    %v2466 = vld [vmem:[%s5 + $0xfc] sm:$0xf]
    %v2467 = vunpack.c.l.bf16 %v2403
    %v2468 = vunpack.c.l.bf16 %v2404
    %v2469 = vunpack.c.l.bf16 %v2405
    %v2470 = vunpack.c.l.bf16 %v2406
    %v2471 = vunpack.c.l.bf16 %v2407
    %v2472 = vunpack.c.l.bf16 %v2408
    %v2473 = vunpack.c.l.bf16 %v2409
    %v2474 = vunpack.c.l.bf16 %v2410
    %v2475 = vunpack.c.l.bf16 %v2411
    %v2476 = vunpack.c.l.bf16 %v2412
    %v2477 = vunpack.c.l.bf16 %v2413
    %v2478 = vunpack.c.l.bf16 %v2414
    %v2479 = vunpack.c.l.bf16 %v2415
    %v2480 = vunpack.c.l.bf16 %v2416
    %v2481 = vunpack.c.l.bf16 %v2417
    %v2482 = vunpack.c.l.bf16 %v2418
    %v2483 = vunpack.c.l.bf16 %v2419
    %v2484 = vunpack.c.l.bf16 %v2420
    %v2485 = vunpack.c.l.bf16 %v2421
    %v2486 = vunpack.c.l.bf16 %v2422
    %v2487 = vunpack.c.l.bf16 %v2423
    %v2488 = vunpack.c.l.bf16 %v2424
    %v2489 = vunpack.c.l.bf16 %v2425
    %v2490 = vunpack.c.l.bf16 %v2426
    %v2491 = vunpack.c.l.bf16 %v2427
    %v2492 = vunpack.c.l.bf16 %v2428
    %v2493 = vunpack.c.l.bf16 %v2429
    %v2494 = vunpack.c.l.bf16 %v2430
    %v2495 = vunpack.c.l.bf16 %v2431
    %v2496 = vunpack.c.l.bf16 %v2432
    %v2497 = vunpack.c.l.bf16 %v2433
    %v2498 = vunpack.c.l.bf16 %v2434
    %v2499 = vunpack.c.l.bf16 %v2435
    %v2500 = vunpack.c.l.bf16 %v2436
    %v2501 = vunpack.c.l.bf16 %v2437
    %v2502 = vunpack.c.l.bf16 %v2438
    %v2503 = vunpack.c.l.bf16 %v2439
    %v2504 = vunpack.c.l.bf16 %v2440
    %v2505 = vunpack.c.l.bf16 %v2441
    %v2506 = vunpack.c.l.bf16 %v2442
    %v2507 = vunpack.c.l.bf16 %v2443
    %v2508 = vunpack.c.l.bf16 %v2444
    %v2509 = vunpack.c.l.bf16 %v2445
    %v2510 = vunpack.c.l.bf16 %v2446
    %v2511 = vunpack.c.l.bf16 %v2447
    %v2512 = vunpack.c.l.bf16 %v2448
    %v2513 = vunpack.c.l.bf16 %v2449
    %v2514 = vunpack.c.l.bf16 %v2450
    %v2515 = vunpack.c.l.bf16 %v2451
    %v2516 = vunpack.c.l.bf16 %v2452
    %v2517 = vunpack.c.l.bf16 %v2453
    %v2518 = vunpack.c.l.bf16 %v2454
    %v2519 = vunpack.c.l.bf16 %v2455
    %v2520 = vunpack.c.l.bf16 %v2456
    %v2521 = vunpack.c.l.bf16 %v2457
    %v2522 = vunpack.c.l.bf16 %v2458
    %v2523 = vunpack.c.l.bf16 %v2459
    %v2524 = vunpack.c.l.bf16 %v2460
    %v2525 = vunpack.c.l.bf16 %v2461
    %v2526 = vunpack.c.l.bf16 %v2462
    %v2527 = vunpack.c.l.bf16 %v2463
    %v2528 = vunpack.c.l.bf16 %v2464
    %v2529 = vunpack.c.l.bf16 %v2465
    %v2530 = vunpack.c.l.bf16 %v2466
    %v2531 = vlaneseq
    %v2532 = vshrl.u32 %v2531, 7
    %v2533 = vsub.s32 0, %v2532
    %v2534 = vrot.slane %v2034, %v2533
    %v2535 = vlaneseq
    %v2536 = vshrl.u32 %v2535, 7
    %v2537 = vsub.s32 0, %v2536
    %v2538 = vrot.slane %v2048, %v2537
    %v2539 = vlaneseq
    %v2540 = vshrl.u32 %v2539, 7
    %v2541 = vsub.s32 0, %v2540
    %v2542 = vrot.slane %v2056, %v2541
    %v2543 = vlaneseq
    %v2544 = vshrl.u32 %v2543, 7
    %v2545 = vsub.s32 0, %v2544
    %v2546 = vrot.slane %v2058, %v2545
    %v2547 = vlaneseq
    %v2548 = vshrl.u32 %v2547, 7
    %v2549 = vsub.s32 0, %v2548
    %v2550 = vrot.slane %v2041, %v2549
    %v2551 = vlaneseq
    %v2552 = vshrl.u32 %v2551, 7
    %v2553 = vsub.s32 0, %v2552
    %v2554 = vrot.slane %v2055, %v2553
    %v2555 = vlaneseq
    %v2556 = vshrl.u32 %v2555, 7
    %v2557 = vsub.s32 0, %v2556
    %v2558 = vrot.slane %v2057, %v2557
    %v2559 = vlaneseq
    %v2560 = vshrl.u32 %v2559, 7
    %v2561 = vsub.s32 0, %v2560
    %v2562 = vrot.slane %v2059, %v2561
    %v2563 = vlaneseq
    %v2564 = vshrl.u32 %v2563, 7
    %v2565 = vsub.s32 0, %v2564
    %v2566 = vrot.slane %v2083, %v2565
    %v2567 = vlaneseq
    %v2568 = vshrl.u32 %v2567, 7
    %v2569 = vsub.s32 0, %v2568
    %v2570 = vrot.slane %v2097, %v2569
    %v2571 = vlaneseq
    %v2572 = vshrl.u32 %v2571, 7
    %v2573 = vsub.s32 0, %v2572
    %v2574 = vrot.slane %v2105, %v2573
    %v2575 = vlaneseq
    %v2576 = vshrl.u32 %v2575, 7
    %v2577 = vsub.s32 0, %v2576
    %v2578 = vrot.slane %v2107, %v2577
    %v2579 = vlaneseq
    %v2580 = vshrl.u32 %v2579, 7
    %v2581 = vsub.s32 0, %v2580
    %v2582 = vrot.slane %v2090, %v2581
    %v2583 = vlaneseq
    %v2584 = vshrl.u32 %v2583, 7
    %v2585 = vsub.s32 0, %v2584
    %v2586 = vrot.slane %v2104, %v2585
    %v2587 = vlaneseq
    %v2588 = vshrl.u32 %v2587, 7
    %v2589 = vsub.s32 0, %v2588
    %v2590 = vrot.slane %v2106, %v2589
    %v2591 = vlaneseq
    %v2592 = vshrl.u32 %v2591, 7
    %v2593 = vsub.s32 0, %v2592
    %v2594 = vrot.slane %v2108, %v2593
    %v2595 = vlaneseq
    %v2596 = vshrl.u32 %v2595, 7
    %v2597 = vsub.s32 0, %v2596
    %v2598 = vrot.slane %v2132, %v2597
    %v2599 = vlaneseq
    %v2600 = vshrl.u32 %v2599, 7
    %v2601 = vsub.s32 0, %v2600
    %v2602 = vrot.slane %v2146, %v2601
    %v2603 = vlaneseq
    %v2604 = vshrl.u32 %v2603, 7
    %v2605 = vsub.s32 0, %v2604
    %v2606 = vrot.slane %v2154, %v2605
    %v2607 = vlaneseq
    %v2608 = vshrl.u32 %v2607, 7
    %v2609 = vsub.s32 0, %v2608
    %v2610 = vrot.slane %v2156, %v2609
    %v2611 = vlaneseq
    %v2612 = vshrl.u32 %v2611, 7
    %v2613 = vsub.s32 0, %v2612
    %v2614 = vrot.slane %v2139, %v2613
    %v2615 = vlaneseq
    %v2616 = vshrl.u32 %v2615, 7
    %v2617 = vsub.s32 0, %v2616
    %v2618 = vrot.slane %v2153, %v2617
    %v2619 = vlaneseq
    %v2620 = vshrl.u32 %v2619, 7
    %v2621 = vsub.s32 0, %v2620
    %v2622 = vrot.slane %v2155, %v2621
    %v2623 = vlaneseq
    %v2624 = vshrl.u32 %v2623, 7
    %v2625 = vsub.s32 0, %v2624
    %v2626 = vrot.slane %v2157, %v2625
    %v2627 = vlaneseq
    %v2628 = vshrl.u32 %v2627, 7
    %v2629 = vsub.s32 0, %v2628
    %v2630 = vrot.slane %v2181, %v2629
    %v2631 = vlaneseq
    %v2632 = vshrl.u32 %v2631, 7
    %v2633 = vsub.s32 0, %v2632
    %v2634 = vrot.slane %v2195, %v2633
    %v2635 = vlaneseq
    %v2636 = vshrl.u32 %v2635, 7
    %v2637 = vsub.s32 0, %v2636
    %v2638 = vrot.slane %v2203, %v2637
    %v2639 = vlaneseq
    %v2640 = vshrl.u32 %v2639, 7
    %v2641 = vsub.s32 0, %v2640
    %v2642 = vrot.slane %v2205, %v2641
    %v2643 = vlaneseq
    %v2644 = vshrl.u32 %v2643, 7
    %v2645 = vsub.s32 0, %v2644
    %v2646 = vrot.slane %v2188, %v2645
    %v2647 = vlaneseq
    %v2648 = vshrl.u32 %v2647, 7
    %v2649 = vsub.s32 0, %v2648
    %v2650 = vrot.slane %v2202, %v2649
    %v2651 = vlaneseq
    %v2652 = vshrl.u32 %v2651, 7
    %v2653 = vsub.s32 0, %v2652
    %v2654 = vrot.slane %v2204, %v2653
    %v2655 = vlaneseq
    %v2656 = vshrl.u32 %v2655, 7
    %v2657 = vsub.s32 0, %v2656
    %v2658 = vrot.slane %v2206, %v2657
    %v2659 = vlaneseq
    %v2660 = vshrl.u32 %v2659, 7
    %v2661 = vsub.s32 0, %v2660
    %v2662 = vrot.slane %v2230, %v2661
    %v2663 = vlaneseq
    %v2664 = vshrl.u32 %v2663, 7
    %v2665 = vsub.s32 0, %v2664
    %v2666 = vrot.slane %v2244, %v2665
    %v2667 = vlaneseq
    %v2668 = vshrl.u32 %v2667, 7
    %v2669 = vsub.s32 0, %v2668
    %v2670 = vrot.slane %v2252, %v2669
    %v2671 = vlaneseq
    %v2672 = vshrl.u32 %v2671, 7
    %v2673 = vsub.s32 0, %v2672
    %v2674 = vrot.slane %v2254, %v2673
    %v2675 = vlaneseq
    %v2676 = vshrl.u32 %v2675, 7
    %v2677 = vsub.s32 0, %v2676
    %v2678 = vrot.slane %v2237, %v2677
    %v2679 = vlaneseq
    %v2680 = vshrl.u32 %v2679, 7
    %v2681 = vsub.s32 0, %v2680
    %v2682 = vrot.slane %v2251, %v2681
    %v2683 = vlaneseq
    %v2684 = vshrl.u32 %v2683, 7
    %v2685 = vsub.s32 0, %v2684
    %v2686 = vrot.slane %v2253, %v2685
    %v2687 = vlaneseq
    %v2688 = vshrl.u32 %v2687, 7
    %v2689 = vsub.s32 0, %v2688
    %v2690 = vrot.slane %v2255, %v2689
    %v2691 = vlaneseq
    %v2692 = vshrl.u32 %v2691, 7
    %v2693 = vsub.s32 0, %v2692
    %v2694 = vrot.slane %v2279, %v2693
    %v2695 = vlaneseq
    %v2696 = vshrl.u32 %v2695, 7
    %v2697 = vsub.s32 0, %v2696
    %v2698 = vrot.slane %v2293, %v2697
    %v2699 = vlaneseq
    %v2700 = vshrl.u32 %v2699, 7
    %v2701 = vsub.s32 0, %v2700
    %v2702 = vrot.slane %v2301, %v2701
    %v2703 = vlaneseq
    %v2704 = vshrl.u32 %v2703, 7
    %v2705 = vsub.s32 0, %v2704
    %v2706 = vrot.slane %v2303, %v2705
    %v2707 = vlaneseq
    %v2708 = vshrl.u32 %v2707, 7
    %v2709 = vsub.s32 0, %v2708
    %v2710 = vrot.slane %v2286, %v2709
    %v2711 = vlaneseq
    %v2712 = vshrl.u32 %v2711, 7
    %v2713 = vsub.s32 0, %v2712
    %v2714 = vrot.slane %v2300, %v2713
    %v2715 = vlaneseq
    %v2716 = vshrl.u32 %v2715, 7
    %v2717 = vsub.s32 0, %v2716
    %v2718 = vrot.slane %v2302, %v2717
    %v2719 = vlaneseq
    %v2720 = vshrl.u32 %v2719, 7
    %v2721 = vsub.s32 0, %v2720
    %v2722 = vrot.slane %v2304, %v2721
    %v2723 = vlaneseq
    %v2724 = vshrl.u32 %v2723, 7
    %v2725 = vsub.s32 0, %v2724
    %v2726 = vrot.slane %v2328, %v2725
    %v2727 = vlaneseq
    %v2728 = vshrl.u32 %v2727, 7
    %v2729 = vsub.s32 0, %v2728
    %v2730 = vrot.slane %v2342, %v2729
    %v2731 = vlaneseq
    %v2732 = vshrl.u32 %v2731, 7
    %v2733 = vsub.s32 0, %v2732
    %v2734 = vrot.slane %v2350, %v2733
    %v2735 = vlaneseq
    %v2736 = vshrl.u32 %v2735, 7
    %v2737 = vsub.s32 0, %v2736
    %v2738 = vrot.slane %v2352, %v2737
    %v2739 = vlaneseq
    %v2740 = vshrl.u32 %v2739, 7
    %v2741 = vsub.s32 0, %v2740
    %v2742 = vrot.slane %v2335, %v2741
    %v2743 = vlaneseq
    %v2744 = vshrl.u32 %v2743, 7
    %v2745 = vsub.s32 0, %v2744
    %v2746 = vrot.slane %v2349, %v2745
    %v2747 = vlaneseq
    %v2748 = vshrl.u32 %v2747, 7
    %v2749 = vsub.s32 0, %v2748
    %v2750 = vrot.slane %v2351, %v2749
    %v2751 = vlaneseq
    %v2752 = vshrl.u32 %v2751, 7
    %v2753 = vsub.s32 0, %v2752
    %v2754 = vrot.slane %v2353, %v2753
    %v2755 = vlaneseq
    %v2756 = vshrl.u32 %v2755, 7
    %v2757 = vsub.s32 0, %v2756
    %v2758 = vrot.slane %v2377, %v2757
    %v2759 = vlaneseq
    %v2760 = vshrl.u32 %v2759, 7
    %v2761 = vsub.s32 0, %v2760
    %v2762 = vrot.slane %v2391, %v2761
    %v2763 = vlaneseq
    %v2764 = vshrl.u32 %v2763, 7
    %v2765 = vsub.s32 0, %v2764
    %v2766 = vrot.slane %v2399, %v2765
    %v2767 = vlaneseq
    %v2768 = vshrl.u32 %v2767, 7
    %v2769 = vsub.s32 0, %v2768
    %v2770 = vrot.slane %v2401, %v2769
    %v2771 = vlaneseq
    %v2772 = vshrl.u32 %v2771, 7
    %v2773 = vsub.s32 0, %v2772
    %v2774 = vrot.slane %v2384, %v2773
    %v2775 = vlaneseq
    %v2776 = vshrl.u32 %v2775, 7
    %v2777 = vsub.s32 0, %v2776
    %v2778 = vrot.slane %v2398, %v2777
    %v2779 = vlaneseq
    %v2780 = vshrl.u32 %v2779, 7
    %v2781 = vsub.s32 0, %v2780
    %v2782 = vrot.slane %v2400, %v2781
    %v2783 = vlaneseq
    %v2784 = vshrl.u32 %v2783, 7
    %v2785 = vsub.s32 0, %v2784
    %v2786 = vrot.slane %v2402, %v2785
    %v2851 = vmul.f32 %v2534, %v2467
    %v2852 = vmul.f32 %v2538, %v2468
    %v2853 = vmul.f32 %v2542, %v2469
    %v2854 = vmul.f32 %v2546, %v2470
    %v2855 = vmul.f32 %v2550, %v2471
    %v2856 = vmul.f32 %v2554, %v2472
    %v2857 = vmul.f32 %v2558, %v2473
    %v2858 = vmul.f32 %v2562, %v2474
    %v2859 = vmul.f32 %v2566, %v2475
    %v2860 = vmul.f32 %v2570, %v2476
    %v2861 = vmul.f32 %v2574, %v2477
    %v2862 = vmul.f32 %v2578, %v2478
    %v2863 = vmul.f32 %v2582, %v2479
    %v2864 = vmul.f32 %v2586, %v2480
    %v2865 = vmul.f32 %v2590, %v2481
    %v2866 = vmul.f32 %v2594, %v2482
    %v2867 = vmul.f32 %v2598, %v2483
    %v2868 = vmul.f32 %v2602, %v2484
    %v2869 = vmul.f32 %v2606, %v2485
    %v2870 = vmul.f32 %v2610, %v2486
    %v2871 = vmul.f32 %v2614, %v2487
    %v2872 = vmul.f32 %v2618, %v2488
    %v2873 = vmul.f32 %v2622, %v2489
    %v2874 = vmul.f32 %v2626, %v2490
    %v2875 = vmul.f32 %v2630, %v2491
    %v2876 = vmul.f32 %v2634, %v2492
    %v2877 = vmul.f32 %v2638, %v2493
    %v2878 = vmul.f32 %v2642, %v2494
    %v2879 = vmul.f32 %v2646, %v2495
    %v2880 = vmul.f32 %v2650, %v2496
    %v2881 = vmul.f32 %v2654, %v2497
    %v2882 = vmul.f32 %v2658, %v2498
    %v2883 = vmul.f32 %v2662, %v2499
    %v2884 = vmul.f32 %v2666, %v2500
    %v2885 = vmul.f32 %v2670, %v2501
    %v2886 = vmul.f32 %v2674, %v2502
    %v2887 = vmul.f32 %v2678, %v2503
    %v2888 = vmul.f32 %v2682, %v2504
    %v2889 = vmul.f32 %v2686, %v2505
    %v2890 = vmul.f32 %v2690, %v2506
    %v2891 = vmul.f32 %v2694, %v2507
    %v2892 = vmul.f32 %v2698, %v2508
    %v2893 = vmul.f32 %v2702, %v2509
    %v2894 = vmul.f32 %v2706, %v2510
    %v2895 = vmul.f32 %v2710, %v2511
    %v2896 = vmul.f32 %v2714, %v2512
    %v2897 = vmul.f32 %v2718, %v2513
    %v2898 = vmul.f32 %v2722, %v2514
    %v2899 = vmul.f32 %v2726, %v2515
    %v2900 = vmul.f32 %v2730, %v2516
    %v2901 = vmul.f32 %v2734, %v2517
    %v2902 = vmul.f32 %v2738, %v2518
    %v2903 = vmul.f32 %v2742, %v2519
    %v2904 = vmul.f32 %v2746, %v2520
    %v2905 = vmul.f32 %v2750, %v2521
    %v2906 = vmul.f32 %v2754, %v2522
    %v2907 = vmul.f32 %v2758, %v2523
    %v2908 = vmul.f32 %v2762, %v2524
    %v2909 = vmul.f32 %v2766, %v2525
    %v2910 = vmul.f32 %v2770, %v2526
    %v2911 = vmul.f32 %v2774, %v2527
    %v2912 = vmul.f32 %v2778, %v2528
    %v2913 = vmul.f32 %v2782, %v2529
    %v2914 = vmul.f32 %v2786, %v2530
    %v2915 = vsel %vm921, %v2851, 0.0
    %2916 = vadd.xlane.f32.xlu0 %v2915
    %v2917 = vpop.xlane.xlu0 %2916
    %v2918 = vsel %vm921, %v2852, 0.0
    %2919 = vadd.xlane.f32.xlu0 %v2918
    %v2920 = vpop.xlane.xlu0 %2919
    %v2921 = vsel %vm921, %v2853, 0.0
    %2922 = vadd.xlane.f32.xlu0 %v2921
    %v2923 = vpop.xlane.xlu0 %2922
    %v2924 = vsel %vm921, %v2854, 0.0
    %2925 = vadd.xlane.f32.xlu0 %v2924
    %v2926 = vpop.xlane.xlu0 %2925
    %v2927 = vsel %vm921, %v2855, 0.0
    %2928 = vadd.xlane.f32.xlu0 %v2927
    %v2929 = vpop.xlane.xlu0 %2928
    %v2930 = vsel %vm921, %v2856, 0.0
    %2931 = vadd.xlane.f32.xlu0 %v2930
    %v2932 = vpop.xlane.xlu0 %2931
    %v2933 = vsel %vm921, %v2857, 0.0
    %2934 = vadd.xlane.f32.xlu0 %v2933
    %v2935 = vpop.xlane.xlu0 %2934
    %v2936 = vsel %vm921, %v2858, 0.0
    %2937 = vadd.xlane.f32.xlu0 %v2936
    %v2938 = vpop.xlane.xlu0 %2937
    %v2939 = vsel %vm921, %v2859, 0.0
    %2940 = vadd.xlane.f32.xlu0 %v2939
    %v2941 = vpop.xlane.xlu0 %2940
    %v2942 = vsel %vm921, %v2860, 0.0
    %2943 = vadd.xlane.f32.xlu0 %v2942
    %v2944 = vpop.xlane.xlu0 %2943
    %v2945 = vsel %vm921, %v2861, 0.0
    %2946 = vadd.xlane.f32.xlu0 %v2945
    %v2947 = vpop.xlane.xlu0 %2946
    %v2948 = vsel %vm921, %v2862, 0.0
    %2949 = vadd.xlane.f32.xlu0 %v2948
    %v2950 = vpop.xlane.xlu0 %2949
    %v2951 = vsel %vm921, %v2863, 0.0
    %2952 = vadd.xlane.f32.xlu0 %v2951
    %v2953 = vpop.xlane.xlu0 %2952
    %v2954 = vsel %vm921, %v2864, 0.0
    %2955 = vadd.xlane.f32.xlu0 %v2954
    %v2956 = vpop.xlane.xlu0 %2955
    %v2957 = vsel %vm921, %v2865, 0.0
    %2958 = vadd.xlane.f32.xlu0 %v2957
    %v2959 = vpop.xlane.xlu0 %2958
    %v2960 = vsel %vm921, %v2866, 0.0
    %2961 = vadd.xlane.f32.xlu0 %v2960
    %v2962 = vpop.xlane.xlu0 %2961
    %v2963 = vsel %vm921, %v2867, 0.0
    %2964 = vadd.xlane.f32.xlu0 %v2963
    %v2965 = vpop.xlane.xlu0 %2964
    %v2966 = vsel %vm921, %v2868, 0.0
    %2967 = vadd.xlane.f32.xlu0 %v2966
    %v2968 = vpop.xlane.xlu0 %2967
    %v2969 = vsel %vm921, %v2869, 0.0
    %2970 = vadd.xlane.f32.xlu0 %v2969
    %v2971 = vpop.xlane.xlu0 %2970
    %v2972 = vsel %vm921, %v2870, 0.0
    %2973 = vadd.xlane.f32.xlu0 %v2972
    %v2974 = vpop.xlane.xlu0 %2973
    %v2975 = vsel %vm921, %v2871, 0.0
    %2976 = vadd.xlane.f32.xlu0 %v2975
    %v2977 = vpop.xlane.xlu0 %2976
    %v2978 = vsel %vm921, %v2872, 0.0
    %2979 = vadd.xlane.f32.xlu0 %v2978
    %v2980 = vpop.xlane.xlu0 %2979
    %v2981 = vsel %vm921, %v2873, 0.0
    %2982 = vadd.xlane.f32.xlu0 %v2981
    %v2983 = vpop.xlane.xlu0 %2982
    %v2984 = vsel %vm921, %v2874, 0.0
    %2985 = vadd.xlane.f32.xlu0 %v2984
    %v2986 = vpop.xlane.xlu0 %2985
    %v2987 = vsel %vm921, %v2875, 0.0
    %2988 = vadd.xlane.f32.xlu0 %v2987
    %v2989 = vpop.xlane.xlu0 %2988
    %v2990 = vsel %vm921, %v2876, 0.0
    %2991 = vadd.xlane.f32.xlu0 %v2990
    %v2992 = vpop.xlane.xlu0 %2991
    %v2993 = vsel %vm921, %v2877, 0.0
    %2994 = vadd.xlane.f32.xlu0 %v2993
    %v2995 = vpop.xlane.xlu0 %2994
    %v2996 = vsel %vm921, %v2878, 0.0
    %2997 = vadd.xlane.f32.xlu0 %v2996
    %v2998 = vpop.xlane.xlu0 %2997
    %v2999 = vsel %vm921, %v2879, 0.0
    %3000 = vadd.xlane.f32.xlu0 %v2999
    %v3001 = vpop.xlane.xlu0 %3000
    %v3002 = vsel %vm921, %v2880, 0.0
    %3003 = vadd.xlane.f32.xlu0 %v3002
    %v3004 = vpop.xlane.xlu0 %3003
    %v3005 = vsel %vm921, %v2881, 0.0
    %3006 = vadd.xlane.f32.xlu0 %v3005
    %v3007 = vpop.xlane.xlu0 %3006
    %v3008 = vsel %vm921, %v2882, 0.0
    %3009 = vadd.xlane.f32.xlu0 %v3008
    %v3010 = vpop.xlane.xlu0 %3009
    %v3011 = vsel %vm921, %v2883, 0.0
    %3012 = vadd.xlane.f32.xlu0 %v3011
    %v3013 = vpop.xlane.xlu0 %3012
    %v3014 = vsel %vm921, %v2884, 0.0
    %3015 = vadd.xlane.f32.xlu0 %v3014
    %v3016 = vpop.xlane.xlu0 %3015
    %v3017 = vsel %vm921, %v2885, 0.0
    %3018 = vadd.xlane.f32.xlu0 %v3017
    %v3019 = vpop.xlane.xlu0 %3018
    %v3020 = vsel %vm921, %v2886, 0.0
    %3021 = vadd.xlane.f32.xlu0 %v3020
    %v3022 = vpop.xlane.xlu0 %3021
    %v3023 = vsel %vm921, %v2887, 0.0
    %3024 = vadd.xlane.f32.xlu0 %v3023
    %v3025 = vpop.xlane.xlu0 %3024
    %v3026 = vsel %vm921, %v2888, 0.0
    %3027 = vadd.xlane.f32.xlu0 %v3026
    %v3028 = vpop.xlane.xlu0 %3027
    %v3029 = vsel %vm921, %v2889, 0.0
    %3030 = vadd.xlane.f32.xlu0 %v3029
    %v3031 = vpop.xlane.xlu0 %3030
    %v3032 = vsel %vm921, %v2890, 0.0
    %3033 = vadd.xlane.f32.xlu0 %v3032
    %v3034 = vpop.xlane.xlu0 %3033
    %v3035 = vsel %vm921, %v2891, 0.0
    %3036 = vadd.xlane.f32.xlu0 %v3035
    %v3037 = vpop.xlane.xlu0 %3036
    %v3038 = vsel %vm921, %v2892, 0.0
    %3039 = vadd.xlane.f32.xlu0 %v3038
    %v3040 = vpop.xlane.xlu0 %3039
    %v3041 = vsel %vm921, %v2893, 0.0
    %3042 = vadd.xlane.f32.xlu0 %v3041
    %v3043 = vpop.xlane.xlu0 %3042
    %v3044 = vsel %vm921, %v2894, 0.0
    %3045 = vadd.xlane.f32.xlu0 %v3044
    %v3046 = vpop.xlane.xlu0 %3045
    %v3047 = vsel %vm921, %v2895, 0.0
    %3048 = vadd.xlane.f32.xlu0 %v3047
    %v3049 = vpop.xlane.xlu0 %3048
    %v3050 = vsel %vm921, %v2896, 0.0
    %3051 = vadd.xlane.f32.xlu0 %v3050
    %v3052 = vpop.xlane.xlu0 %3051
    %v3053 = vsel %vm921, %v2897, 0.0
    %3054 = vadd.xlane.f32.xlu0 %v3053
    %v3055 = vpop.xlane.xlu0 %3054
    %v3056 = vsel %vm921, %v2898, 0.0
    %3057 = vadd.xlane.f32.xlu0 %v3056
    %v3058 = vpop.xlane.xlu0 %3057
    %v3059 = vsel %vm921, %v2899, 0.0
    %3060 = vadd.xlane.f32.xlu0 %v3059
    %v3061 = vpop.xlane.xlu0 %3060
    %v3062 = vsel %vm921, %v2900, 0.0
    %3063 = vadd.xlane.f32.xlu0 %v3062
    %v3064 = vpop.xlane.xlu0 %3063
    %v3065 = vsel %vm921, %v2901, 0.0
    %3066 = vadd.xlane.f32.xlu0 %v3065
    %v3067 = vpop.xlane.xlu0 %3066
    %v3068 = vsel %vm921, %v2902, 0.0
    %3069 = vadd.xlane.f32.xlu0 %v3068
    %v3070 = vpop.xlane.xlu0 %3069
    %v3071 = vsel %vm921, %v2903, 0.0
    %3072 = vadd.xlane.f32.xlu0 %v3071
    %v3073 = vpop.xlane.xlu0 %3072
    %v3074 = vsel %vm921, %v2904, 0.0
    %3075 = vadd.xlane.f32.xlu0 %v3074
    %v3076 = vpop.xlane.xlu0 %3075
    %v3077 = vsel %vm921, %v2905, 0.0
    %3078 = vadd.xlane.f32.xlu0 %v3077
    %v3079 = vpop.xlane.xlu0 %3078
    %v3080 = vsel %vm921, %v2906, 0.0
    %3081 = vadd.xlane.f32.xlu0 %v3080
    %v3082 = vpop.xlane.xlu0 %3081
    %v3083 = vsel %vm921, %v2907, 0.0
    %3084 = vadd.xlane.f32.xlu0 %v3083
    %v3085 = vpop.xlane.xlu0 %3084
    %v3086 = vsel %vm921, %v2908, 0.0
    %3087 = vadd.xlane.f32.xlu0 %v3086
    %v3088 = vpop.xlane.xlu0 %3087
    %v3089 = vsel %vm921, %v2909, 0.0
    %3090 = vadd.xlane.f32.xlu0 %v3089
    %v3091 = vpop.xlane.xlu0 %3090
    %v3092 = vsel %vm921, %v2910, 0.0
    %3093 = vadd.xlane.f32.xlu0 %v3092
    %v3094 = vpop.xlane.xlu0 %3093
    %v3095 = vsel %vm921, %v2911, 0.0
    %3096 = vadd.xlane.f32.xlu0 %v3095
    %v3097 = vpop.xlane.xlu0 %3096
    %v3098 = vsel %vm921, %v2912, 0.0
    %3099 = vadd.xlane.f32.xlu0 %v3098
    %v3100 = vpop.xlane.xlu0 %3099
    %v3101 = vsel %vm921, %v2913, 0.0
    %3102 = vadd.xlane.f32.xlu0 %v3101
    %v3103 = vpop.xlane.xlu0 %3102
    %v3104 = vsel %vm921, %v2914, 0.0
    %3105 = vadd.xlane.f32.xlu0 %v3104
    %v3106 = vpop.xlane.xlu0 %3105
    %3108 = vrot.lane.b32.xlu0 %v265, 64
    %v3109 = vpop.permute.xlu0 %3108
    %v3118 = vlaneseq
    %v3119 = vand.u32 %v3118, 127
    %v3120 = vlaneseq
    %v3121 = vshrl.u32 %v3120, 7
    %v3122 = vsub.s32 %v3119, %v3121
    %v3123 = vrot.slane %v2917, %v3122
    %v3124 = vlaneseq
    %v3125 = vshrl.u32 %v3124, 7
    %v3126 = vsub.s32 %v3119, %v3125
    %v3127 = vrot.slane %v2920, %v3126
    %v3128 = vlaneseq
    %v3129 = vshrl.u32 %v3128, 7
    %v3130 = vsub.s32 %v3119, %v3129
    %v3131 = vrot.slane %v2923, %v3130
    %v3132 = vlaneseq
    %v3133 = vshrl.u32 %v3132, 7
    %v3134 = vsub.s32 %v3119, %v3133
    %v3135 = vrot.slane %v2926, %v3134
    %v3136 = vlaneseq
    %v3137 = vshrl.u32 %v3136, 7
    %v3138 = vsub.s32 %v3119, %v3137
    %v3139 = vrot.slane %v2929, %v3138
    %v3140 = vlaneseq
    %v3141 = vshrl.u32 %v3140, 7
    %v3142 = vsub.s32 %v3119, %v3141
    %v3143 = vrot.slane %v2932, %v3142
    %v3144 = vlaneseq
    %v3145 = vshrl.u32 %v3144, 7
    %v3146 = vsub.s32 %v3119, %v3145
    %v3147 = vrot.slane %v2935, %v3146
    %v3148 = vlaneseq
    %v3149 = vshrl.u32 %v3148, 7
    %v3150 = vsub.s32 %v3119, %v3149
    %v3151 = vrot.slane %v2938, %v3150
    %v3152 = vsel %vm1381, %v3127, %v3123
    %v3153 = vsel %vm1383, %v3131, %v3152
    %v3154 = vsel %vm1385, %v3135, %v3153
    %v3155 = vsel %vm1387, %v3139, %v3154
    %v3156 = vsel %vm1389, %v3143, %v3155
    %v3157 = vsel %vm1391, %v3147, %v3156
    %v3158 = vsel %vm1393, %v3151, %v3157
    %v3161 = vsel %vm921, %v1995, 0
    %vm3163 = vcmask 1043456
    %v3165 = vsel %vm3163, %v3109, 0
    %3167 = vmatprep.subr.bf16.mxu0 0
    %3168 = vmatpush1.bf16.msra.mxu0 %v3165
    %3169 = vmatprep.subr.bf16.mxu0 0
    %3170 = vmatpush1.bf16.msra.mxu0 0
    %3171 = vmatprep.subr.bf16.mxu0 0
    %3172 = vmatpush1.bf16.msra.mxu0 0
    %3173 = vmatprep.subr.bf16.mxu0 0
    %3174 = vmatpush1.bf16.msra.mxu0 0
    %3175 = vmatprep.subr.bf16.mxu0 0
    %3176 = vmatpush1.bf16.msra.mxu0 0
    %3177 = vmatprep.subr.bf16.mxu0 0
    %3178 = vmatpush1.bf16.msra.mxu0 0
    %3179 = vmatprep.subr.bf16.mxu0 0
    %3180 = vmatpush1.bf16.msra.mxu0 0
    %3181 = vmatprep.subr.bf16.mxu0 0
    %3182 = vmatpush1.bf16.msra.mxu0 0
    %3183 = vmatprep.subr.bf16.mxu0 0
    %3184 = vmatpush1.bf16.msra.mxu0 0
    %3185 = vmatprep.subr.bf16.mxu0 0
    %3186 = vmatpush1.bf16.msra.mxu0 0
    %3187 = vmatprep.subr.bf16.mxu0 0
    %3188 = vmatpush1.bf16.msra.mxu0 0
    %3189 = vmatprep.subr.bf16.mxu0 0
    %3190 = vmatpush1.bf16.msra.mxu0 0
    %3191 = vmatprep.subr.bf16.mxu0 0
    %3192 = vmatpush1.bf16.msra.mxu0 0
    %3193 = vmatprep.subr.bf16.mxu0 0
    %3194 = vmatpush1.bf16.msra.mxu0 0
    %3195 = vmatprep.subr.bf16.mxu0 0
    %3196 = vmatpush1.bf16.msra.mxu0 0
    %3197 = vmatprep.subr.bf16.mxu0 0
    %3198 = vmatpush1.bf16.msra.mxu0 0
    %3199 = vmatprep.mubr.bf16.mxu0 0
    %3200 = vmatmul.mubr.bf16.gmra.mrb[0].mxu0 %v3161
    %v3201 = vpop.f32.mrb[0].mxu0
    %v3202 = vadd.f32 %v3158, %v3201
    %v3203 = vpop.f32.mrb[0].mxu0
    %v3204 = vpop.f32.mrb[0].mxu0
    %v3205 = vpop.f32.mrb[0].mxu0
    %3206 = vdwg.mxu0
    %3208 = vrot.lane.b32.xlu0 %v266, 64
    %v3209 = vpop.permute.xlu0 %3208
    %v3218 = vlaneseq
    %v3219 = vshrl.u32 %v3218, 7
    %v3220 = vsub.s32 %v3119, %v3219
    %v3221 = vrot.slane %v2941, %v3220
    %v3222 = vlaneseq
    %v3223 = vshrl.u32 %v3222, 7
    %v3224 = vsub.s32 %v3119, %v3223
    %v3225 = vrot.slane %v2944, %v3224
    %v3226 = vlaneseq
    %v3227 = vshrl.u32 %v3226, 7
    %v3228 = vsub.s32 %v3119, %v3227
    %v3229 = vrot.slane %v2947, %v3228
    %v3230 = vlaneseq
    %v3231 = vshrl.u32 %v3230, 7
    %v3232 = vsub.s32 %v3119, %v3231
    %v3233 = vrot.slane %v2950, %v3232
    %v3234 = vlaneseq
    %v3235 = vshrl.u32 %v3234, 7
    %v3236 = vsub.s32 %v3119, %v3235
    %v3237 = vrot.slane %v2953, %v3236
    %v3238 = vlaneseq
    %v3239 = vshrl.u32 %v3238, 7
    %v3240 = vsub.s32 %v3119, %v3239
    %v3241 = vrot.slane %v2956, %v3240
    %v3242 = vlaneseq
    %v3243 = vshrl.u32 %v3242, 7
    %v3244 = vsub.s32 %v3119, %v3243
    %v3245 = vrot.slane %v2959, %v3244
    %v3246 = vlaneseq
    %v3247 = vshrl.u32 %v3246, 7
    %v3248 = vsub.s32 %v3119, %v3247
    %v3249 = vrot.slane %v2962, %v3248
    %v3250 = vsel %vm1381, %v3225, %v3221
    %v3251 = vsel %vm1383, %v3229, %v3250
    %v3252 = vsel %vm1385, %v3233, %v3251
    %v3253 = vsel %vm1387, %v3237, %v3252
    %v3254 = vsel %vm1389, %v3241, %v3253
    %v3255 = vsel %vm1391, %v3245, %v3254
    %v3256 = vsel %vm1393, %v3249, %v3255
    %v3259 = vsel %vm921, %v1996, 0
    %v3262 = vsel %vm3163, %v3209, 0
    %3264 = vmatprep.subr.bf16.mxu0 0
    %3265 = vmatpush1.bf16.msra.mxu0 %v3262
    %3266 = vmatprep.subr.bf16.mxu0 0
    %3267 = vmatpush1.bf16.msra.mxu0 0
    %3268 = vmatprep.subr.bf16.mxu0 0
    %3269 = vmatpush1.bf16.msra.mxu0 0
    %3270 = vmatprep.subr.bf16.mxu0 0
    %3271 = vmatpush1.bf16.msra.mxu0 0
    %3272 = vmatprep.subr.bf16.mxu0 0
    %3273 = vmatpush1.bf16.msra.mxu0 0
    %3274 = vmatprep.subr.bf16.mxu0 0
    %3275 = vmatpush1.bf16.msra.mxu0 0
    %3276 = vmatprep.subr.bf16.mxu0 0
    %3277 = vmatpush1.bf16.msra.mxu0 0
    %3278 = vmatprep.subr.bf16.mxu0 0
    %3279 = vmatpush1.bf16.msra.mxu0 0
    %3280 = vmatprep.subr.bf16.mxu0 0
    %3281 = vmatpush1.bf16.msra.mxu0 0
    %3282 = vmatprep.subr.bf16.mxu0 0
    %3283 = vmatpush1.bf16.msra.mxu0 0
    %3284 = vmatprep.subr.bf16.mxu0 0
    %3285 = vmatpush1.bf16.msra.mxu0 0
    %3286 = vmatprep.subr.bf16.mxu0 0
    %3287 = vmatpush1.bf16.msra.mxu0 0
    %3288 = vmatprep.subr.bf16.mxu0 0
    %3289 = vmatpush1.bf16.msra.mxu0 0
    %3290 = vmatprep.subr.bf16.mxu0 0
    %3291 = vmatpush1.bf16.msra.mxu0 0
    %3292 = vmatprep.subr.bf16.mxu0 0
    %3293 = vmatpush1.bf16.msra.mxu0 0
    %3294 = vmatprep.subr.bf16.mxu0 0
    %3295 = vmatpush1.bf16.msra.mxu0 0
    %3296 = vmatprep.mubr.bf16.mxu0 0
    %3297 = vmatmul.mubr.bf16.gmra.mrb[0].mxu0 %v3259
    %v3298 = vpop.f32.mrb[0].mxu0
    %v3299 = vadd.f32 %v3256, %v3298
    %v3300 = vpop.f32.mrb[0].mxu0
    %v3301 = vpop.f32.mrb[0].mxu0
    %v3302 = vpop.f32.mrb[0].mxu0
    %3303 = vdwg.mxu0
    %3305 = vrot.lane.b32.xlu0 %v267, 64
    %v3306 = vpop.permute.xlu0 %3305
    %v3315 = vlaneseq
    %v3316 = vshrl.u32 %v3315, 7
    %v3317 = vsub.s32 %v3119, %v3316
    %v3318 = vrot.slane %v2965, %v3317
    %v3319 = vlaneseq
    %v3320 = vshrl.u32 %v3319, 7
    %v3321 = vsub.s32 %v3119, %v3320
    %v3322 = vrot.slane %v2968, %v3321
    %v3323 = vlaneseq
    %v3324 = vshrl.u32 %v3323, 7
    %v3325 = vsub.s32 %v3119, %v3324
    %v3326 = vrot.slane %v2971, %v3325
    %v3327 = vlaneseq
    %v3328 = vshrl.u32 %v3327, 7
    %v3329 = vsub.s32 %v3119, %v3328
    %v3330 = vrot.slane %v2974, %v3329
    %v3331 = vlaneseq
    %v3332 = vshrl.u32 %v3331, 7
    %v3333 = vsub.s32 %v3119, %v3332
    %v3334 = vrot.slane %v2977, %v3333
    %v3335 = vlaneseq
    %v3336 = vshrl.u32 %v3335, 7
    %v3337 = vsub.s32 %v3119, %v3336
    %v3338 = vrot.slane %v2980, %v3337
    %v3339 = vlaneseq
    %v3340 = vshrl.u32 %v3339, 7
    %v3341 = vsub.s32 %v3119, %v3340
    %v3342 = vrot.slane %v2983, %v3341
    %v3343 = vlaneseq
    %v3344 = vshrl.u32 %v3343, 7
    %v3345 = vsub.s32 %v3119, %v3344
    %v3346 = vrot.slane %v2986, %v3345
    %v3347 = vsel %vm1381, %v3322, %v3318
    %v3348 = vsel %vm1383, %v3326, %v3347
    %v3349 = vsel %vm1385, %v3330, %v3348
    %v3350 = vsel %vm1387, %v3334, %v3349
    %v3351 = vsel %vm1389, %v3338, %v3350
    %v3352 = vsel %vm1391, %v3342, %v3351
    %v3353 = vsel %vm1393, %v3346, %v3352
    %v3356 = vsel %vm921, %v1997, 0
    %v3359 = vsel %vm3163, %v3306, 0
    %3361 = vmatprep.subr.bf16.mxu0 0
    %3362 = vmatpush1.bf16.msra.mxu0 %v3359
    %3363 = vmatprep.subr.bf16.mxu0 0
    %3364 = vmatpush1.bf16.msra.mxu0 0
    %3365 = vmatprep.subr.bf16.mxu0 0
    %3366 = vmatpush1.bf16.msra.mxu0 0
    %3367 = vmatprep.subr.bf16.mxu0 0
    %3368 = vmatpush1.bf16.msra.mxu0 0
    %3369 = vmatprep.subr.bf16.mxu0 0
    %3370 = vmatpush1.bf16.msra.mxu0 0
    %3371 = vmatprep.subr.bf16.mxu0 0
    %3372 = vmatpush1.bf16.msra.mxu0 0
    %3373 = vmatprep.subr.bf16.mxu0 0
    %3374 = vmatpush1.bf16.msra.mxu0 0
    %3375 = vmatprep.subr.bf16.mxu0 0
    %3376 = vmatpush1.bf16.msra.mxu0 0
    %3377 = vmatprep.subr.bf16.mxu0 0
    %3378 = vmatpush1.bf16.msra.mxu0 0
    %3379 = vmatprep.subr.bf16.mxu0 0
    %3380 = vmatpush1.bf16.msra.mxu0 0
    %3381 = vmatprep.subr.bf16.mxu0 0
    %3382 = vmatpush1.bf16.msra.mxu0 0
    %3383 = vmatprep.subr.bf16.mxu0 0
    %3384 = vmatpush1.bf16.msra.mxu0 0
    %3385 = vmatprep.subr.bf16.mxu0 0
    %3386 = vmatpush1.bf16.msra.mxu0 0
    %3387 = vmatprep.subr.bf16.mxu0 0
    %3388 = vmatpush1.bf16.msra.mxu0 0
    %3389 = vmatprep.subr.bf16.mxu0 0
    %3390 = vmatpush1.bf16.msra.mxu0 0
    %3391 = vmatprep.subr.bf16.mxu0 0
    %3392 = vmatpush1.bf16.msra.mxu0 0
    %3393 = vmatprep.mubr.bf16.mxu0 0
    %3394 = vmatmul.mubr.bf16.gmra.mrb[0].mxu0 %v3356
    %v3395 = vpop.f32.mrb[0].mxu0
    %v3396 = vadd.f32 %v3353, %v3395
    %v3397 = vpop.f32.mrb[0].mxu0
    %v3398 = vpop.f32.mrb[0].mxu0
    %v3399 = vpop.f32.mrb[0].mxu0
    %3400 = vdwg.mxu0
    %3402 = vrot.lane.b32.xlu0 %v268, 64
    %v3403 = vpop.permute.xlu0 %3402
    %v3412 = vlaneseq
    %v3413 = vshrl.u32 %v3412, 7
    %v3414 = vsub.s32 %v3119, %v3413
    %v3415 = vrot.slane %v2989, %v3414
    %v3416 = vlaneseq
    %v3417 = vshrl.u32 %v3416, 7
    %v3418 = vsub.s32 %v3119, %v3417
    %v3419 = vrot.slane %v2992, %v3418
    %v3420 = vlaneseq
    %v3421 = vshrl.u32 %v3420, 7
    %v3422 = vsub.s32 %v3119, %v3421
    %v3423 = vrot.slane %v2995, %v3422
    %v3424 = vlaneseq
    %v3425 = vshrl.u32 %v3424, 7
    %v3426 = vsub.s32 %v3119, %v3425
    %v3427 = vrot.slane %v2998, %v3426
    %v3428 = vlaneseq
    %v3429 = vshrl.u32 %v3428, 7
    %v3430 = vsub.s32 %v3119, %v3429
    %v3431 = vrot.slane %v3001, %v3430
    %v3432 = vlaneseq
    %v3433 = vshrl.u32 %v3432, 7
    %v3434 = vsub.s32 %v3119, %v3433
    %v3435 = vrot.slane %v3004, %v3434
    %v3436 = vlaneseq
    %v3437 = vshrl.u32 %v3436, 7
    %v3438 = vsub.s32 %v3119, %v3437
    %v3439 = vrot.slane %v3007, %v3438
    %v3440 = vlaneseq
    %v3441 = vshrl.u32 %v3440, 7
    %v3442 = vsub.s32 %v3119, %v3441
    %v3443 = vrot.slane %v3010, %v3442
    %v3444 = vsel %vm1381, %v3419, %v3415
    %v3445 = vsel %vm1383, %v3423, %v3444
    %v3446 = vsel %vm1385, %v3427, %v3445
    %v3447 = vsel %vm1387, %v3431, %v3446
    %v3448 = vsel %vm1389, %v3435, %v3447
    %v3449 = vsel %vm1391, %v3439, %v3448
    %v3450 = vsel %vm1393, %v3443, %v3449
    %v3453 = vsel %vm921, %v1998, 0
    %v3456 = vsel %vm3163, %v3403, 0
    %3458 = vmatprep.subr.bf16.mxu0 0
    %3459 = vmatpush1.bf16.msra.mxu0 %v3456
    %3460 = vmatprep.subr.bf16.mxu0 0
    %3461 = vmatpush1.bf16.msra.mxu0 0
    %3462 = vmatprep.subr.bf16.mxu0 0
    %3463 = vmatpush1.bf16.msra.mxu0 0
    %3464 = vmatprep.subr.bf16.mxu0 0
    %3465 = vmatpush1.bf16.msra.mxu0 0
    %3466 = vmatprep.subr.bf16.mxu0 0
    %3467 = vmatpush1.bf16.msra.mxu0 0
    %3468 = vmatprep.subr.bf16.mxu0 0
    %3469 = vmatpush1.bf16.msra.mxu0 0
    %3470 = vmatprep.subr.bf16.mxu0 0
    %3471 = vmatpush1.bf16.msra.mxu0 0
    %3472 = vmatprep.subr.bf16.mxu0 0
    %3473 = vmatpush1.bf16.msra.mxu0 0
    %3474 = vmatprep.subr.bf16.mxu0 0
    %3475 = vmatpush1.bf16.msra.mxu0 0
    %3476 = vmatprep.subr.bf16.mxu0 0
    %3477 = vmatpush1.bf16.msra.mxu0 0
    %3478 = vmatprep.subr.bf16.mxu0 0
    %3479 = vmatpush1.bf16.msra.mxu0 0
    %3480 = vmatprep.subr.bf16.mxu0 0
    %3481 = vmatpush1.bf16.msra.mxu0 0
    %3482 = vmatprep.subr.bf16.mxu0 0
    %3483 = vmatpush1.bf16.msra.mxu0 0
    %3484 = vmatprep.subr.bf16.mxu0 0
    %3485 = vmatpush1.bf16.msra.mxu0 0
    %3486 = vmatprep.subr.bf16.mxu0 0
    %3487 = vmatpush1.bf16.msra.mxu0 0
    %3488 = vmatprep.subr.bf16.mxu0 0
    %3489 = vmatpush1.bf16.msra.mxu0 0
    %3490 = vmatprep.mubr.bf16.mxu0 0
    %3491 = vmatmul.mubr.bf16.gmra.mrb[0].mxu0 %v3453
    %v3492 = vpop.f32.mrb[0].mxu0
    %v3493 = vadd.f32 %v3450, %v3492
    %v3494 = vpop.f32.mrb[0].mxu0
    %v3495 = vpop.f32.mrb[0].mxu0
    %v3496 = vpop.f32.mrb[0].mxu0
    %3497 = vdwg.mxu0
    %3499 = vrot.lane.b32.xlu0 %v269, 64
    %v3500 = vpop.permute.xlu0 %3499
    %v3509 = vlaneseq
    %v3510 = vshrl.u32 %v3509, 7
    %v3511 = vsub.s32 %v3119, %v3510
    %v3512 = vrot.slane %v3013, %v3511
    %v3513 = vlaneseq
    %v3514 = vshrl.u32 %v3513, 7
    %v3515 = vsub.s32 %v3119, %v3514
    %v3516 = vrot.slane %v3016, %v3515
    %v3517 = vlaneseq
    %v3518 = vshrl.u32 %v3517, 7
    %v3519 = vsub.s32 %v3119, %v3518
    %v3520 = vrot.slane %v3019, %v3519
    %v3521 = vlaneseq
    %v3522 = vshrl.u32 %v3521, 7
    %v3523 = vsub.s32 %v3119, %v3522
    %v3524 = vrot.slane %v3022, %v3523
    %v3525 = vlaneseq
    %v3526 = vshrl.u32 %v3525, 7
    %v3527 = vsub.s32 %v3119, %v3526
    %v3528 = vrot.slane %v3025, %v3527
    %v3529 = vlaneseq
    %v3530 = vshrl.u32 %v3529, 7
    %v3531 = vsub.s32 %v3119, %v3530
    %v3532 = vrot.slane %v3028, %v3531
    %v3533 = vlaneseq
    %v3534 = vshrl.u32 %v3533, 7
    %v3535 = vsub.s32 %v3119, %v3534
    %v3536 = vrot.slane %v3031, %v3535
    %v3537 = vlaneseq
    %v3538 = vshrl.u32 %v3537, 7
    %v3539 = vsub.s32 %v3119, %v3538
    %v3540 = vrot.slane %v3034, %v3539
    %v3541 = vsel %vm1381, %v3516, %v3512
    %v3542 = vsel %vm1383, %v3520, %v3541
    %v3543 = vsel %vm1385, %v3524, %v3542
    %v3544 = vsel %vm1387, %v3528, %v3543
    %v3545 = vsel %vm1389, %v3532, %v3544
    %v3546 = vsel %vm1391, %v3536, %v3545
    %v3547 = vsel %vm1393, %v3540, %v3546
    %v3550 = vsel %vm921, %v1999, 0
    %v3553 = vsel %vm3163, %v3500, 0
    %3555 = vmatprep.subr.bf16.mxu0 0
    %3556 = vmatpush1.bf16.msra.mxu0 %v3553
    %3557 = vmatprep.subr.bf16.mxu0 0
    %3558 = vmatpush1.bf16.msra.mxu0 0
    %3559 = vmatprep.subr.bf16.mxu0 0
    %3560 = vmatpush1.bf16.msra.mxu0 0
    %3561 = vmatprep.subr.bf16.mxu0 0
    %3562 = vmatpush1.bf16.msra.mxu0 0
    %3563 = vmatprep.subr.bf16.mxu0 0
    %3564 = vmatpush1.bf16.msra.mxu0 0
    %3565 = vmatprep.subr.bf16.mxu0 0
    %3566 = vmatpush1.bf16.msra.mxu0 0
    %3567 = vmatprep.subr.bf16.mxu0 0
    %3568 = vmatpush1.bf16.msra.mxu0 0
    %3569 = vmatprep.subr.bf16.mxu0 0
    %3570 = vmatpush1.bf16.msra.mxu0 0
    %3571 = vmatprep.subr.bf16.mxu0 0
    %3572 = vmatpush1.bf16.msra.mxu0 0
    %3573 = vmatprep.subr.bf16.mxu0 0
    %3574 = vmatpush1.bf16.msra.mxu0 0
    %3575 = vmatprep.subr.bf16.mxu0 0
    %3576 = vmatpush1.bf16.msra.mxu0 0
    %3577 = vmatprep.subr.bf16.mxu0 0
    %3578 = vmatpush1.bf16.msra.mxu0 0
    %3579 = vmatprep.subr.bf16.mxu0 0
    %3580 = vmatpush1.bf16.msra.mxu0 0
    %3581 = vmatprep.subr.bf16.mxu0 0
    %3582 = vmatpush1.bf16.msra.mxu0 0
    %3583 = vmatprep.subr.bf16.mxu0 0
    %3584 = vmatpush1.bf16.msra.mxu0 0
    %3585 = vmatprep.subr.bf16.mxu0 0
    %3586 = vmatpush1.bf16.msra.mxu0 0
    %3587 = vmatprep.mubr.bf16.mxu0 0
    %3588 = vmatmul.mubr.bf16.gmra.mrb[0].mxu0 %v3550
    %v3589 = vpop.f32.mrb[0].mxu0
    %v3590 = vadd.f32 %v3547, %v3589
    %v3591 = vpop.f32.mrb[0].mxu0
    %v3592 = vpop.f32.mrb[0].mxu0
    %v3593 = vpop.f32.mrb[0].mxu0
    %3594 = vdwg.mxu0
    %3596 = vrot.lane.b32.xlu0 %v270, 64
    %v3597 = vpop.permute.xlu0 %3596
    %v3606 = vlaneseq
    %v3607 = vshrl.u32 %v3606, 7
    %v3608 = vsub.s32 %v3119, %v3607
    %v3609 = vrot.slane %v3037, %v3608
    %v3610 = vlaneseq
    %v3611 = vshrl.u32 %v3610, 7
    %v3612 = vsub.s32 %v3119, %v3611
    %v3613 = vrot.slane %v3040, %v3612
    %v3614 = vlaneseq
    %v3615 = vshrl.u32 %v3614, 7
    %v3616 = vsub.s32 %v3119, %v3615
    %v3617 = vrot.slane %v3043, %v3616
    %v3618 = vlaneseq
    %v3619 = vshrl.u32 %v3618, 7
    %v3620 = vsub.s32 %v3119, %v3619
    %v3621 = vrot.slane %v3046, %v3620
    %v3622 = vlaneseq
    %v3623 = vshrl.u32 %v3622, 7
    %v3624 = vsub.s32 %v3119, %v3623
    %v3625 = vrot.slane %v3049, %v3624
    %v3626 = vlaneseq
    %v3627 = vshrl.u32 %v3626, 7
    %v3628 = vsub.s32 %v3119, %v3627
    %v3629 = vrot.slane %v3052, %v3628
    %v3630 = vlaneseq
    %v3631 = vshrl.u32 %v3630, 7
    %v3632 = vsub.s32 %v3119, %v3631
    %v3633 = vrot.slane %v3055, %v3632
    %v3634 = vlaneseq
    %v3635 = vshrl.u32 %v3634, 7
    %v3636 = vsub.s32 %v3119, %v3635
    %v3637 = vrot.slane %v3058, %v3636
    %v3638 = vsel %vm1381, %v3613, %v3609
    %v3639 = vsel %vm1383, %v3617, %v3638
    %v3640 = vsel %vm1385, %v3621, %v3639
    %v3641 = vsel %vm1387, %v3625, %v3640
    %v3642 = vsel %vm1389, %v3629, %v3641
    %v3643 = vsel %vm1391, %v3633, %v3642
    %v3644 = vsel %vm1393, %v3637, %v3643
    %v3647 = vsel %vm921, %v2000, 0
    %v3650 = vsel %vm3163, %v3597, 0
    %3652 = vmatprep.subr.bf16.mxu0 0
    %3653 = vmatpush1.bf16.msra.mxu0 %v3650
    %3654 = vmatprep.subr.bf16.mxu0 0
    %3655 = vmatpush1.bf16.msra.mxu0 0
    %3656 = vmatprep.subr.bf16.mxu0 0
    %3657 = vmatpush1.bf16.msra.mxu0 0
    %3658 = vmatprep.subr.bf16.mxu0 0
    %3659 = vmatpush1.bf16.msra.mxu0 0
    %3660 = vmatprep.subr.bf16.mxu0 0
    %3661 = vmatpush1.bf16.msra.mxu0 0
    %3662 = vmatprep.subr.bf16.mxu0 0
    %3663 = vmatpush1.bf16.msra.mxu0 0
    %3664 = vmatprep.subr.bf16.mxu0 0
    %3665 = vmatpush1.bf16.msra.mxu0 0
    %3666 = vmatprep.subr.bf16.mxu0 0
    %3667 = vmatpush1.bf16.msra.mxu0 0
    %3668 = vmatprep.subr.bf16.mxu0 0
    %3669 = vmatpush1.bf16.msra.mxu0 0
    %3670 = vmatprep.subr.bf16.mxu0 0
    %3671 = vmatpush1.bf16.msra.mxu0 0
    %3672 = vmatprep.subr.bf16.mxu0 0
    %3673 = vmatpush1.bf16.msra.mxu0 0
    %3674 = vmatprep.subr.bf16.mxu0 0
    %3675 = vmatpush1.bf16.msra.mxu0 0
    %3676 = vmatprep.subr.bf16.mxu0 0
    %3677 = vmatpush1.bf16.msra.mxu0 0
    %3678 = vmatprep.subr.bf16.mxu0 0
    %3679 = vmatpush1.bf16.msra.mxu0 0
    %3680 = vmatprep.subr.bf16.mxu0 0
    %3681 = vmatpush1.bf16.msra.mxu0 0
    %3682 = vmatprep.subr.bf16.mxu0 0
    %3683 = vmatpush1.bf16.msra.mxu0 0
    %3684 = vmatprep.mubr.bf16.mxu0 0
    %3685 = vmatmul.mubr.bf16.gmra.mrb[0].mxu0 %v3647
    %v3686 = vpop.f32.mrb[0].mxu0
    %v3687 = vadd.f32 %v3644, %v3686
    %v3688 = vpop.f32.mrb[0].mxu0
    %v3689 = vpop.f32.mrb[0].mxu0
    %v3690 = vpop.f32.mrb[0].mxu0
    %3691 = vdwg.mxu0
    %3693 = vrot.lane.b32.xlu0 %v271, 64
    %v3694 = vpop.permute.xlu0 %3693
    %v3703 = vlaneseq
    %v3704 = vshrl.u32 %v3703, 7
    %v3705 = vsub.s32 %v3119, %v3704
    %v3706 = vrot.slane %v3061, %v3705
    %v3707 = vlaneseq
    %v3708 = vshrl.u32 %v3707, 7
    %v3709 = vsub.s32 %v3119, %v3708
    %v3710 = vrot.slane %v3064, %v3709
    %v3711 = vlaneseq
    %v3712 = vshrl.u32 %v3711, 7
    %v3713 = vsub.s32 %v3119, %v3712
    %v3714 = vrot.slane %v3067, %v3713
    %v3715 = vlaneseq
    %v3716 = vshrl.u32 %v3715, 7
    %v3717 = vsub.s32 %v3119, %v3716
    %v3718 = vrot.slane %v3070, %v3717
    %v3719 = vlaneseq
    %v3720 = vshrl.u32 %v3719, 7
    %v3721 = vsub.s32 %v3119, %v3720
    %v3722 = vrot.slane %v3073, %v3721
    %v3723 = vlaneseq
    %v3724 = vshrl.u32 %v3723, 7
    %v3725 = vsub.s32 %v3119, %v3724
    %v3726 = vrot.slane %v3076, %v3725
    %v3727 = vlaneseq
    %v3728 = vshrl.u32 %v3727, 7
    %v3729 = vsub.s32 %v3119, %v3728
    %v3730 = vrot.slane %v3079, %v3729
    %v3731 = vlaneseq
    %v3732 = vshrl.u32 %v3731, 7
    %v3733 = vsub.s32 %v3119, %v3732
    %v3734 = vrot.slane %v3082, %v3733
    %v3735 = vsel %vm1381, %v3710, %v3706
    %v3736 = vsel %vm1383, %v3714, %v3735
    %v3737 = vsel %vm1385, %v3718, %v3736
    %v3738 = vsel %vm1387, %v3722, %v3737
    %v3739 = vsel %vm1389, %v3726, %v3738
    %v3740 = vsel %vm1391, %v3730, %v3739
    %v3741 = vsel %vm1393, %v3734, %v3740
    %v3744 = vsel %vm921, %v2001, 0
    %v3747 = vsel %vm3163, %v3694, 0
    %3749 = vmatprep.subr.bf16.mxu0 0
    %3750 = vmatpush1.bf16.msra.mxu0 %v3747
    %3751 = vmatprep.subr.bf16.mxu0 0
    %3752 = vmatpush1.bf16.msra.mxu0 0
    %3753 = vmatprep.subr.bf16.mxu0 0
    %3754 = vmatpush1.bf16.msra.mxu0 0
    %3755 = vmatprep.subr.bf16.mxu0 0
    %3756 = vmatpush1.bf16.msra.mxu0 0
    %3757 = vmatprep.subr.bf16.mxu0 0
    %3758 = vmatpush1.bf16.msra.mxu0 0
    %3759 = vmatprep.subr.bf16.mxu0 0
    %3760 = vmatpush1.bf16.msra.mxu0 0
    %3761 = vmatprep.subr.bf16.mxu0 0
    %3762 = vmatpush1.bf16.msra.mxu0 0
    %3763 = vmatprep.subr.bf16.mxu0 0
    %3764 = vmatpush1.bf16.msra.mxu0 0
    %3765 = vmatprep.subr.bf16.mxu0 0
    %3766 = vmatpush1.bf16.msra.mxu0 0
    %3767 = vmatprep.subr.bf16.mxu0 0
    %3768 = vmatpush1.bf16.msra.mxu0 0
    %3769 = vmatprep.subr.bf16.mxu0 0
    %3770 = vmatpush1.bf16.msra.mxu0 0
    %3771 = vmatprep.subr.bf16.mxu0 0
    %3772 = vmatpush1.bf16.msra.mxu0 0
    %3773 = vmatprep.subr.bf16.mxu0 0
    %3774 = vmatpush1.bf16.msra.mxu0 0
    %3775 = vmatprep.subr.bf16.mxu0 0
    %3776 = vmatpush1.bf16.msra.mxu0 0
    %3777 = vmatprep.subr.bf16.mxu0 0
    %3778 = vmatpush1.bf16.msra.mxu0 0
    %3779 = vmatprep.subr.bf16.mxu0 0
    %3780 = vmatpush1.bf16.msra.mxu0 0
    %3781 = vmatprep.mubr.bf16.mxu0 0
    %3782 = vmatmul.mubr.bf16.gmra.mrb[0].mxu0 %v3744
    %v3783 = vpop.f32.mrb[0].mxu0
    %v3784 = vadd.f32 %v3741, %v3783
    %v3785 = vpop.f32.mrb[0].mxu0
    %v3786 = vpop.f32.mrb[0].mxu0
    %v3787 = vpop.f32.mrb[0].mxu0
    %3788 = vdwg.mxu0
    %3790 = vrot.lane.b32.xlu0 %v272, 64
    %v3791 = vpop.permute.xlu0 %3790
    %v3800 = vlaneseq
    %v3801 = vshrl.u32 %v3800, 7
    %v3802 = vsub.s32 %v3119, %v3801
    %v3803 = vrot.slane %v3085, %v3802
    %v3804 = vlaneseq
    %v3805 = vshrl.u32 %v3804, 7
    %v3806 = vsub.s32 %v3119, %v3805
    %v3807 = vrot.slane %v3088, %v3806
    %v3808 = vlaneseq
    %v3809 = vshrl.u32 %v3808, 7
    %v3810 = vsub.s32 %v3119, %v3809
    %v3811 = vrot.slane %v3091, %v3810
    %v3812 = vlaneseq
    %v3813 = vshrl.u32 %v3812, 7
    %v3814 = vsub.s32 %v3119, %v3813
    %v3815 = vrot.slane %v3094, %v3814
    %v3816 = vlaneseq
    %v3817 = vshrl.u32 %v3816, 7
    %v3818 = vsub.s32 %v3119, %v3817
    %v3819 = vrot.slane %v3097, %v3818
    %v3820 = vlaneseq
    %v3821 = vshrl.u32 %v3820, 7
    %v3822 = vsub.s32 %v3119, %v3821
    %v3823 = vrot.slane %v3100, %v3822
    %v3824 = vlaneseq
    %v3825 = vshrl.u32 %v3824, 7
    %v3826 = vsub.s32 %v3119, %v3825
    %v3827 = vrot.slane %v3103, %v3826
    %v3828 = vlaneseq
    %v3829 = vshrl.u32 %v3828, 7
    %v3830 = vsub.s32 %v3119, %v3829
    %v3831 = vrot.slane %v3106, %v3830
    %v3832 = vsel %vm1381, %v3807, %v3803
    %v3833 = vsel %vm1383, %v3811, %v3832
    %v3834 = vsel %vm1385, %v3815, %v3833
    %v3835 = vsel %vm1387, %v3819, %v3834
    %v3836 = vsel %vm1389, %v3823, %v3835
    %v3837 = vsel %vm1391, %v3827, %v3836
    %v3838 = vsel %vm1393, %v3831, %v3837
    %v3841 = vsel %vm921, %v2002, 0
    %v3844 = vsel %vm3163, %v3791, 0
    %3846 = vmatprep.subr.bf16.mxu0 0
    %3847 = vmatpush1.bf16.msra.mxu0 %v3844
    %3848 = vmatprep.subr.bf16.mxu0 0
    %3849 = vmatpush1.bf16.msra.mxu0 0
    %3850 = vmatprep.subr.bf16.mxu0 0
    %3851 = vmatpush1.bf16.msra.mxu0 0
    %3852 = vmatprep.subr.bf16.mxu0 0
    %3853 = vmatpush1.bf16.msra.mxu0 0
    %3854 = vmatprep.subr.bf16.mxu0 0
    %3855 = vmatpush1.bf16.msra.mxu0 0
    %3856 = vmatprep.subr.bf16.mxu0 0
    %3857 = vmatpush1.bf16.msra.mxu0 0
    %3858 = vmatprep.subr.bf16.mxu0 0
    %3859 = vmatpush1.bf16.msra.mxu0 0
    %3860 = vmatprep.subr.bf16.mxu0 0
    %3861 = vmatpush1.bf16.msra.mxu0 0
    %3862 = vmatprep.subr.bf16.mxu0 0
    %3863 = vmatpush1.bf16.msra.mxu0 0
    %3864 = vmatprep.subr.bf16.mxu0 0
    %3865 = vmatpush1.bf16.msra.mxu0 0
    %3866 = vmatprep.subr.bf16.mxu0 0
    %3867 = vmatpush1.bf16.msra.mxu0 0
    %3868 = vmatprep.subr.bf16.mxu0 0
    %3869 = vmatpush1.bf16.msra.mxu0 0
    %3870 = vmatprep.subr.bf16.mxu0 0
    %3871 = vmatpush1.bf16.msra.mxu0 0
    %3872 = vmatprep.subr.bf16.mxu0 0
    %3873 = vmatpush1.bf16.msra.mxu0 0
    %3874 = vmatprep.subr.bf16.mxu0 0
    %3875 = vmatpush1.bf16.msra.mxu0 0
    %3876 = vmatprep.subr.bf16.mxu0 0
    %3877 = vmatpush1.bf16.msra.mxu0 0
    %3878 = vmatprep.mubr.bf16.mxu0 0
    %3879 = vmatmul.mubr.bf16.gmra.mrb[0].mxu0 %v3841
    %v3880 = vpop.f32.mrb[0].mxu0
    %v3881 = vadd.f32 %v3838, %v3880
    %v3882 = vpop.f32.mrb[0].mxu0
    %v3883 = vpop.f32.mrb[0].mxu0
    %v3884 = vpop.f32.mrb[0].mxu0
    %3885 = vdwg.mxu0
    %3888 = vrot.lane.b32.xlu0 %v3299, 8
    %v3889 = vpop.permute.xlu0 %3888
    %3890 = vrot.lane.b32.xlu0 %v3687, 8
    %v3891 = vpop.permute.xlu0 %3890
    %3896 = vrot.lane.b32.xlu0 %v3396, 16
    %v3897 = vpop.permute.xlu0 %3896
    %3898 = vrot.lane.b32.xlu0 %v3784, 16
    %v3899 = vpop.permute.xlu0 %3898
    %3904 = vrot.lane.b32.xlu0 %v3493, 24
    %v3905 = vpop.permute.xlu0 %3904
    %3906 = vrot.lane.b32.xlu0 %v3881, 24
    %v3907 = vpop.permute.xlu0 %3906
    %v3910 = vsel %vm921, %v3202, %v3889
    %v3911 = vsel %vm921, %v3590, %v3891
    %vm3912 = vcmask 130048
    %v3913 = vsel %vm3912, %v3910, %v3897
    %v3914 = vsel %vm3912, %v3911, %v3899
    %vm3915 = vcmask 195584
    %v3916 = vsel %vm3915, %v3913, %v3905
    %v3917 = vsel %vm3915, %v3914, %v3907
    %v3918 = vadd.f32 %v55, %v3916
    %v3919 = vadd.f32 %v56, %v3917
    %v3920 = vsel %vm57, %v3918, 0.0
    %3921 = vadd.xlane.f32.xlu0 %v3920
    %v3922 = vpop.xlane.xlu0 %3921
    %v3923 = vsel %vm57, %v3919, 0.0
    %3924 = vadd.xlane.f32.xlu0 %v3923
    %v3925 = vpop.xlane.xlu0 %3924
    %v3926 = vmul.f32 %v3922, %v64
    %v3927 = vmul.f32 %v3925, %v64
    %v3928 = vsub.f32 %v3918, %v3926
    %v3929 = vsub.f32 %v3919, %v3927
    %v3930 = vmul.f32 %v3928, %v3928
    %v3931 = vmul.f32 %v3929, %v3929
    %v3932 = vsel %vm57, %v3930, 0.0
    %3933 = vadd.xlane.f32.xlu0 %v3932
    %v3934 = vpop.xlane.xlu0 %3933
    %v3935 = vsel %vm57, %v3931, 0.0
    %3936 = vadd.xlane.f32.xlu0 %v3935
    %v3937 = vpop.xlane.xlu0 %3936
    %v3938 = vmul.f32 %v3934, %v64
    %v3939 = vmul.f32 %v3937, %v64
    %v3940 = vadd.f32 %v3938, 1e-05
    %v3941 = vadd.f32 %v3939, 1e-05
    %v3942 = vrsqrt.pop %v3940
    %v3943 = vrsqrt.pop %v3941
    %v3944 = vmul.f32 %v3928, %v3942
    %v3945 = vmul.f32 %v3929, %v3943
    %v3946 = vld [vmem:[%s10] sm:$0x1]
    %v3948 = vlaneseq
    %v3949 = vshrl.u32 %v3948, 7
    %v3950 = vsub.s32 0, %v3949
    %v3951 = vrot.slane %v3946, %v3950
    %v3953 = vmul.f32 %v3944, %v3951
    %v3954 = vmul.f32 %v3945, %v3951
    %v3955 = vld [vmem:[%s11] sm:$0x1]
    %v3957 = vlaneseq
    %v3958 = vshrl.u32 %v3957, 7
    %v3959 = vsub.s32 0, %v3958
    %v3960 = vrot.slane %v3955, %v3959
    %v3962 = vadd.f32 %v3953, %v3960
    %v3963 = vadd.f32 %v3954, %v3960
    %v3964 = vpack.c.bf16 %v3963, %v3962
    %v3965 = vld [vmem:[%s12] sm:$0xf]
    %v3966 = vld [vmem:[%s12 + $0x4] sm:$0xf]
    %v3967 = vld [vmem:[%s12 + $0x8] sm:$0xf]
    %v3968 = vld [vmem:[%s12 + $0xc] sm:$0xf]
    %v3969 = vld [vmem:[%s13] sm:$0x1]
    %v3971 = vlaneseq
    %v3972 = vshrl.u32 %v3971, 7
    %v3973 = vsub.s32 0, %v3972
    %v3974 = vrot.slane %v3969, %v3973
    %v3980 = vunpack.c.l.b16 %v3965
    %v3981 = vunpack.c.l.b16 %v3966
    %v3982 = vunpack.c.l.b16 %v3967
    %v3983 = vunpack.c.l.b16 %v3968
    %v3984 = vpack.c.b16 %v3981, %v3980
    %v3985 = vpack.c.b16 %v3983, %v3982
    %v3989 = vsel %vm57, %v3964, 0
    %3991 = vmatprep.subr.bf16.mxu0 0
    %3992 = vmatpush1.bf16.msra.mxu0 %v3984
    %3993 = vmatprep.subr.bf16.mxu0 0
    %3994 = vmatpush1.bf16.msra.mxu0 %v3985
    %3995 = vmatprep.subr.bf16.mxu0 0
    %3996 = vmatpush1.bf16.msra.mxu0 0
    %3997 = vmatprep.subr.bf16.mxu0 0
    %3998 = vmatpush1.bf16.msra.mxu0 0
    %3999 = vmatprep.subr.bf16.mxu0 0
    %4000 = vmatpush1.bf16.msra.mxu0 0
    %4001 = vmatprep.subr.bf16.mxu0 0
    %4002 = vmatpush1.bf16.msra.mxu0 0
    %4003 = vmatprep.subr.bf16.mxu0 0
    %4004 = vmatpush1.bf16.msra.mxu0 0
    %4005 = vmatprep.subr.bf16.mxu0 0
    %4006 = vmatpush1.bf16.msra.mxu0 0
    %4007 = vmatprep.subr.bf16.mxu0 0
    %4008 = vmatpush1.bf16.msra.mxu0 0
    %4009 = vmatprep.subr.bf16.mxu0 0
    %4010 = vmatpush1.bf16.msra.mxu0 0
    %4011 = vmatprep.subr.bf16.mxu0 0
    %4012 = vmatpush1.bf16.msra.mxu0 0
    %4013 = vmatprep.subr.bf16.mxu0 0
    %4014 = vmatpush1.bf16.msra.mxu0 0
    %4015 = vmatprep.subr.bf16.mxu0 0
    %4016 = vmatpush1.bf16.msra.mxu0 0
    %4017 = vmatprep.subr.bf16.mxu0 0
    %4018 = vmatpush1.bf16.msra.mxu0 0
    %4019 = vmatprep.subr.bf16.mxu0 0
    %4020 = vmatpush1.bf16.msra.mxu0 0
    %4021 = vmatprep.subr.bf16.mxu0 0
    %4022 = vmatpush1.bf16.msra.mxu0 0
    %4023 = vmatprep.mubr.bf16.mxu0 0
    %4024 = vmatmul.mubr.bf16.gmra.mrb[0].mxu0 %v3989
    %v4025 = vpop.f32.mrb[0].mxu0
    %v4026 = vadd.f32 %v3974, %v4025
    %v4027 = vpop.f32.mrb[0].mxu0
    %v4028 = vpop.f32.mrb[0].mxu0
    %v4029 = vadd.f32 %v3974, %v4028
    %v4030 = vpop.f32.mrb[0].mxu0
    %4031 = vdwg.mxu0
    %v4032 = vmax.f32 %v4026, 0.0
    %v4033 = vmax.f32 %v4029, 0.0
    %v4034 = vpack.c.bf16 %v4033, %v4032
    %v4035 = vld [vmem:[%s14] sm:$0xf]
    %v4036 = vld [vmem:[%s14 + $0x4] sm:$0xf]
    %v4037 = vld [vmem:[%s14 + $0x8] sm:$0xf]
    %v4038 = vld [vmem:[%s14 + $0xc] sm:$0xf]
    %v4039 = vld [vmem:[%s15] sm:$0x1]
    %v4041 = vlaneseq
    %v4042 = vshrl.u32 %v4041, 7
    %v4043 = vsub.s32 0, %v4042
    %v4044 = vrot.slane %v4039, %v4043
    %v4050 = vunpack.c.l.b16 %v4035
    %v4051 = vunpack.c.l.b16 %v4036
    %v4052 = vunpack.c.l.b16 %v4037
    %v4053 = vunpack.c.l.b16 %v4038
    %v4054 = vpack.c.b16 %v4051, %v4050
    %v4055 = vpack.c.b16 %v4053, %v4052
    %v4059 = vsel %vm57, %v4034, 0
    %4061 = vmatprep.subr.bf16.mxu0 0
    %4062 = vmatpush1.bf16.msra.mxu0 %v4054
    %4063 = vmatprep.subr.bf16.mxu0 0
    %4064 = vmatpush1.bf16.msra.mxu0 %v4055
    %4065 = vmatprep.subr.bf16.mxu0 0
    %4066 = vmatpush1.bf16.msra.mxu0 0
    %4067 = vmatprep.subr.bf16.mxu0 0
    %4068 = vmatpush1.bf16.msra.mxu0 0
    %4069 = vmatprep.subr.bf16.mxu0 0
    %4070 = vmatpush1.bf16.msra.mxu0 0
    %4071 = vmatprep.subr.bf16.mxu0 0
    %4072 = vmatpush1.bf16.msra.mxu0 0
    %4073 = vmatprep.subr.bf16.mxu0 0
    %4074 = vmatpush1.bf16.msra.mxu0 0
    %4075 = vmatprep.subr.bf16.mxu0 0
    %4076 = vmatpush1.bf16.msra.mxu0 0
    %4077 = vmatprep.subr.bf16.mxu0 0
    %4078 = vmatpush1.bf16.msra.mxu0 0
    %4079 = vmatprep.subr.bf16.mxu0 0
    %4080 = vmatpush1.bf16.msra.mxu0 0
    %4081 = vmatprep.subr.bf16.mxu0 0
    %4082 = vmatpush1.bf16.msra.mxu0 0
    %4083 = vmatprep.subr.bf16.mxu0 0
    %4084 = vmatpush1.bf16.msra.mxu0 0
    %4085 = vmatprep.subr.bf16.mxu0 0
    %4086 = vmatpush1.bf16.msra.mxu0 0
    %4087 = vmatprep.subr.bf16.mxu0 0
    %4088 = vmatpush1.bf16.msra.mxu0 0
    %4089 = vmatprep.subr.bf16.mxu0 0
    %4090 = vmatpush1.bf16.msra.mxu0 0
    %4091 = vmatprep.subr.bf16.mxu0 0
    %4092 = vmatpush1.bf16.msra.mxu0 0
    %4093 = vmatprep.mubr.bf16.mxu0 0
    %4094 = vmatmul.mubr.bf16.gmra.mrb[0].mxu0 %v4059
    %v4095 = vpop.f32.mrb[0].mxu0
    %v4096 = vadd.f32 %v4044, %v4095
    %v4097 = vpop.f32.mrb[0].mxu0
    %v4098 = vpop.f32.mrb[0].mxu0
    %v4099 = vadd.f32 %v4044, %v4098
    %v4100 = vpop.f32.mrb[0].mxu0
    %4101 = vdwg.mxu0
    %v4102 = vadd.f32 %v3918, %v4096
    %v4103 = vadd.f32 %v3919, %v4099
    %4104 = vst.msk [vmem:[#allocation2] sm:$0xff] %vm57, %v4102
    %4105 = vst.msk [vmem:[#allocation2 + $0x8] sm:$0xff] %vm57, %v4103
    // Predicated region
    $region66: #{tisas_transformer_block.1} parent=1 // pred_check
      _
    $region67: #{tisas_transformer_block.1} parent=1 // pred_check_branch
      %4107 = sbr.rel (0) target = $region69
    $region68: #{tisas_transformer_block.1} parent=1 // pred_region
      %s4109 = ssub.s32 256, 256
      %4110 = vsyncadd [#allocation3], %s4109
      %s4111 = sshll.u32 [#allocation2], 4
      %s4112 = int_to_ptr.vmem [resolvable:$true] %s4111
      %4117 = dma.vmem_to_hbm [thread:$0]  %s4112, 256, %s16, [#allocation3], 128, 128, 8
    $region69: #{tisas_transformer_block.1} parent=1 // pred_fallthru
      _
    // Predicated region
    $region70: #{tisas_transformer_block.1} parent=1 // pred_check
      _
    $region71: #{tisas_transformer_block.1} parent=1 // pred_check_branch
      %4119 = sbr.rel (0) target = $region73
    $region72: #{tisas_transformer_block.1} parent=1 // pred_region
      %4120 = dma.done [#allocation3], 256
    $region73: #{tisas_transformer_block.1} parent=1 // pred_fallthru
      _
    %4121 = vsyncpa [#allocation3], 1

</llo_original>
